<compile_context>
chip_gen: v7x
topology: tpu7x:2x2x1
jax: 0.10.0
libtpu: 0.0.40
codegen_flags: <defaults>
</compile_context>

<pallas_src>
import functools
import math

import jax
import jax.numpy as jnp
import numpy as np
from jax.experimental import pallas as pl
from jax.experimental.pallas import tpu as pltpu

F32_EPS = 1.1920928955078125e-07  # torch.finfo(torch.float32).eps (F.rms_norm default)


def attn_kernel(x_ref, cos_ref, sin_ref, wqkv_ref, wo_ref, o_ref, *,
                head_dim, q_chunk, scale):
    h = pl.program_id(1)

    xb = x_ref[0]                      # (T, C)   bf16
    wqkv = wqkv_ref[0]                 # (C, 3Dh) bf16 (this head's fused QKV)
    wo = wo_ref[0]                     # (Dh, C)  bf16 (this head's out-proj rows)
    cos = cos_ref[...]                 # (T, Dh)  f32  = [cos | cos]
    sin = sin_ref[...]                 # (T, Dh)  f32  = [sin | -sin]

    # Fused QKV projection for this head: one MXU pass (K = C), f32 accumulation.
    qkv = jnp.dot(xb, wqkv, preferred_element_type=jnp.float32)   # (T, 3Dh) f32

    Dh = head_dim
    q = qkv[:, :Dh]
    k = qkv[:, Dh:2 * Dh]
    v = qkv[:, 2 * Dh:]

    def norm_rope(z):
        # F.rms_norm over head_dim (f32), then rotary as full-width mul-add +
        # a single lane rotation (XLU) — no half-width slicing / concat.
        zn = z * jax.lax.rsqrt(jnp.mean(z * z, axis=-1, keepdims=True) + F32_EPS)
        return zn * cos + pltpu.roll(zn, shift=Dh // 2, axis=1) * sin

    qr = norm_rope(q) * scale          # fold 1/sqrt(Dh) into q (O(T*Dh))
    kr = norm_rope(k)

    k_bf = kr.astype(jnp.bfloat16)
    v_bf = v.astype(jnp.bfloat16)

    T = xb.shape[0]
    n_chunks = T // q_chunk

    # Hoisted causal-mask index tables (built once per (b, h), not per chunk).
    rows = jax.lax.broadcasted_iota(jnp.int32, (q_chunk, T), 0)
    cols = jax.lax.broadcasted_iota(jnp.int32, (q_chunk, T), 1)
    row_minus_col = rows - cols        # keep score iff row_minus_col + r0 >= 0

    # Static Python loop: r0 / kv_len are compile-time constants, so the
    # causal truncation below is a static slice (no masked/partial lanes when
    # q_chunk is a multiple of 128).  For very long T (many chunks) consider
    # capping unrolling via an extra grid axis over query chunks.
    for i in range(n_chunks):
        r0 = i * q_chunk
        kv_len = r0 + q_chunk          # keys beyond kv_len are always masked

        qc_bf = qr[r0:r0 + q_chunk, :].astype(jnp.bfloat16)         # (tq, Dh)
        kc_bf = k_bf[:kv_len, :]                                    # (kv, Dh)
        vc_bf = v_bf[:kv_len, :]                                    # (kv, Dh)

        # Standard TPU attention contraction (contract head_dim, RHS minor dim)
        # — same pattern as the reference flash kernel, no materialized k^T.
        s = jax.lax.dot_general(qc_bf, kc_bf, (((1,), (1,)), ((), ())),
                                preferred_element_type=jnp.float32)  # (tq, kv)

        # Causal mask for this chunk: only the diagonal block is actually
        # masked; diagonal always kept -> row max is finite.
        keep = (row_minus_col[:, :kv_len] + r0) >= 0
        s = jnp.where(keep, s, -jnp.inf)

        m = jnp.max(s, axis=-1, keepdims=True)
        p = jnp.exp(s - m)
        inv_l = pl.reciprocal(jnp.sum(p, axis=-1, keepdims=True), approx=True)

        y = jnp.dot(p.astype(jnp.bfloat16), vc_bf,
                    preferred_element_type=jnp.float32) * inv_l      # (tq, Dh)

        # Fused per-head output projection, written/accumulated into the
        # head-resident output block.  Head 0 stores (no zero-fill pass).
        contrib = jnp.dot(y.astype(jnp.bfloat16), wo,
                          preferred_element_type=jnp.float32)        # (tq, C)

        @pl.when(h == 0)
        def _():
            o_ref[0, r0:r0 + q_chunk, :] = contrib

        @pl.when(h != 0)
        def _():
            o_ref[0, r0:r0 + q_chunk, :] += contrib


def causal_self_attention(x, cos, sin, wq_t, wk_t, wv_t, wo_t, *,
                          n_head, q_chunk=256, vmem_limit_bytes=None):
    """x: (B,T,C) f32.  w*_t are nn.Linear weights PRE-TRANSPOSED (y = x @ W).
    cos/sin: (T, head_dim//2) f32 (bf16-rounded, like the PyTorch cache).

    q_chunk: 256 fills the 256-row MXU on v6e/v7x; use 128 on v5e.  Prefer
    multiples of 128 so score tiles stay lane-dense.
    vmem_limit_bytes: set explicitly on v7x (64 MiB physical / 32 MiB default
    scoped) when T*C gets large."""
    B, T, C = x.shape
    Dh = C // n_head
    scale = 1.0 / math.sqrt(Dh)        # mup_enabled=False branch
    q_chunk = min(q_chunk, T)
    assert T % q_chunk == 0 and q_chunk % 8 == 0
    # Dh a multiple of 128 keeps the qkv lane slices and score tiles aligned.
    # For Dh=64-style configs, packing 2 heads per grid step would restore
    # 128-multiple lane widths (not needed for these shapes).

    # Pack per-head weights, cast to bf16 for the MXU.
    def per_head_cols(w_t):            # (C, C) -> (H, C, Dh)
        return w_t.reshape(C, n_head, Dh).transpose(1, 0, 2)

    wqkv = jnp.concatenate(
        [per_head_cols(wq_t), per_head_cols(wk_t), per_head_cols(wv_t)],
        axis=-1).astype(jnp.bfloat16)                    # (H, C, 3Dh)
    wo = wo_t.reshape(n_head, Dh, C).astype(jnp.bfloat16)  # (H, Dh, C)

    # Full-width rotary tables: rope(z) = z*[cos|cos] + roll(z, Dh/2)*[sin|-sin]
    cos_f = jnp.concatenate([cos, cos], axis=-1).astype(jnp.float32)   # (T, Dh)
    sin_f = jnp.concatenate([sin, -sin], axis=-1).astype(jnp.float32)  # (T, Dh)

    kernel = functools.partial(attn_kernel, head_dim=Dh, q_chunk=q_chunk,
                               scale=scale)
    return pl.pallas_call(
        kernel,
        out_shape=jax.ShapeDtypeStruct((B, T, C), jnp.float32),
        grid=(B, n_head),
        in_specs=[
            pl.BlockSpec((1, T, C), lambda b, h: (b, 0, 0)),     # x (bf16)
            pl.BlockSpec((T, Dh), lambda b, h: (0, 0)),          # cos table
            pl.BlockSpec((T, Dh), lambda b, h: (0, 0)),          # sin table
            pl.BlockSpec((1, C, 3 * Dh), lambda b, h: (h, 0, 0)),  # fused QKV
            pl.BlockSpec((1, Dh, C), lambda b, h: (h, 0, 0)),    # out-proj rows
        ],
        out_specs=pl.BlockSpec((1, T, C), lambda b, h: (b, 0, 0)),
        compiler_params=pltpu.CompilerParams(
            # Output block is revisited across the head axis -> "arbitrary".
            # (On v7x with B==1, splitting heads into two "parallel" groups
            #  would keep both TensorCores busy.)
            dimension_semantics=("parallel", "arbitrary"),
            vmem_limit_bytes=vmem_limit_bytes),
    )(x.astype(jnp.bfloat16), cos_f, sin_f, wqkv, wo)


# ---------------- pure-JAX f32 reference (matches the PyTorch module) ----------------
def attn_ref(x, cos, sin, wq_t, wk_t, wv_t, wo_t, *, n_head):
    B, T, C = x.shape
    Dh = C // n_head
    d = Dh // 2
    scale = 1.0 / math.sqrt(Dh)

    def rms(z):
        return z * jax.lax.rsqrt(jnp.mean(z * z, -1, keepdims=True) + F32_EPS)

    q = (x @ wq_t).reshape(B, T, n_head, Dh)
    k = (x @ wk_t).reshape(B, T, n_head, Dh)
    v = (x @ wv_t).reshape(B, T, n_head, Dh)
    q, k = rms(q), rms(k)
    c = cos[None, :, None, :]
    s = sin[None, :, None, :]

    def rope(z):
        z1, z2 = z[..., :d], z[..., d:]
        return jnp.concatenate([z1 * c + z2 * s, -z1 * s + z2 * c], axis=-1)

    q, k = rope(q), rope(k)
    q, k, v = (t.transpose(0, 2, 1, 3) for t in (q, k, v))   # (B, H, T, Dh)
    att = jnp.einsum("bhtd,bhsd->bhts", q, k) * scale
    mask = jnp.tril(jnp.ones((T, T), dtype=bool))
    att = jnp.where(mask[None, None], att, -jnp.inf)
    att = jax.nn.softmax(att, axis=-1)
    y = jnp.einsum("bhts,bhsd->bhtd", att, v)
    return y.transpose(0, 2, 1, 3).reshape(B, T, C) @ wo_t


if __name__ == "__main__":
    # Small but lane-aligned shapes (C and head_dim multiples of 128); T=256
    # with q_chunk=128 exercises two chunks and the causal truncation path.
    B, T, C, n_head = 2, 256, 256, 2
    Dh = C // n_head
    d = Dh // 2

    key = jax.random.PRNGKey(0)
    kx, kq, kk, kv, ko = jax.random.split(key, 5)
    x = jax.random.normal(kx, (B, T, C), dtype=jnp.float32)

    # nn.Linear weights (out, in), pre-transposed to (in, out).
    # NOTE: the PyTorch module zero-inits c_proj; we use small random values
    # instead so the attention path is exercised numerically.
    wq_t = (0.02 * jax.random.normal(kq, (C, C))).T.astype(jnp.float32)
    wk_t = (0.02 * jax.random.normal(kk, (C, C))).T.astype(jnp.float32)
    wv_t = (0.02 * jax.random.normal(kv, (C, C))).T.astype(jnp.float32)
    wo_t = (0.02 * jax.random.normal(ko, (C, C))).T.astype(jnp.float32)

    # Rotary cache (bf16-rounded like the PyTorch module, used as f32).
    inv_freq = 1.0 / (10000.0 ** (jnp.arange(0, Dh, 2, dtype=jnp.float32) / Dh))
    freqs = jnp.arange(T, dtype=jnp.float32)[:, None] * inv_freq[None, :]   # (T, d)
    cos = jnp.cos(freqs).astype(jnp.bfloat16).astype(jnp.float32)
    sin = jnp.sin(freqs).astype(jnp.bfloat16).astype(jnp.float32)

    out = causal_self_attention(x, cos, sin, wq_t, wk_t, wv_t, wo_t,
                                n_head=n_head, q_chunk=128)
    out = jax.block_until_ready(out)

    ref = attn_ref(x, cos, sin, wq_t, wk_t, wv_t, wo_t, n_head=n_head)
    # Tolerance accounts for bf16 MXU operands (f32 accumulation) vs f32 ref.
    np.testing.assert_allclose(np.asarray(out), np.asarray(ref),
                               rtol=2e-2, atol=5e-3)
    print("KERNEL_OK")
</pallas_src>

<mosaic_0001>
module attributes {stable_mosaic.version = 11 : i64} {
  func.func @attn_kernel(%arg0: i32, %arg1: i32, %arg2: memref<1x256x256xbf16, #tpu.memory_space<vmem>>, %arg3: memref<256x128xf32, #tpu.memory_space<vmem>>, %arg4: memref<256x128xf32, #tpu.memory_space<vmem>>, %arg5: memref<1x256x384xbf16, #tpu.memory_space<vmem>>, %arg6: memref<1x128x256xbf16, #tpu.memory_space<vmem>>, %arg7: memref<1x256x256xf32, #tpu.memory_space<vmem>>) attributes {dimension_semantics = [#tpu.dimension_semantics<parallel>, #tpu.dimension_semantics<arbitrary>], iteration_bounds = array<i64: 2, 2>, scalar_prefetch = 0 : i64, scratch_operands = 0 : i64, tpu.core_type = #tpu.core_type<tc>, window_params = [{transform_indices = @transform_0, window_bounds = array<i64: 1, 256, 256>}, {pipeline_mode = #tpu.pipeline_mode<synchronous>, transform_indices = @transform_1, window_bounds = array<i64: 256, 128>}, {pipeline_mode = #tpu.pipeline_mode<synchronous>, transform_indices = @transform_2, window_bounds = array<i64: 256, 128>}, {transform_indices = @transform_3, window_bounds = array<i64: 1, 256, 384>}, {transform_indices = @transform_4, window_bounds = array<i64: 1, 128, 256>}, {transform_indices = @transform_5, window_bounds = array<i64: 1, 256, 256>}]} {
    %c0 = arith.constant 0 : index
    %c0_0 = arith.constant 0 : index
    %c0_1 = arith.constant 0 : index
    %0 = vector.load %arg2[%c0, %c0_0, %c0_1] : memref<1x256x256xbf16, #tpu.memory_space<vmem>>, vector<1x256x256xbf16>
    %1 = vector.shape_cast %0 : vector<1x256x256xbf16> to vector<256x256xbf16>
    %c0_2 = arith.constant 0 : index
    %c0_3 = arith.constant 0 : index
    %c0_4 = arith.constant 0 : index
    %2 = vector.load %arg5[%c0_2, %c0_3, %c0_4] : memref<1x256x384xbf16, #tpu.memory_space<vmem>>, vector<1x256x384xbf16>
    %3 = vector.shape_cast %2 : vector<1x256x384xbf16> to vector<256x384xbf16>
    %c0_5 = arith.constant 0 : index
    %c0_6 = arith.constant 0 : index
    %c0_7 = arith.constant 0 : index
    %4 = vector.load %arg6[%c0_5, %c0_6, %c0_7] : memref<1x128x256xbf16, #tpu.memory_space<vmem>>, vector<1x128x256xbf16>
    %5 = vector.shape_cast %4 : vector<1x128x256xbf16> to vector<128x256xbf16>
    %c0_8 = arith.constant 0 : index
    %c0_9 = arith.constant 0 : index
    %6 = vector.load %arg3[%c0_8, %c0_9] : memref<256x128xf32, #tpu.memory_space<vmem>>, vector<256x128xf32>
    %c0_10 = arith.constant 0 : index
    %c0_11 = arith.constant 0 : index
    %7 = vector.load %arg4[%c0_10, %c0_11] : memref<256x128xf32, #tpu.memory_space<vmem>>, vector<256x128xf32>
    %cst = arith.constant dense<0.000000e+00> : vector<256x384xf32>
    %8 = tpu.matmul %1, %3, %cst {dimension_numbers = #tpu.dot_dimension_numbers<[1], [0], [0], [1], [0, 0, 1, 1], [], []>} : vector<256x256xbf16>, vector<256x384xbf16>, vector<256x384xf32> -> vector<256x384xf32>
    %9 = vector.extract_strided_slice %8 {offsets = [0, 0], sizes = [256, 128], strides = [1, 1]} : vector<256x384xf32> to vector<256x128xf32>
    %10 = vector.extract_strided_slice %8 {offsets = [0, 128], sizes = [256, 128], strides = [1, 1]} : vector<256x384xf32> to vector<256x128xf32>
    %11 = vector.extract_strided_slice %8 {offsets = [0, 256], sizes = [256, 128], strides = [1, 1]} : vector<256x384xf32> to vector<256x128xf32>
    %12 = arith.mulf %9, %9 : vector<256x128xf32>
    %cst_12 = arith.constant dense<0.000000e+00> : vector<256xf32>
    %13 = vector.multi_reduction <add>, %12, %cst_12 [1] : vector<256x128xf32> to vector<256xf32>
    %14 = vector.shape_cast %13 : vector<256xf32> to vector<256x1xf32>
    %cst_13 = arith.constant 1.280000e+02 : f32
    %15 = vector.broadcast %cst_13 : f32 to vector<256x1xf32>
    %16 = arith.divf %14, %15 : vector<256x1xf32>
    %cst_14 = arith.constant 1.1920929E-7 : f32
    %17 = vector.broadcast %cst_14 : f32 to vector<256x1xf32>
    %18 = arith.addf %16, %17 : vector<256x1xf32>
    %19 = math.rsqrt %18 : vector<256x1xf32>
    %20 = vector.broadcast %19 : vector<256x1xf32> to vector<256x128xf32>
    %21 = arith.mulf %9, %20 : vector<256x128xf32>
    %22 = arith.mulf %21, %6 : vector<256x128xf32>
    %c64_i32 = arith.constant 64 : i32
    %23 = tpu.dynamic_rotate %21 by %c64_i32 dim 1 : vector<256x128xf32>, i32 -> vector<256x128xf32>
    %24 = arith.mulf %23, %7 : vector<256x128xf32>
    %25 = arith.addf %22, %24 : vector<256x128xf32>
    %cst_15 = arith.constant 0.0883883461 : f32
    %26 = vector.broadcast %cst_15 : f32 to vector<256x128xf32>
    %27 = arith.mulf %25, %26 : vector<256x128xf32>
    %28 = arith.mulf %10, %10 : vector<256x128xf32>
    %cst_16 = arith.constant dense<0.000000e+00> : vector<256xf32>
    %29 = vector.multi_reduction <add>, %28, %cst_16 [1] : vector<256x128xf32> to vector<256xf32>
    %30 = vector.shape_cast %29 : vector<256xf32> to vector<256x1xf32>
    %cst_17 = arith.constant 1.280000e+02 : f32
    %31 = vector.broadcast %cst_17 : f32 to vector<256x1xf32>
    %32 = arith.divf %30, %31 : vector<256x1xf32>
    %cst_18 = arith.constant 1.1920929E-7 : f32
    %33 = vector.broadcast %cst_18 : f32 to vector<256x1xf32>
    %34 = arith.addf %32, %33 : vector<256x1xf32>
    %35 = math.rsqrt %34 : vector<256x1xf32>
    %36 = vector.broadcast %35 : vector<256x1xf32> to vector<256x128xf32>
    %37 = arith.mulf %10, %36 : vector<256x128xf32>
    %38 = arith.mulf %37, %6 : vector<256x128xf32>
    %c64_i32_19 = arith.constant 64 : i32
    %39 = tpu.dynamic_rotate %37 by %c64_i32_19 dim 1 : vector<256x128xf32>, i32 -> vector<256x128xf32>
    %40 = arith.mulf %39, %7 : vector<256x128xf32>
    %41 = arith.addf %38, %40 : vector<256x128xf32>
    %42 = arith.truncf %41 : vector<256x128xf32> to vector<256x128xbf16>
    %43 = arith.truncf %11 : vector<256x128xf32> to vector<256x128xbf16>
    %44 = tpu.iota {dimensions = array<i32: 0>} : vector<128x256xi32>
    %45 = tpu.iota {dimensions = array<i32: 1>} : vector<128x256xi32>
    %46 = arith.subi %44, %45 : vector<128x256xi32>
    %47 = vector.extract_strided_slice %27 {offsets = [0, 0], sizes = [128, 128], strides = [1, 1]} : vector<256x128xf32> to vector<128x128xf32>
    %48 = arith.truncf %47 : vector<128x128xf32> to vector<128x128xbf16>
    %49 = vector.extract_strided_slice %42 {offsets = [0, 0], sizes = [128, 128], strides = [1, 1]} : vector<256x128xbf16> to vector<128x128xbf16>
    %50 = vector.extract_strided_slice %43 {offsets = [0, 0], sizes = [128, 128], strides = [1, 1]} : vector<256x128xbf16> to vector<128x128xbf16>
    %cst_20 = arith.constant dense<0.000000e+00> : vector<128x128xf32>
    %51 = tpu.matmul %48, %49, %cst_20 {dimension_numbers = #tpu.dot_dimension_numbers<[1], [1], [0], [0], [0, 0, 1, 0], [], []>} : vector<128x128xbf16>, vector<128x128xbf16>, vector<128x128xf32> -> vector<128x128xf32>
    %52 = vector.extract_strided_slice %46 {offsets = [0, 0], sizes = [128, 128], strides = [1, 1]} : vector<128x256xi32> to vector<128x128xi32>
    %c0_i32 = arith.constant 0 : i32
    %53 = vector.broadcast %c0_i32 : i32 to vector<128x128xi32>
    %54 = arith.addi %52, %53 : vector<128x128xi32>
    %c0_i32_21 = arith.constant 0 : i32
    %55 = vector.broadcast %c0_i32_21 : i32 to vector<128x128xi32>
    %56 = arith.cmpi sge, %54, %55 : vector<128x128xi32>
    %cst_22 = arith.constant 0xFF800000 : f32
    %57 = vector.broadcast %cst_22 : f32 to vector<128x128xf32>
    %58 = arith.select %56, %51, %57 : vector<128x128xi1>, vector<128x128xf32>
    %cst_23 = arith.constant dense<0xFF800000> : vector<128xf32>
    %59 = vector.multi_reduction <maximumf>, %58, %cst_23 [1] : vector<128x128xf32> to vector<128xf32>
    %60 = vector.shape_cast %59 : vector<128xf32> to vector<128x1xf32>
    %61 = vector.broadcast %60 : vector<128x1xf32> to vector<128x128xf32>
    %62 = arith.subf %58, %61 : vector<128x128xf32>
    %63 = math.exp %62 : vector<128x128xf32>
    %cst_24 = arith.constant dense<0.000000e+00> : vector<128xf32>
    %64 = vector.multi_reduction <add>, %63, %cst_24 [1] : vector<128x128xf32> to vector<128xf32>
    %65 = vector.shape_cast %64 : vector<128xf32> to vector<128x1xf32>
    %66 = tpu.reciprocal %65 {approx = true} : vector<128x1xf32> -> vector<128x1xf32>
    %67 = arith.truncf %63 : vector<128x128xf32> to vector<128x128xbf16>
    %cst_25 = arith.constant dense<0.000000e+00> : vector<128x128xf32>
    %68 = tpu.matmul %67, %50, %cst_25 {dimension_numbers = #tpu.dot_dimension_numbers<[1], [0], [0], [1], [0, 0, 1, 1], [], []>} : vector<128x128xbf16>, vector<128x128xbf16>, vector<128x128xf32> -> vector<128x128xf32>
    %69 = vector.broadcast %66 : vector<128x1xf32> to vector<128x128xf32>
    %70 = arith.mulf %68, %69 : vector<128x128xf32>
    %71 = arith.truncf %70 : vector<128x128xf32> to vector<128x128xbf16>
    %cst_26 = arith.constant dense<0.000000e+00> : vector<128x256xf32>
    %72 = tpu.matmul %71, %5, %cst_26 {dimension_numbers = #tpu.dot_dimension_numbers<[1], [0], [0], [1], [0, 0, 1, 1], [], []>} : vector<128x128xbf16>, vector<128x256xbf16>, vector<128x256xf32> -> vector<128x256xf32>
    %c0_i32_27 = arith.constant 0 : i32
    %73 = arith.cmpi eq, %arg1, %c0_i32_27 : i32
    %74 = arith.extui %73 : i1 to i32
    %c0_i32_28 = arith.constant 0 : i32
    %75 = arith.cmpi ne, %74, %c0_i32_28 : i32
    scf.if %75 {
      %c0_42 = arith.constant 0 : index
      %c0_43 = arith.constant 0 : index
      %c0_44 = arith.constant 0 : index
      %108 = vector.load %arg7[%c0_42, %c0_43, %c0_44] : memref<1x256x256xf32, #tpu.memory_space<vmem>>, vector<1x128x256xf32>
      %109 = vector.shape_cast %108 : vector<1x128x256xf32> to vector<128x256xf32>
      %110 = vector.shape_cast %72 : vector<128x256xf32> to vector<1x128x256xf32>
      tpu.vector_store %arg7[%c0_42, %c0_43, %c0_44], %110 {strides = array<i32>} : memref<1x256x256xf32, #tpu.memory_space<vmem>>, vector<1x128x256xf32>,
    } else {
    }
    %c0_i32_29 = arith.constant 0 : i32
    %76 = arith.cmpi ne, %arg1, %c0_i32_29 : i32
    %77 = arith.extui %76 : i1 to i32
    %c0_i32_30 = arith.constant 0 : i32
    %78 = arith.cmpi ne, %77, %c0_i32_30 : i32
    scf.if %78 {
      %c0_42 = arith.constant 0 : index
      %c0_43 = arith.constant 0 : index
      %c0_44 = arith.constant 0 : index
      %108 = vector.load %arg7[%c0_42, %c0_43, %c0_44] : memref<1x256x256xf32, #tpu.memory_space<vmem>>, vector<1x128x256xf32>
      %109 = vector.shape_cast %108 : vector<1x128x256xf32> to vector<128x256xf32>
      %110 = arith.addf %109, %72 : vector<128x256xf32>
      %c0_45 = arith.constant 0 : index
      %c0_46 = arith.constant 0 : index
      %c0_47 = arith.constant 0 : index
      %111 = vector.load %arg7[%c0_45, %c0_46, %c0_47] : memref<1x256x256xf32, #tpu.memory_space<vmem>>, vector<1x128x256xf32>
      %112 = vector.shape_cast %111 : vector<1x128x256xf32> to vector<128x256xf32>
      %113 = vector.shape_cast %110 : vector<128x256xf32> to vector<1x128x256xf32>
      tpu.vector_store %arg7[%c0_45, %c0_46, %c0_47], %113 {strides = array<i32>} : memref<1x256x256xf32, #tpu.memory_space<vmem>>, vector<1x128x256xf32>,
    } else {
    }
    %79 = vector.extract_strided_slice %27 {offsets = [128, 0], sizes = [128, 128], strides = [1, 1]} : vector<256x128xf32> to vector<128x128xf32>
    %80 = arith.truncf %79 : vector<128x128xf32> to vector<128x128xbf16>
    %cst_31 = arith.constant dense<0.000000e+00> : vector<128x256xf32>
    %81 = tpu.matmul %80, %42, %cst_31 {dimension_numbers = #tpu.dot_dimension_numbers<[1], [1], [0], [0], [0, 0, 1, 0], [], []>} : vector<128x128xbf16>, vector<256x128xbf16>, vector<128x256xf32> -> vector<128x256xf32>
    %c128_i32 = arith.constant 128 : i32
    %82 = vector.broadcast %c128_i32 : i32 to vector<128x256xi32>
    %83 = arith.addi %46, %82 : vector<128x256xi32>
    %c0_i32_32 = arith.constant 0 : i32
    %84 = vector.broadcast %c0_i32_32 : i32 to vector<128x256xi32>
    %85 = arith.cmpi sge, %83, %84 : vector<128x256xi32>
    %cst_33 = arith.constant 0xFF800000 : f32
    %86 = vector.broadcast %cst_33 : f32 to vector<128x256xf32>
    %87 = arith.select %85, %81, %86 : vector<128x256xi1>, vector<128x256xf32>
    %cst_34 = arith.constant dense<0xFF800000> : vector<128xf32>
    %88 = vector.multi_reduction <maximumf>, %87, %cst_34 [1] : vector<128x256xf32> to vector<128xf32>
    %89 = vector.shape_cast %88 : vector<128xf32> to vector<128x1xf32>
    %90 = vector.broadcast %89 : vector<128x1xf32> to vector<128x256xf32>
    %91 = arith.subf %87, %90 : vector<128x256xf32>
    %92 = math.exp %91 : vector<128x256xf32>
    %cst_35 = arith.constant dense<0.000000e+00> : vector<128xf32>
    %93 = vector.multi_reduction <add>, %92, %cst_35 [1] : vector<128x256xf32> to vector<128xf32>
    %94 = vector.shape_cast %93 : vector<128xf32> to vector<128x1xf32>
    %95 = tpu.reciprocal %94 {approx = true} : vector<128x1xf32> -> vector<128x1xf32>
    %96 = arith.truncf %92 : vector<128x256xf32> to vector<128x256xbf16>
    %cst_36 = arith.constant dense<0.000000e+00> : vector<128x128xf32>
    %97 = tpu.matmul %96, %43, %cst_36 {dimension_numbers = #tpu.dot_dimension_numbers<[1], [0], [0], [1], [0, 0, 1, 1], [], []>} : vector<128x256xbf16>, vector<256x128xbf16>, vector<128x128xf32> -> vector<128x128xf32>
    %98 = vector.broadcast %95 : vector<128x1xf32> to vector<128x128xf32>
    %99 = arith.mulf %97, %98 : vector<128x128xf32>
    %100 = arith.truncf %99 : vector<128x128xf32> to vector<128x128xbf16>
    %cst_37 = arith.constant dense<0.000000e+00> : vector<128x256xf32>
    %101 = tpu.matmul %100, %5, %cst_37 {dimension_numbers = #tpu.dot_dimension_numbers<[1], [0], [0], [1], [0, 0, 1, 1], [], []>} : vector<128x128xbf16>, vector<128x256xbf16>, vector<128x256xf32> -> vector<128x256xf32>
    %c0_i32_38 = arith.constant 0 : i32
    %102 = arith.cmpi eq, %arg1, %c0_i32_38 : i32
    %103 = arith.extui %102 : i1 to i32
    %c0_i32_39 = arith.constant 0 : i32
    %104 = arith.cmpi ne, %103, %c0_i32_39 : i32
    scf.if %104 {
      %c0_42 = arith.constant 0 : index
      %c128 = arith.constant 128 : index
      %c0_43 = arith.constant 0 : index
      %108 = vector.load %arg7[%c0_42, %c128, %c0_43] : memref<1x256x256xf32, #tpu.memory_space<vmem>>, vector<1x128x256xf32>
      %109 = vector.shape_cast %108 : vector<1x128x256xf32> to vector<128x256xf32>
      %110 = vector.shape_cast %101 : vector<128x256xf32> to vector<1x128x256xf32>
      tpu.vector_store %arg7[%c0_42, %c128, %c0_43], %110 {strides = array<i32>} : memref<1x256x256xf32, #tpu.memory_space<vmem>>, vector<1x128x256xf32>,
    } else {
    }
    %c0_i32_40 = arith.constant 0 : i32
    %105 = arith.cmpi ne, %arg1, %c0_i32_40 : i32
    %106 = arith.extui %105 : i1 to i32
    %c0_i32_41 = arith.constant 0 : i32
    %107 = arith.cmpi ne, %106, %c0_i32_41 : i32
    scf.if %107 {
      %c0_42 = arith.constant 0 : index
      %c128 = arith.constant 128 : index
      %c0_43 = arith.constant 0 : index
      %108 = vector.load %arg7[%c0_42, %c128, %c0_43] : memref<1x256x256xf32, #tpu.memory_space<vmem>>, vector<1x128x256xf32>
      %109 = vector.shape_cast %108 : vector<1x128x256xf32> to vector<128x256xf32>
      %110 = arith.addf %109, %101 : vector<128x256xf32>
      %c0_44 = arith.constant 0 : index
      %c128_45 = arith.constant 128 : index
      %c0_46 = arith.constant 0 : index
      %111 = vector.load %arg7[%c0_44, %c128_45, %c0_46] : memref<1x256x256xf32, #tpu.memory_space<vmem>>, vector<1x128x256xf32>
      %112 = vector.shape_cast %111 : vector<1x128x256xf32> to vector<128x256xf32>
      %113 = vector.shape_cast %110 : vector<128x256xf32> to vector<1x128x256xf32>
      tpu.vector_store %arg7[%c0_44, %c128_45, %c0_46], %113 {strides = array<i32>} : memref<1x256x256xf32, #tpu.memory_space<vmem>>, vector<1x128x256xf32>,
    } else {
    }
    return
  }
  func.func @transform_0(%arg0: i32, %arg1: i32) -> (i32, i32, i32) {
    %c0_i32 = arith.constant 0 : i32
    %c0_i32_0 = arith.constant 0 : i32
    %c0_i32_1 = arith.constant 0 : i32
    return %arg0, %c0_i32, %c0_i32_0 : i32, i32, i32
  }
  func.func @transform_1(%arg0: i32, %arg1: i32) -> (i32, i32) {
    %c0_i32 = arith.constant 0 : i32
    %c0_i32_0 = arith.constant 0 : i32
    %c0_i32_1 = arith.constant 0 : i32
    return %c0_i32, %c0_i32_0 : i32, i32
  }
  func.func @transform_2(%arg0: i32, %arg1: i32) -> (i32, i32) {
    %c0_i32 = arith.constant 0 : i32
    %c0_i32_0 = arith.constant 0 : i32
    %c0_i32_1 = arith.constant 0 : i32
    return %c0_i32, %c0_i32_0 : i32, i32
  }
  func.func @transform_3(%arg0: i32, %arg1: i32) -> (i32, i32, i32) {
    %c0_i32 = arith.constant 0 : i32
    %c0_i32_0 = arith.constant 0 : i32
    %c0_i32_1 = arith.constant 0 : i32
    return %arg1, %c0_i32, %c0_i32_0 : i32, i32, i32
  }
  func.func @transform_4(%arg0: i32, %arg1: i32) -> (i32, i32, i32) {
    %c0_i32 = arith.constant 0 : i32
    %c0_i32_0 = arith.constant 0 : i32
    %c0_i32_1 = arith.constant 0 : i32
    return %arg1, %c0_i32, %c0_i32_0 : i32, i32, i32
  }
  func.func @transform_5(%arg0: i32, %arg1: i32) -> (i32, i32, i32) {
    %c0_i32 = arith.constant 0 : i32
    %c0_i32_0 = arith.constant 0 : i32
    %c0_i32_1 = arith.constant 0 : i32
    return %arg0, %c0_i32, %c0_i32_0 : i32, i32, i32
  }
}

</mosaic_0001>

<llo_original>
// kernel: tpu_custom_call.1
$region0: #{tpu_custom_call.1}
  #allocation0 [shape = 'u32[]', space=smem, size = 0x4, offset = 0x4, fixed_abs, tag = 'smem constant byte address 0x4 - core index']
  #allocation1 [shape = 'u32[144,128]{1,0:T(1,128)}', space=vmem, size = 0x12000, scoped, tag = 'internal scratch']
  %s0 = inlined_call_operand.hbm [shape: bf16[2,256,256], index: 0, kind: input, shape index: {}]
  %s1 = inlined_call_operand.hbm [shape: f32[256,128], index: 1, kind: input, shape index: {}]
  %s2 = inlined_call_operand.hbm [shape: f32[256,128], index: 2, kind: input, shape index: {}]
  %s3 = inlined_call_operand.hbm [shape: bf16[2,256,384], index: 3, kind: input, shape index: {}]
  %s4 = inlined_call_operand.hbm [shape: bf16[2,128,256], index: 4, kind: input, shape index: {}]
  %s5 = inlined_call_operand.hbm [shape: f32[2,256,256], index: 5, kind: output, shape index: {}]
  %s6 = sld [smem:[#allocation0]]
  $region89: #{tpu_custom_call.1} parent=0
    _
  %s8 = ssub.s32 1, %s6
  %s9 = scalar_select 0, %s8, %s6
  $region1: #{tpu_custom_call.1} parent=0
    #allocation2 [shape = 'u8[262144]{0}', space=vmem, size = 0x40000, scoped, tag = 'input window, operand 0']
    #allocation3 [shape = 's32[2]{0}', space=sflag, size = 0x8, scoped, tag = 'scoped memory for tpu_custom_call.1']
    #allocation4 [shape = 's32[2]{0}', space=sflag, size = 0x8, scoped, tag = 'scoped memory for tpu_custom_call.1']
    #allocation5 [shape = 'u8[131072]{0}', space=vmem, size = 0x20000, scoped, tag = 'input window, operand 1, single buffered']
    #allocation6 [shape = 's32[1]{0}', space=sflag, size = 0x4, scoped, tag = 'scoped memory for tpu_custom_call.1']
    #allocation7 [shape = 'u8[131072]{0}', space=vmem, size = 0x20000, scoped, tag = 'input window, operand 2, single buffered']
    #allocation8 [shape = 'u8[393216]{0}', space=vmem, size = 0x60000, scoped, tag = 'input window, operand 3']
    #allocation9 [shape = 's32[2]{0}', space=sflag, size = 0x8, scoped, tag = 'scoped memory for tpu_custom_call.1']
    #allocation10 [shape = 'u8[131072]{0}', space=vmem, size = 0x20000, scoped, tag = 'input window, operand 4']
    #allocation11 [shape = 'u8[524288]{0}', space=vmem, size = 0x80000, scoped, tag = 'output window, operand 0']
    %10 = vsyncpa [#allocation3], 0
    %s11 = scalar_lea.sflag [#allocation3], 1
    %12 = vsyncpa %s11, 0
    %13 = vsyncpa [#allocation6], 0
    %14 = vsyncpa [#allocation9], 0
    %s15 = scalar_lea.sflag [#allocation9], 1
    %16 = vsyncpa %s15, 0
    %17 = vsyncpa [#allocation4], 0
    %s18 = scalar_lea.sflag [#allocation4], 1
    %19 = vsyncpa %s18, 0
    loop: start=0, step=1, limit=6
    $region2: #{tpu_custom_call.1} parent=1 // loop_pre_header
      _
    $region3: #{tpu_custom_call.1} parent=1 // loop_header
      %s21 = sphi 0, %s25
      %p22 = scmp.ge.s32.totalorder %s21, 6
      %s28 = sphi 0, %s40
      %s29 = sphi 0, %s36
      %s30 = sphi 0, %s28
      %s31 = sphi 0, %s29
      %s32 = sphi 0, %s30
      %s33 = sphi 0, %s31
      %s43 = sphi 0, %s45
      %s46 = sphi 0, %s43
      %s47 = sphi 0, %s46
      %s63 = sphi 0, %s47
      %s67 = sphi 0, %s67
      %s69 = sphi 0, %s67
      %s70 = sphi 0, %s69
      %s84 = sphi 0, %s70
      %s88 = sphi 0, %s88
      %s90 = sphi 0, %s88
      %s91 = sphi 0, %s90
      %s105 = sphi 0, %s91
      %s111 = sphi 0, %s113
      %s114 = sphi 0, %s111
      %s115 = sphi 0, %s114
      %s131 = sphi 0, %s115
      %s137 = sphi 0, %s139
      %s140 = sphi 0, %s137
      %s141 = sphi 0, %s140
      %s157 = sphi 0, %s141
      %s163 = sphi 0, %s165
      %s166 = sphi 0, %s163
      %s167 = sphi 0, %s166
      %s183 = sphi 0, %s167
    $region4: #{tpu_custom_call.1} parent=1 // loop_header_branch
      %24 = sbr.rel (%p22) target = $region8
    $region5: #{tpu_custom_call.1} parent=1 // loop_body
      %s26 = ssub.s32 %s21, 1
      %s27 = ssub.s32 %s21, 2
      %s34 = sadd.s32 1, %s29
      %p35 = scmp.ge.s32.totalorder %s34, 2
      %s36 = scalar_select %p35, 0, %s34
      %s37 = sadd.s32 1, %s28
      %s38 = scalar_select %p35, %s37, %s28
      %p39 = scmp.ge.s32.totalorder %s38, 2
      %s40 = scalar_select %p39, 0, %s38
      %s41 = ssub.s32 %s28, %s40
      %p42 = scmp.eq.s32.totalorder %s41, 0
      %s44 = sadd.s32 %s43, 1
      %s45 = scalar_select %p42, %s43, %s44
      %p48 = pneg %p42
      %p49 = scmp.eq.s32.totalorder %s21, 3
      %p50 = por %p48, %p49
      %p51 = scmp.ne.s32.totalorder %s43, %s46
      %p52 = scmp.eq.s32.totalorder %s21, 0
      %p53 = por %p51, %p52
      %p54 = scmp.ne.s32.totalorder %s43, %s46
      %p55 = scmp.eq.s32.totalorder %s26, 3
      %p56 = por %p54, %p55
      %p57 = scmp.ne.s32.totalorder %s46, %s47
      %p58 = scmp.eq.s32.totalorder %s26, 0
      %p59 = por %p57, %p58
      %p60 = scmp.ne.s32.totalorder %s46, %s47
      %p61 = scmp.eq.s32.totalorder %s27, 3
      %p62 = por %p60, %p61
      %p64 = scmp.ne.s32.totalorder %s47, %s63
      %p65 = scmp.eq.s32.totalorder %s27, 0
      %p66 = por %p64, %p65
      %s68 = sadd.s32 %s67, 1
      %p71 = scmp.eq.s32.totalorder %s21, 3
      %p72 = scmp.ne.s32.totalorder %s67, %s69
      %p73 = scmp.eq.s32.totalorder %s21, 0
      %p74 = por %p72, %p73
      %p75 = scmp.ne.s32.totalorder %s67, %s69
      %p76 = scmp.eq.s32.totalorder %s26, 3
      %p77 = por %p75, %p76
      %p78 = scmp.ne.s32.totalorder %s69, %s70
      %p79 = scmp.eq.s32.totalorder %s26, 0
      %p80 = por %p78, %p79
      %p81 = scmp.ne.s32.totalorder %s69, %s70
      %p82 = scmp.eq.s32.totalorder %s27, 3
      %p83 = por %p81, %p82
      %p85 = scmp.ne.s32.totalorder %s70, %s84
      %p86 = scmp.eq.s32.totalorder %s27, 0
      %p87 = por %p85, %p86
      %s89 = sadd.s32 %s88, 1
      %p92 = scmp.eq.s32.totalorder %s21, 3
      %p93 = scmp.ne.s32.totalorder %s88, %s90
      %p94 = scmp.eq.s32.totalorder %s21, 0
      %p95 = por %p93, %p94
      %p96 = scmp.ne.s32.totalorder %s88, %s90
      %p97 = scmp.eq.s32.totalorder %s26, 3
      %p98 = por %p96, %p97
      %p99 = scmp.ne.s32.totalorder %s90, %s91
      %p100 = scmp.eq.s32.totalorder %s26, 0
      %p101 = por %p99, %p100
      %p102 = scmp.ne.s32.totalorder %s90, %s91
      %p103 = scmp.eq.s32.totalorder %s27, 3
      %p104 = por %p102, %p103
      %p106 = scmp.ne.s32.totalorder %s91, %s105
      %p107 = scmp.eq.s32.totalorder %s27, 0
      %p108 = por %p106, %p107
      %s109 = ssub.s32 %s29, %s36
      %p110 = scmp.eq.s32.totalorder %s109, 0
      %s112 = sadd.s32 %s111, 1
      %s113 = scalar_select %p110, %s111, %s112
      %p116 = pneg %p110
      %p117 = scmp.eq.s32.totalorder %s21, 3
      %p118 = por %p116, %p117
      %p119 = scmp.ne.s32.totalorder %s111, %s114
      %p120 = scmp.eq.s32.totalorder %s21, 0
      %p121 = por %p119, %p120
      %p122 = scmp.ne.s32.totalorder %s111, %s114
      %p123 = scmp.eq.s32.totalorder %s26, 3
      %p124 = por %p122, %p123
      %p125 = scmp.ne.s32.totalorder %s114, %s115
      %p126 = scmp.eq.s32.totalorder %s26, 0
      %p127 = por %p125, %p126
      %p128 = scmp.ne.s32.totalorder %s114, %s115
      %p129 = scmp.eq.s32.totalorder %s27, 3
      %p130 = por %p128, %p129
      %p132 = scmp.ne.s32.totalorder %s115, %s131
      %p133 = scmp.eq.s32.totalorder %s27, 0
      %p134 = por %p132, %p133
      %s135 = ssub.s32 %s29, %s36
      %p136 = scmp.eq.s32.totalorder %s135, 0
      %s138 = sadd.s32 %s137, 1
      %s139 = scalar_select %p136, %s137, %s138
      %p142 = pneg %p136
      %p143 = scmp.eq.s32.totalorder %s21, 3
      %p144 = por %p142, %p143
      %p145 = scmp.ne.s32.totalorder %s137, %s140
      %p146 = scmp.eq.s32.totalorder %s21, 0
      %p147 = por %p145, %p146
      %p148 = scmp.ne.s32.totalorder %s137, %s140
      %p149 = scmp.eq.s32.totalorder %s26, 3
      %p150 = por %p148, %p149
      %p151 = scmp.ne.s32.totalorder %s140, %s141
      %p152 = scmp.eq.s32.totalorder %s26, 0
      %p153 = por %p151, %p152
      %p154 = scmp.ne.s32.totalorder %s140, %s141
      %p155 = scmp.eq.s32.totalorder %s27, 3
      %p156 = por %p154, %p155
      %p158 = scmp.ne.s32.totalorder %s141, %s157
      %p159 = scmp.eq.s32.totalorder %s27, 0
      %p160 = por %p158, %p159
      %s161 = ssub.s32 %s28, %s40
      %p162 = scmp.eq.s32.totalorder %s161, 0
      %s164 = sadd.s32 %s163, 1
      %s165 = scalar_select %p162, %s163, %s164
      %p168 = pneg %p162
      %p169 = scmp.eq.s32.totalorder %s21, 3
      %p170 = por %p168, %p169
      %p171 = scmp.ne.s32.totalorder %s163, %s166
      %p172 = scmp.eq.s32.totalorder %s21, 0
      %p173 = por %p171, %p172
      %p174 = scmp.ne.s32.totalorder %s163, %s166
      %p175 = scmp.eq.s32.totalorder %s26, 3
      %p176 = por %p174, %p175
      %p177 = scmp.ne.s32.totalorder %s166, %s167
      %p178 = scmp.eq.s32.totalorder %s26, 0
      %p179 = por %p177, %p178
      %p180 = scmp.ne.s32.totalorder %s166, %s167
      %p181 = scmp.eq.s32.totalorder %s27, 3
      %p182 = por %p180, %p181
      %p184 = scmp.ne.s32.totalorder %s167, %s183
      %p185 = scmp.eq.s32.totalorder %s27, 0
      %p186 = por %p184, %p185
      %p187 = scmp.le.s32.totalorder 1, %s21
      %p188 = scmp.lt.s32.totalorder %s21, 5
      %p189 = pnand %p187, %p188
      %p190 = pneg %p189
      // Predicated region
      $region9: #{tpu_custom_call.1} parent=5 // pred_check
        _
      $region10: #{tpu_custom_call.1} parent=5 // pred_check_branch
        %192 = sbr.rel (%p189) target = $region12
      $region11: #{tpu_custom_call.1} parent=5 // pred_region
        %s193 = ssub.s32 %s21, 1
        // Predicated region
        $region13: #{tpu_custom_call.1} parent=11 // pred_check
          %p194 = pneg %p80
        $region14: #{tpu_custom_call.1} parent=11 // pred_check_branch
          %196 = sbr.rel (%p194) target = $region16
        $region15: #{tpu_custom_call.1} parent=11 // pred_region
          %s198 = ssub.s32 4096, 4096
          %199 = vsyncadd [#allocation6], %s198
          %s200 = sshll.u32 [#allocation5], 4
          %s201 = int_to_ptr.vmem [resolvable:$true] %s200
          %206 = dma.hbm_to_vmem [thread:$0]  %s1, 4096, %s201, [#allocation6], 128, 128, 8
        $region16: #{tpu_custom_call.1} parent=11 // pred_fallthru
          _
        // Predicated region
        $region17: #{tpu_custom_call.1} parent=11 // pred_check
          %p207 = pneg %p101
        $region18: #{tpu_custom_call.1} parent=11 // pred_check_branch
          %209 = sbr.rel (%p207) target = $region20
        $region19: #{tpu_custom_call.1} parent=11 // pred_region
          %s211 = ssub.s32 4096, 4096
          %212 = vsyncadd [#allocation6], %s211
          %s213 = sshll.u32 [#allocation7], 4
          %s214 = int_to_ptr.vmem [resolvable:$true] %s213
          %219 = dma.hbm_to_vmem [thread:$0]  %s2, 4096, %s214, [#allocation6], 128, 128, 8
        $region20: #{tpu_custom_call.1} parent=11 // pred_fallthru
          _
      $region12: #{tpu_custom_call.1} parent=5 // pred_fallthru
        _
      %p220 = scmp.lt.s32.totalorder %s21, 4
      // Predicated region
      $region21: #{tpu_custom_call.1} parent=5 // pred_check
        %p221 = pneg %p220
      $region22: #{tpu_custom_call.1} parent=5 // pred_check_branch
        %223 = sbr.rel (%p221) target = $region24
      $region23: #{tpu_custom_call.1} parent=5 // pred_region
        // Predicated region
        $region25: #{tpu_custom_call.1} parent=23 // pred_check
          %p224 = pneg %p53
        $region26: #{tpu_custom_call.1} parent=23 // pred_check_branch
          %226 = sbr.rel (%p224) target = $region28
        $region27: #{tpu_custom_call.1} parent=23 // pred_region
          %s227 = sand.u32 %s43, 1
          %s228 = scalar_lea.sflag [#allocation3], %s227
          %s229 = sand.u32 %s43, 1
          %s230 = smul.addr %s229, 256
          %s231 = scalar_lea.vmem [#allocation2], %s230
          %s233 = ssub.s32 4096, 4096
          %234 = vsyncadd %s228, %s233
          %s235 = smul.addr %s28, 64
          %s236 = smul.addr %s235, 64
          %s237 = scalar_lea.hbm %s0, %s236
          %s238 = sshll.u32 %s231, 4
          %s239 = int_to_ptr.vmem [resolvable:$true] %s238
          %244 = dma.hbm_to_vmem [thread:$0]  %s237, 4096, %s239, %s228, 128, 128, 8
        $region28: #{tpu_custom_call.1} parent=23 // pred_fallthru
          _
        // Predicated region
        $region29: #{tpu_custom_call.1} parent=23 // pred_check
          %p245 = pneg %p121
        $region30: #{tpu_custom_call.1} parent=23 // pred_check_branch
          %247 = sbr.rel (%p245) target = $region32
        $region31: #{tpu_custom_call.1} parent=23 // pred_region
          %s248 = sand.u32 %s21, 1
          %s249 = scalar_lea.sflag [#allocation9], %s248
          %s250 = sand.u32 %s111, 1
          %s251 = smul.addr %s250, 384
          %s252 = scalar_lea.vmem [#allocation8], %s251
          %s254 = ssub.s32 6144, 6144
          %255 = vsyncadd %s249, %s254
          %s256 = smul.addr %s29, 96
          %s257 = smul.addr %s256, 64
          %s258 = scalar_lea.hbm %s3, %s257
          %s259 = sshll.u32 %s252, 4
          %s260 = int_to_ptr.vmem [resolvable:$true] %s259
          %265 = dma.hbm_to_vmem [thread:$0]  %s258, 6144, %s260, %s249, 192, 192, 12
        $region32: #{tpu_custom_call.1} parent=23 // pred_fallthru
          _
        // Predicated region
        $region33: #{tpu_custom_call.1} parent=23 // pred_check
          %p266 = pneg %p147
        $region34: #{tpu_custom_call.1} parent=23 // pred_check_branch
          %268 = sbr.rel (%p266) target = $region36
        $region35: #{tpu_custom_call.1} parent=23 // pred_region
          %s269 = sand.u32 %s21, 1
          %s270 = scalar_lea.sflag [#allocation9], %s269
          %s271 = sand.u32 %s137, 1
          %s272 = smul.addr %s271, 128
          %s273 = scalar_lea.vmem [#allocation10], %s272
          %s275 = ssub.s32 2048, 2048
          %276 = vsyncadd %s270, %s275
          %s277 = smul.addr %s29, 32
          %s278 = smul.addr %s277, 64
          %s279 = scalar_lea.hbm %s4, %s278
          %s280 = sshll.u32 %s273, 4
          %s281 = int_to_ptr.vmem [resolvable:$true] %s280
          %286 = dma.hbm_to_vmem [thread:$0]  %s279, 2048, %s281, %s270, 128, 128, 8
        $region36: #{tpu_custom_call.1} parent=23 // pred_fallthru
          _
      $region24: #{tpu_custom_call.1} parent=5 // pred_fallthru
        _
      %p287 = scmp.le.s32.totalorder 1, %s21
      %p288 = scmp.lt.s32.totalorder %s21, 5
      %p289 = pnand %p287, %p288
      %p290 = pneg %p289
      // Predicated region
      $region37: #{tpu_custom_call.1} parent=5 // pred_check
        _
      $region38: #{tpu_custom_call.1} parent=5 // pred_check_branch
        %292 = sbr.rel (%p289) target = $region40
      $region39: #{tpu_custom_call.1} parent=5 // pred_region
        %s293 = ssub.s32 %s21, 1
        %s294 = sand.u32 %s46, 1
        %s295 = scalar_lea.sflag [#allocation3], %s294
        %s296 = sand.u32 %s46, 1
        %s297 = smul.addr %s296, 256
        %s298 = scalar_lea.vmem [#allocation2], %s297
        // Predicated region
        $region41: #{tpu_custom_call.1} parent=39 // pred_check
          %p299 = pneg %p59
        $region42: #{tpu_custom_call.1} parent=39 // pred_check_branch
          %301 = sbr.rel (%p299) target = $region44
        $region43: #{tpu_custom_call.1} parent=39 // pred_region
          %302 = dma.done %s295, 4096
        $region44: #{tpu_custom_call.1} parent=39 // pred_fallthru
          _
        // Predicated region
        $region45: #{tpu_custom_call.1} parent=39 // pred_check
          %p303 = pneg %p80
        $region46: #{tpu_custom_call.1} parent=39 // pred_check_branch
          %305 = sbr.rel (%p303) target = $region48
        $region47: #{tpu_custom_call.1} parent=39 // pred_region
          %306 = dma.done [#allocation6], 4096
        $region48: #{tpu_custom_call.1} parent=39 // pred_fallthru
          _
        // Predicated region
        $region49: #{tpu_custom_call.1} parent=39 // pred_check
          %p307 = pneg %p101
        $region50: #{tpu_custom_call.1} parent=39 // pred_check_branch
          %309 = sbr.rel (%p307) target = $region52
        $region51: #{tpu_custom_call.1} parent=39 // pred_region
          %310 = dma.done [#allocation6], 4096
        $region52: #{tpu_custom_call.1} parent=39 // pred_fallthru
          _
        %s311 = sand.u32 %s26, 1
        %s312 = scalar_lea.sflag [#allocation9], %s311
        %s313 = sand.u32 %s114, 1
        %s314 = smul.addr %s313, 384
        %s315 = scalar_lea.vmem [#allocation8], %s314
        // Predicated region
        $region53: #{tpu_custom_call.1} parent=39 // pred_check
          %p316 = pneg %p127
        $region54: #{tpu_custom_call.1} parent=39 // pred_check_branch
          %318 = sbr.rel (%p316) target = $region56
        $region55: #{tpu_custom_call.1} parent=39 // pred_region
          %319 = dma.done %s312, 6144
        $region56: #{tpu_custom_call.1} parent=39 // pred_fallthru
          _
        %s320 = sand.u32 %s26, 1
        %s321 = scalar_lea.sflag [#allocation9], %s320
        %s322 = sand.u32 %s140, 1
        %s323 = smul.addr %s322, 128
        %s324 = scalar_lea.vmem [#allocation10], %s323
        // Predicated region
        $region57: #{tpu_custom_call.1} parent=39 // pred_check
          %p325 = pneg %p153
        $region58: #{tpu_custom_call.1} parent=39 // pred_check_branch
          %327 = sbr.rel (%p325) target = $region60
        $region59: #{tpu_custom_call.1} parent=39 // pred_region
          %328 = dma.done %s321, 2048
        $region60: #{tpu_custom_call.1} parent=39 // pred_fallthru
          _
        %s329 = sand.u32 %s46, 1
        %s330 = scalar_lea.sflag [#allocation3], %s329
        %s331 = sand.u32 %s46, 1
        %s332 = smul.addr %s331, 256
        %s333 = scalar_lea.vmem [#allocation2], %s332
        %p334 = pneg %p59
        %p335 = pneg %p56
        %p336 = pneg %p80
        %p337 = pneg %p77
        %p338 = pneg %p101
        %p339 = pneg %p98
        %s340 = sand.u32 %s26, 1
        %s341 = scalar_lea.sflag [#allocation9], %s340
        %s342 = sand.u32 %s114, 1
        %s343 = smul.addr %s342, 384
        %s344 = scalar_lea.vmem [#allocation8], %s343
        %p345 = pneg %p127
        %p346 = pneg %p124
        %s347 = sand.u32 %s26, 1
        %s348 = scalar_lea.sflag [#allocation9], %s347
        %s349 = sand.u32 %s140, 1
        %s350 = smul.addr %s349, 128
        %s351 = scalar_lea.vmem [#allocation10], %s350
        %p352 = pneg %p153
        %p353 = pneg %p150
        %p354 = pneg %p179
        %p355 = pneg %p176
        %s356 = sand.u32 %s166, 1
        %s357 = scalar_lea.sflag [#allocation4], %s356
        %s358 = sand.u32 %s166, 1
        %s359 = smul.addr %s358, 512
        %s360 = scalar_lea.vmem [#allocation11], %s359
        %v362 = vld [vmem:[%s298] sm:$0xff]
        %v363 = vld [vmem:[%s298 + $0x8] sm:$0xff]
        %v364 = vld [vmem:[%s298 + $0x10] sm:$0xff]
        %v365 = vld [vmem:[%s298 + $0x18] sm:$0xff]
        %v366 = vld [vmem:[%s298 + $0x20] sm:$0xff]
        %v367 = vld [vmem:[%s298 + $0x28] sm:$0xff]
        %v368 = vld [vmem:[%s298 + $0x30] sm:$0xff]
        %v369 = vld [vmem:[%s298 + $0x38] sm:$0xff]
        %v370 = vld [vmem:[%s298 + $0x40] sm:$0xff]
        %v371 = vld [vmem:[%s298 + $0x48] sm:$0xff]
        %v372 = vld [vmem:[%s298 + $0x50] sm:$0xff]
        %v373 = vld [vmem:[%s298 + $0x58] sm:$0xff]
        %v374 = vld [vmem:[%s298 + $0x60] sm:$0xff]
        %v375 = vld [vmem:[%s298 + $0x68] sm:$0xff]
        %v376 = vld [vmem:[%s298 + $0x70] sm:$0xff]
        %v377 = vld [vmem:[%s298 + $0x78] sm:$0xff]
        %v378 = vld [vmem:[%s298 + $0x80] sm:$0xff]
        %v379 = vld [vmem:[%s298 + $0x88] sm:$0xff]
        %v380 = vld [vmem:[%s298 + $0x90] sm:$0xff]
        %v381 = vld [vmem:[%s298 + $0x98] sm:$0xff]
        %v382 = vld [vmem:[%s298 + $0xa0] sm:$0xff]
        %v383 = vld [vmem:[%s298 + $0xa8] sm:$0xff]
        %v384 = vld [vmem:[%s298 + $0xb0] sm:$0xff]
        %v385 = vld [vmem:[%s298 + $0xb8] sm:$0xff]
        %v386 = vld [vmem:[%s298 + $0xc0] sm:$0xff]
        %v387 = vld [vmem:[%s298 + $0xc8] sm:$0xff]
        %v388 = vld [vmem:[%s298 + $0xd0] sm:$0xff]
        %v389 = vld [vmem:[%s298 + $0xd8] sm:$0xff]
        %v390 = vld [vmem:[%s298 + $0xe0] sm:$0xff]
        %v391 = vld [vmem:[%s298 + $0xe8] sm:$0xff]
        %v392 = vld [vmem:[%s298 + $0xf0] sm:$0xff]
        %v393 = vld [vmem:[%s298 + $0xf8] sm:$0xff]
        %v394 = vld [vmem:[%s315] sm:$0xff]
        %v395 = vld [vmem:[%s315 + $0x8] sm:$0xf]
        %v396 = vld [vmem:[%s315 + $0xc] sm:$0xff]
        %v397 = vld [vmem:[%s315 + $0x14] sm:$0xf]
        %v398 = vld [vmem:[%s315 + $0x18] sm:$0xff]
        %v399 = vld [vmem:[%s315 + $0x20] sm:$0xf]
        %v400 = vld [vmem:[%s315 + $0x24] sm:$0xff]
        %v401 = vld [vmem:[%s315 + $0x2c] sm:$0xf]
        %v402 = vld [vmem:[%s315 + $0x30] sm:$0xff]
        %v403 = vld [vmem:[%s315 + $0x38] sm:$0xf]
        %v404 = vld [vmem:[%s315 + $0x3c] sm:$0xff]
        %v405 = vld [vmem:[%s315 + $0x44] sm:$0xf]
        %v406 = vld [vmem:[%s315 + $0x48] sm:$0xff]
        %v407 = vld [vmem:[%s315 + $0x50] sm:$0xf]
        %v408 = vld [vmem:[%s315 + $0x54] sm:$0xff]
        %v409 = vld [vmem:[%s315 + $0x5c] sm:$0xf]
        %v410 = vld [vmem:[%s315 + $0x60] sm:$0xff]
        %v411 = vld [vmem:[%s315 + $0x68] sm:$0xf]
        %v412 = vld [vmem:[%s315 + $0x6c] sm:$0xff]
        %v413 = vld [vmem:[%s315 + $0x74] sm:$0xf]
        %v414 = vld [vmem:[%s315 + $0x78] sm:$0xff]
        %v415 = vld [vmem:[%s315 + $0x80] sm:$0xf]
        %v416 = vld [vmem:[%s315 + $0x84] sm:$0xff]
        %v417 = vld [vmem:[%s315 + $0x8c] sm:$0xf]
        %v418 = vld [vmem:[%s315 + $0x90] sm:$0xff]
        %v419 = vld [vmem:[%s315 + $0x98] sm:$0xf]
        %v420 = vld [vmem:[%s315 + $0x9c] sm:$0xff]
        %v421 = vld [vmem:[%s315 + $0xa4] sm:$0xf]
        %v422 = vld [vmem:[%s315 + $0xa8] sm:$0xff]
        %v423 = vld [vmem:[%s315 + $0xb0] sm:$0xf]
        %v424 = vld [vmem:[%s315 + $0xb4] sm:$0xff]
        %v425 = vld [vmem:[%s315 + $0xbc] sm:$0xf]
        %v426 = vld [vmem:[%s315 + $0xc0] sm:$0xff]
        %v427 = vld [vmem:[%s315 + $0xc8] sm:$0xf]
        %v428 = vld [vmem:[%s315 + $0xcc] sm:$0xff]
        %v429 = vld [vmem:[%s315 + $0xd4] sm:$0xf]
        %v430 = vld [vmem:[%s315 + $0xd8] sm:$0xff]
        %v431 = vld [vmem:[%s315 + $0xe0] sm:$0xf]
        %v432 = vld [vmem:[%s315 + $0xe4] sm:$0xff]
        %v433 = vld [vmem:[%s315 + $0xec] sm:$0xf]
        %v434 = vld [vmem:[%s315 + $0xf0] sm:$0xff]
        %v435 = vld [vmem:[%s315 + $0xf8] sm:$0xf]
        %v436 = vld [vmem:[%s315 + $0xfc] sm:$0xff]
        %v437 = vld [vmem:[%s315 + $0x104] sm:$0xf]
        %v438 = vld [vmem:[%s315 + $0x108] sm:$0xff]
        %v439 = vld [vmem:[%s315 + $0x110] sm:$0xf]
        %v440 = vld [vmem:[%s315 + $0x114] sm:$0xff]
        %v441 = vld [vmem:[%s315 + $0x11c] sm:$0xf]
        %v442 = vld [vmem:[%s315 + $0x120] sm:$0xff]
        %v443 = vld [vmem:[%s315 + $0x128] sm:$0xf]
        %v444 = vld [vmem:[%s315 + $0x12c] sm:$0xff]
        %v445 = vld [vmem:[%s315 + $0x134] sm:$0xf]
        %v446 = vld [vmem:[%s315 + $0x138] sm:$0xff]
        %v447 = vld [vmem:[%s315 + $0x140] sm:$0xf]
        %v448 = vld [vmem:[%s315 + $0x144] sm:$0xff]
        %v449 = vld [vmem:[%s315 + $0x14c] sm:$0xf]
        %v450 = vld [vmem:[%s315 + $0x150] sm:$0xff]
        %v451 = vld [vmem:[%s315 + $0x158] sm:$0xf]
        %v452 = vld [vmem:[%s315 + $0x15c] sm:$0xff]
        %v453 = vld [vmem:[%s315 + $0x164] sm:$0xf]
        %v454 = vld [vmem:[%s315 + $0x168] sm:$0xff]
        %v455 = vld [vmem:[%s315 + $0x170] sm:$0xf]
        %v456 = vld [vmem:[%s315 + $0x174] sm:$0xff]
        %v457 = vld [vmem:[%s315 + $0x17c] sm:$0xf]
        %v458 = vld [vmem:[%s324] sm:$0xff]
        %v459 = vld [vmem:[%s324 + $0x8] sm:$0xff]
        %v460 = vld [vmem:[%s324 + $0x10] sm:$0xff]
        %v461 = vld [vmem:[%s324 + $0x18] sm:$0xff]
        %v462 = vld [vmem:[%s324 + $0x20] sm:$0xff]
        %v463 = vld [vmem:[%s324 + $0x28] sm:$0xff]
        %v464 = vld [vmem:[%s324 + $0x30] sm:$0xff]
        %v465 = vld [vmem:[%s324 + $0x38] sm:$0xff]
        %v466 = vld [vmem:[%s324 + $0x40] sm:$0xff]
        %v467 = vld [vmem:[%s324 + $0x48] sm:$0xff]
        %v468 = vld [vmem:[%s324 + $0x50] sm:$0xff]
        %v469 = vld [vmem:[%s324 + $0x58] sm:$0xff]
        %v470 = vld [vmem:[%s324 + $0x60] sm:$0xff]
        %v471 = vld [vmem:[%s324 + $0x68] sm:$0xff]
        %v472 = vld [vmem:[%s324 + $0x70] sm:$0xff]
        %v473 = vld [vmem:[%s324 + $0x78] sm:$0xff]
        %v474 = vld [vmem:[#allocation5] sm:$0xff]
        %v475 = vld [vmem:[#allocation5 + $0x8] sm:$0xff]
        %v476 = vld [vmem:[#allocation5 + $0x10] sm:$0xff]
        %v477 = vld [vmem:[#allocation5 + $0x18] sm:$0xff]
        %v478 = vld [vmem:[#allocation5 + $0x20] sm:$0xff]
        %v479 = vld [vmem:[#allocation5 + $0x28] sm:$0xff]
        %v480 = vld [vmem:[#allocation5 + $0x30] sm:$0xff]
        %v481 = vld [vmem:[#allocation5 + $0x38] sm:$0xff]
        %v482 = vld [vmem:[#allocation5 + $0x40] sm:$0xff]
        %v483 = vld [vmem:[#allocation5 + $0x48] sm:$0xff]
        %v484 = vld [vmem:[#allocation5 + $0x50] sm:$0xff]
        %v485 = vld [vmem:[#allocation5 + $0x58] sm:$0xff]
        %v486 = vld [vmem:[#allocation5 + $0x60] sm:$0xff]
        %v487 = vld [vmem:[#allocation5 + $0x68] sm:$0xff]
        %v488 = vld [vmem:[#allocation5 + $0x70] sm:$0xff]
        %v489 = vld [vmem:[#allocation5 + $0x78] sm:$0xff]
        %v490 = vld [vmem:[#allocation5 + $0x80] sm:$0xff]
        %v491 = vld [vmem:[#allocation5 + $0x88] sm:$0xff]
        %v492 = vld [vmem:[#allocation5 + $0x90] sm:$0xff]
        %v493 = vld [vmem:[#allocation5 + $0x98] sm:$0xff]
        %v494 = vld [vmem:[#allocation5 + $0xa0] sm:$0xff]
        %v495 = vld [vmem:[#allocation5 + $0xa8] sm:$0xff]
        %v496 = vld [vmem:[#allocation5 + $0xb0] sm:$0xff]
        %v497 = vld [vmem:[#allocation5 + $0xb8] sm:$0xff]
        %v498 = vld [vmem:[#allocation5 + $0xc0] sm:$0xff]
        %v499 = vld [vmem:[#allocation5 + $0xc8] sm:$0xff]
        %v500 = vld [vmem:[#allocation5 + $0xd0] sm:$0xff]
        %v501 = vld [vmem:[#allocation5 + $0xd8] sm:$0xff]
        %v502 = vld [vmem:[#allocation5 + $0xe0] sm:$0xff]
        %v503 = vld [vmem:[#allocation5 + $0xe8] sm:$0xff]
        %v504 = vld [vmem:[#allocation5 + $0xf0] sm:$0xff]
        %v505 = vld [vmem:[#allocation5 + $0xf8] sm:$0xff]
        %v506 = vld [vmem:[#allocation7] sm:$0xff]
        %v507 = vld [vmem:[#allocation7 + $0x8] sm:$0xff]
        %v508 = vld [vmem:[#allocation7 + $0x10] sm:$0xff]
        %v509 = vld [vmem:[#allocation7 + $0x18] sm:$0xff]
        %v510 = vld [vmem:[#allocation7 + $0x20] sm:$0xff]
        %v511 = vld [vmem:[#allocation7 + $0x28] sm:$0xff]
        %v512 = vld [vmem:[#allocation7 + $0x30] sm:$0xff]
        %v513 = vld [vmem:[#allocation7 + $0x38] sm:$0xff]
        %v514 = vld [vmem:[#allocation7 + $0x40] sm:$0xff]
        %v515 = vld [vmem:[#allocation7 + $0x48] sm:$0xff]
        %v516 = vld [vmem:[#allocation7 + $0x50] sm:$0xff]
        %v517 = vld [vmem:[#allocation7 + $0x58] sm:$0xff]
        %v518 = vld [vmem:[#allocation7 + $0x60] sm:$0xff]
        %v519 = vld [vmem:[#allocation7 + $0x68] sm:$0xff]
        %v520 = vld [vmem:[#allocation7 + $0x70] sm:$0xff]
        %v521 = vld [vmem:[#allocation7 + $0x78] sm:$0xff]
        %v522 = vld [vmem:[#allocation7 + $0x80] sm:$0xff]
        %v523 = vld [vmem:[#allocation7 + $0x88] sm:$0xff]
        %v524 = vld [vmem:[#allocation7 + $0x90] sm:$0xff]
        %v525 = vld [vmem:[#allocation7 + $0x98] sm:$0xff]
        %v526 = vld [vmem:[#allocation7 + $0xa0] sm:$0xff]
        %v527 = vld [vmem:[#allocation7 + $0xa8] sm:$0xff]
        %v528 = vld [vmem:[#allocation7 + $0xb0] sm:$0xff]
        %v529 = vld [vmem:[#allocation7 + $0xb8] sm:$0xff]
        %v530 = vld [vmem:[#allocation7 + $0xc0] sm:$0xff]
        %v531 = vld [vmem:[#allocation7 + $0xc8] sm:$0xff]
        %v532 = vld [vmem:[#allocation7 + $0xd0] sm:$0xff]
        %v533 = vld [vmem:[#allocation7 + $0xd8] sm:$0xff]
        %v534 = vld [vmem:[#allocation7 + $0xe0] sm:$0xff]
        %v535 = vld [vmem:[#allocation7 + $0xe8] sm:$0xff]
        %v536 = vld [vmem:[#allocation7 + $0xf0] sm:$0xff]
        %v537 = vld [vmem:[#allocation7 + $0xf8] sm:$0xff]
        %v570 = vunpack.c.l.b16 %v362
        %v571 = vunpack.c.h.b16 %v362
        %v572 = vunpack.c.l.b16 %v363
        %v573 = vunpack.c.h.b16 %v363
        %v574 = vunpack.c.l.b16 %v364
        %v575 = vunpack.c.h.b16 %v364
        %v576 = vunpack.c.l.b16 %v365
        %v577 = vunpack.c.h.b16 %v365
        %v578 = vunpack.c.l.b16 %v366
        %v579 = vunpack.c.h.b16 %v366
        %v580 = vunpack.c.l.b16 %v367
        %v581 = vunpack.c.h.b16 %v367
        %v582 = vunpack.c.l.b16 %v368
        %v583 = vunpack.c.h.b16 %v368
        %v584 = vunpack.c.l.b16 %v369
        %v585 = vunpack.c.h.b16 %v369
        %v586 = vunpack.c.l.b16 %v370
        %v587 = vunpack.c.h.b16 %v370
        %v588 = vunpack.c.l.b16 %v371
        %v589 = vunpack.c.h.b16 %v371
        %v590 = vunpack.c.l.b16 %v372
        %v591 = vunpack.c.h.b16 %v372
        %v592 = vunpack.c.l.b16 %v373
        %v593 = vunpack.c.h.b16 %v373
        %v594 = vunpack.c.l.b16 %v374
        %v595 = vunpack.c.h.b16 %v374
        %v596 = vunpack.c.l.b16 %v375
        %v597 = vunpack.c.h.b16 %v375
        %v598 = vunpack.c.l.b16 %v376
        %v599 = vunpack.c.h.b16 %v376
        %v600 = vunpack.c.l.b16 %v377
        %v601 = vunpack.c.h.b16 %v377
        %v602 = vunpack.c.l.b16 %v378
        %v603 = vunpack.c.h.b16 %v378
        %v604 = vunpack.c.l.b16 %v379
        %v605 = vunpack.c.h.b16 %v379
        %v606 = vunpack.c.l.b16 %v380
        %v607 = vunpack.c.h.b16 %v380
        %v608 = vunpack.c.l.b16 %v381
        %v609 = vunpack.c.h.b16 %v381
        %v610 = vunpack.c.l.b16 %v382
        %v611 = vunpack.c.h.b16 %v382
        %v612 = vunpack.c.l.b16 %v383
        %v613 = vunpack.c.h.b16 %v383
        %v614 = vunpack.c.l.b16 %v384
        %v615 = vunpack.c.h.b16 %v384
        %v616 = vunpack.c.l.b16 %v385
        %v617 = vunpack.c.h.b16 %v385
        %v618 = vunpack.c.l.b16 %v386
        %v619 = vunpack.c.h.b16 %v386
        %v620 = vunpack.c.l.b16 %v387
        %v621 = vunpack.c.h.b16 %v387
        %v622 = vunpack.c.l.b16 %v388
        %v623 = vunpack.c.h.b16 %v388
        %v624 = vunpack.c.l.b16 %v389
        %v625 = vunpack.c.h.b16 %v389
        %v626 = vunpack.c.l.b16 %v390
        %v627 = vunpack.c.h.b16 %v390
        %v628 = vunpack.c.l.b16 %v391
        %v629 = vunpack.c.h.b16 %v391
        %v630 = vunpack.c.l.b16 %v392
        %v631 = vunpack.c.h.b16 %v392
        %v632 = vunpack.c.l.b16 %v393
        %v633 = vunpack.c.h.b16 %v393
        %v634 = vpack.c.b16 %v572, %v570
        %v635 = vpack.c.b16 %v573, %v571
        %v636 = vpack.c.b16 %v576, %v574
        %v637 = vpack.c.b16 %v577, %v575
        %v638 = vpack.c.b16 %v580, %v578
        %v639 = vpack.c.b16 %v581, %v579
        %v640 = vpack.c.b16 %v584, %v582
        %v641 = vpack.c.b16 %v585, %v583
        %v642 = vpack.c.b16 %v588, %v586
        %v643 = vpack.c.b16 %v589, %v587
        %v644 = vpack.c.b16 %v592, %v590
        %v645 = vpack.c.b16 %v593, %v591
        %v646 = vpack.c.b16 %v596, %v594
        %v647 = vpack.c.b16 %v597, %v595
        %v648 = vpack.c.b16 %v600, %v598
        %v649 = vpack.c.b16 %v601, %v599
        %v650 = vpack.c.b16 %v604, %v602
        %v651 = vpack.c.b16 %v605, %v603
        %v652 = vpack.c.b16 %v608, %v606
        %v653 = vpack.c.b16 %v609, %v607
        %v654 = vpack.c.b16 %v612, %v610
        %v655 = vpack.c.b16 %v613, %v611
        %v656 = vpack.c.b16 %v616, %v614
        %v657 = vpack.c.b16 %v617, %v615
        %v658 = vpack.c.b16 %v620, %v618
        %v659 = vpack.c.b16 %v621, %v619
        %v660 = vpack.c.b16 %v624, %v622
        %v661 = vpack.c.b16 %v625, %v623
        %v662 = vpack.c.b16 %v628, %v626
        %v663 = vpack.c.b16 %v629, %v627
        %v664 = vpack.c.b16 %v632, %v630
        %v665 = vpack.c.b16 %v633, %v631
        %v762 = vunpack.c.l.b16 %v394
        %v763 = vunpack.c.h.b16 %v394
        %v764 = vunpack.c.l.b16 %v395
        %v765 = vunpack.c.l.b16 %v396
        %v766 = vunpack.c.h.b16 %v396
        %v767 = vunpack.c.l.b16 %v397
        %v768 = vunpack.c.l.b16 %v398
        %v769 = vunpack.c.h.b16 %v398
        %v770 = vunpack.c.l.b16 %v399
        %v771 = vunpack.c.l.b16 %v400
        %v772 = vunpack.c.h.b16 %v400
        %v773 = vunpack.c.l.b16 %v401
        %v774 = vunpack.c.l.b16 %v402
        %v775 = vunpack.c.h.b16 %v402
        %v776 = vunpack.c.l.b16 %v403
        %v777 = vunpack.c.l.b16 %v404
        %v778 = vunpack.c.h.b16 %v404
        %v779 = vunpack.c.l.b16 %v405
        %v780 = vunpack.c.l.b16 %v406
        %v781 = vunpack.c.h.b16 %v406
        %v782 = vunpack.c.l.b16 %v407
        %v783 = vunpack.c.l.b16 %v408
        %v784 = vunpack.c.h.b16 %v408
        %v785 = vunpack.c.l.b16 %v409
        %v786 = vunpack.c.l.b16 %v410
        %v787 = vunpack.c.h.b16 %v410
        %v788 = vunpack.c.l.b16 %v411
        %v789 = vunpack.c.l.b16 %v412
        %v790 = vunpack.c.h.b16 %v412
        %v791 = vunpack.c.l.b16 %v413
        %v792 = vunpack.c.l.b16 %v414
        %v793 = vunpack.c.h.b16 %v414
        %v794 = vunpack.c.l.b16 %v415
        %v795 = vunpack.c.l.b16 %v416
        %v796 = vunpack.c.h.b16 %v416
        %v797 = vunpack.c.l.b16 %v417
        %v798 = vunpack.c.l.b16 %v418
        %v799 = vunpack.c.h.b16 %v418
        %v800 = vunpack.c.l.b16 %v419
        %v801 = vunpack.c.l.b16 %v420
        %v802 = vunpack.c.h.b16 %v420
        %v803 = vunpack.c.l.b16 %v421
        %v804 = vunpack.c.l.b16 %v422
        %v805 = vunpack.c.h.b16 %v422
        %v806 = vunpack.c.l.b16 %v423
        %v807 = vunpack.c.l.b16 %v424
        %v808 = vunpack.c.h.b16 %v424
        %v809 = vunpack.c.l.b16 %v425
        %v810 = vunpack.c.l.b16 %v426
        %v811 = vunpack.c.h.b16 %v426
        %v812 = vunpack.c.l.b16 %v427
        %v813 = vunpack.c.l.b16 %v428
        %v814 = vunpack.c.h.b16 %v428
        %v815 = vunpack.c.l.b16 %v429
        %v816 = vunpack.c.l.b16 %v430
        %v817 = vunpack.c.h.b16 %v430
        %v818 = vunpack.c.l.b16 %v431
        %v819 = vunpack.c.l.b16 %v432
        %v820 = vunpack.c.h.b16 %v432
        %v821 = vunpack.c.l.b16 %v433
        %v822 = vunpack.c.l.b16 %v434
        %v823 = vunpack.c.h.b16 %v434
        %v824 = vunpack.c.l.b16 %v435
        %v825 = vunpack.c.l.b16 %v436
        %v826 = vunpack.c.h.b16 %v436
        %v827 = vunpack.c.l.b16 %v437
        %v828 = vunpack.c.l.b16 %v438
        %v829 = vunpack.c.h.b16 %v438
        %v830 = vunpack.c.l.b16 %v439
        %v831 = vunpack.c.l.b16 %v440
        %v832 = vunpack.c.h.b16 %v440
        %v833 = vunpack.c.l.b16 %v441
        %v834 = vunpack.c.l.b16 %v442
        %v835 = vunpack.c.h.b16 %v442
        %v836 = vunpack.c.l.b16 %v443
        %v837 = vunpack.c.l.b16 %v444
        %v838 = vunpack.c.h.b16 %v444
        %v839 = vunpack.c.l.b16 %v445
        %v840 = vunpack.c.l.b16 %v446
        %v841 = vunpack.c.h.b16 %v446
        %v842 = vunpack.c.l.b16 %v447
        %v843 = vunpack.c.l.b16 %v448
        %v844 = vunpack.c.h.b16 %v448
        %v845 = vunpack.c.l.b16 %v449
        %v846 = vunpack.c.l.b16 %v450
        %v847 = vunpack.c.h.b16 %v450
        %v848 = vunpack.c.l.b16 %v451
        %v849 = vunpack.c.l.b16 %v452
        %v850 = vunpack.c.h.b16 %v452
        %v851 = vunpack.c.l.b16 %v453
        %v852 = vunpack.c.l.b16 %v454
        %v853 = vunpack.c.h.b16 %v454
        %v854 = vunpack.c.l.b16 %v455
        %v855 = vunpack.c.l.b16 %v456
        %v856 = vunpack.c.h.b16 %v456
        %v857 = vunpack.c.l.b16 %v457
        %v858 = vpack.c.b16 %v765, %v762
        %v859 = vpack.c.b16 %v766, %v763
        %v860 = vpack.c.b16 %v767, %v764
        %v861 = vpack.c.b16 %v771, %v768
        %v862 = vpack.c.b16 %v772, %v769
        %v863 = vpack.c.b16 %v773, %v770
        %v864 = vpack.c.b16 %v777, %v774
        %v865 = vpack.c.b16 %v778, %v775
        %v866 = vpack.c.b16 %v779, %v776
        %v867 = vpack.c.b16 %v783, %v780
        %v868 = vpack.c.b16 %v784, %v781
        %v869 = vpack.c.b16 %v785, %v782
        %v870 = vpack.c.b16 %v789, %v786
        %v871 = vpack.c.b16 %v790, %v787
        %v872 = vpack.c.b16 %v791, %v788
        %v873 = vpack.c.b16 %v795, %v792
        %v874 = vpack.c.b16 %v796, %v793
        %v875 = vpack.c.b16 %v797, %v794
        %v876 = vpack.c.b16 %v801, %v798
        %v877 = vpack.c.b16 %v802, %v799
        %v878 = vpack.c.b16 %v803, %v800
        %v879 = vpack.c.b16 %v807, %v804
        %v880 = vpack.c.b16 %v808, %v805
        %v881 = vpack.c.b16 %v809, %v806
        %v882 = vpack.c.b16 %v813, %v810
        %v883 = vpack.c.b16 %v814, %v811
        %v884 = vpack.c.b16 %v815, %v812
        %v885 = vpack.c.b16 %v819, %v816
        %v886 = vpack.c.b16 %v820, %v817
        %v887 = vpack.c.b16 %v821, %v818
        %v888 = vpack.c.b16 %v825, %v822
        %v889 = vpack.c.b16 %v826, %v823
        %v890 = vpack.c.b16 %v827, %v824
        %v891 = vpack.c.b16 %v831, %v828
        %v892 = vpack.c.b16 %v832, %v829
        %v893 = vpack.c.b16 %v833, %v830
        %v894 = vpack.c.b16 %v837, %v834
        %v895 = vpack.c.b16 %v838, %v835
        %v896 = vpack.c.b16 %v839, %v836
        %v897 = vpack.c.b16 %v843, %v840
        %v898 = vpack.c.b16 %v844, %v841
        %v899 = vpack.c.b16 %v845, %v842
        %v900 = vpack.c.b16 %v849, %v846
        %v901 = vpack.c.b16 %v850, %v847
        %v902 = vpack.c.b16 %v851, %v848
        %v903 = vpack.c.b16 %v855, %v852
        %v904 = vpack.c.b16 %v856, %v853
        %v905 = vpack.c.b16 %v857, %v854
        %954 = vmatprep.subr.bf16.mxu0 %v859
        %955 = vmatpush1.bf16.msra.mxu0 %v858
        %956 = vmatprep.subr.bf16.mxu0 %v862
        %957 = vmatpush1.bf16.msra.mxu0 %v861
        %958 = vmatprep.subr.bf16.mxu0 %v865
        %959 = vmatpush1.bf16.msra.mxu0 %v864
        %960 = vmatprep.subr.bf16.mxu0 %v868
        %961 = vmatpush1.bf16.msra.mxu0 %v867
        %962 = vmatprep.subr.bf16.mxu0 %v871
        %963 = vmatpush1.bf16.msra.mxu0 %v870
        %964 = vmatprep.subr.bf16.mxu0 %v874
        %965 = vmatpush1.bf16.msra.mxu0 %v873
        %966 = vmatprep.subr.bf16.mxu0 %v877
        %967 = vmatpush1.bf16.msra.mxu0 %v876
        %968 = vmatprep.subr.bf16.mxu0 %v880
        %969 = vmatpush1.bf16.msra.mxu0 %v879
        %970 = vmatprep.subr.bf16.mxu0 %v883
        %971 = vmatpush1.bf16.msra.mxu0 %v882
        %972 = vmatprep.subr.bf16.mxu0 %v886
        %973 = vmatpush1.bf16.msra.mxu0 %v885
        %974 = vmatprep.subr.bf16.mxu0 %v889
        %975 = vmatpush1.bf16.msra.mxu0 %v888
        %976 = vmatprep.subr.bf16.mxu0 %v892
        %977 = vmatpush1.bf16.msra.mxu0 %v891
        %978 = vmatprep.subr.bf16.mxu0 %v895
        %979 = vmatpush1.bf16.msra.mxu0 %v894
        %980 = vmatprep.subr.bf16.mxu0 %v898
        %981 = vmatpush1.bf16.msra.mxu0 %v897
        %982 = vmatprep.subr.bf16.mxu0 %v901
        %983 = vmatpush1.bf16.msra.mxu0 %v900
        %984 = vmatprep.subr.bf16.mxu0 %v904
        %985 = vmatpush1.bf16.msra.mxu0 %v903
        %986 = vmatprep.mubr.bf16.mxu0 %v635
        %987 = vmatmul.mubr.bf16.gmra.mrb[0].mxu0 %v634
        %v988 = vpop.f32.mrb[0].mxu0
        %v989 = vadd.f32 0.0, %v988
        %v990 = vpop.f32.mrb[0].mxu0
        %v991 = vadd.f32 0.0, %v990
        %v992 = vpop.f32.mrb[0].mxu0
        %v993 = vadd.f32 0.0, %v992
        %v994 = vpop.f32.mrb[0].mxu0
        %v995 = vadd.f32 0.0, %v994
        %996 = vmatprep.mubr.bf16.mxu0 %v637
        %997 = vmatmul.mubr.bf16.gmra.mrb[0].mxu0 %v636
        %v998 = vpop.f32.mrb[0].mxu0
        %v999 = vadd.f32 0.0, %v998
        %v1000 = vpop.f32.mrb[0].mxu0
        %v1001 = vadd.f32 0.0, %v1000
        %v1002 = vpop.f32.mrb[0].mxu0
        %v1003 = vadd.f32 0.0, %v1002
        %v1004 = vpop.f32.mrb[0].mxu0
        %v1005 = vadd.f32 0.0, %v1004
        %1006 = vmatprep.mubr.bf16.mxu0 %v639
        %1007 = vmatmul.mubr.bf16.gmra.mrb[0].mxu0 %v638
        %v1008 = vpop.f32.mrb[0].mxu0
        %v1009 = vadd.f32 0.0, %v1008
        %v1010 = vpop.f32.mrb[0].mxu0
        %v1011 = vadd.f32 0.0, %v1010
        %v1012 = vpop.f32.mrb[0].mxu0
        %v1013 = vadd.f32 0.0, %v1012
        %v1014 = vpop.f32.mrb[0].mxu0
        %v1015 = vadd.f32 0.0, %v1014
        %1016 = vmatprep.mubr.bf16.mxu0 %v641
        %1017 = vmatmul.mubr.bf16.gmra.mrb[0].mxu0 %v640
        %v1018 = vpop.f32.mrb[0].mxu0
        %v1019 = vadd.f32 0.0, %v1018
        %v1020 = vpop.f32.mrb[0].mxu0
        %v1021 = vadd.f32 0.0, %v1020
        %v1022 = vpop.f32.mrb[0].mxu0
        %v1023 = vadd.f32 0.0, %v1022
        %v1024 = vpop.f32.mrb[0].mxu0
        %v1025 = vadd.f32 0.0, %v1024
        %1026 = vmatprep.mubr.bf16.mxu0 %v643
        %1027 = vmatmul.mubr.bf16.gmra.mrb[0].mxu0 %v642
        %v1028 = vpop.f32.mrb[0].mxu0
        %v1029 = vadd.f32 0.0, %v1028
        %v1030 = vpop.f32.mrb[0].mxu0
        %v1031 = vadd.f32 0.0, %v1030
        %v1032 = vpop.f32.mrb[0].mxu0
        %v1033 = vadd.f32 0.0, %v1032
        %v1034 = vpop.f32.mrb[0].mxu0
        %v1035 = vadd.f32 0.0, %v1034
        %1036 = vmatprep.mubr.bf16.mxu0 %v645
        %1037 = vmatmul.mubr.bf16.gmra.mrb[0].mxu0 %v644
        %v1038 = vpop.f32.mrb[0].mxu0
        %v1039 = vadd.f32 0.0, %v1038
        %v1040 = vpop.f32.mrb[0].mxu0
        %v1041 = vadd.f32 0.0, %v1040
        %v1042 = vpop.f32.mrb[0].mxu0
        %v1043 = vadd.f32 0.0, %v1042
        %v1044 = vpop.f32.mrb[0].mxu0
        %v1045 = vadd.f32 0.0, %v1044
        %1046 = vmatprep.mubr.bf16.mxu0 %v647
        %1047 = vmatmul.mubr.bf16.gmra.mrb[0].mxu0 %v646
        %v1048 = vpop.f32.mrb[0].mxu0
        %v1049 = vadd.f32 0.0, %v1048
        %v1050 = vpop.f32.mrb[0].mxu0
        %v1051 = vadd.f32 0.0, %v1050
        %v1052 = vpop.f32.mrb[0].mxu0
        %v1053 = vadd.f32 0.0, %v1052
        %v1054 = vpop.f32.mrb[0].mxu0
        %v1055 = vadd.f32 0.0, %v1054
        %1056 = vmatprep.mubr.bf16.mxu0 %v649
        %1057 = vmatmul.mubr.bf16.gmra.mrb[0].mxu0 %v648
        %v1058 = vpop.f32.mrb[0].mxu0
        %v1059 = vadd.f32 0.0, %v1058
        %v1060 = vpop.f32.mrb[0].mxu0
        %v1061 = vadd.f32 0.0, %v1060
        %v1062 = vpop.f32.mrb[0].mxu0
        %v1063 = vadd.f32 0.0, %v1062
        %v1064 = vpop.f32.mrb[0].mxu0
        %v1065 = vadd.f32 0.0, %v1064
        %1066 = vmatprep.mubr.bf16.mxu0 %v651
        %1067 = vmatmul.mubr.bf16.gmra.mrb[0].mxu0 %v650
        %v1068 = vpop.f32.mrb[0].mxu0
        %v1069 = vadd.f32 0.0, %v1068
        %v1070 = vpop.f32.mrb[0].mxu0
        %v1071 = vadd.f32 0.0, %v1070
        %v1072 = vpop.f32.mrb[0].mxu0
        %v1073 = vadd.f32 0.0, %v1072
        %v1074 = vpop.f32.mrb[0].mxu0
        %v1075 = vadd.f32 0.0, %v1074
        %1076 = vmatprep.mubr.bf16.mxu0 %v653
        %1077 = vmatmul.mubr.bf16.gmra.mrb[0].mxu0 %v652
        %v1078 = vpop.f32.mrb[0].mxu0
        %v1079 = vadd.f32 0.0, %v1078
        %v1080 = vpop.f32.mrb[0].mxu0
        %v1081 = vadd.f32 0.0, %v1080
        %v1082 = vpop.f32.mrb[0].mxu0
        %v1083 = vadd.f32 0.0, %v1082
        %v1084 = vpop.f32.mrb[0].mxu0
        %v1085 = vadd.f32 0.0, %v1084
        %1086 = vmatprep.mubr.bf16.mxu0 %v655
        %1087 = vmatmul.mubr.bf16.gmra.mrb[0].mxu0 %v654
        %v1088 = vpop.f32.mrb[0].mxu0
        %v1089 = vadd.f32 0.0, %v1088
        %v1090 = vpop.f32.mrb[0].mxu0
        %v1091 = vadd.f32 0.0, %v1090
        %v1092 = vpop.f32.mrb[0].mxu0
        %v1093 = vadd.f32 0.0, %v1092
        %v1094 = vpop.f32.mrb[0].mxu0
        %v1095 = vadd.f32 0.0, %v1094
        %1096 = vmatprep.mubr.bf16.mxu0 %v657
        %1097 = vmatmul.mubr.bf16.gmra.mrb[0].mxu0 %v656
        %v1098 = vpop.f32.mrb[0].mxu0
        %v1099 = vadd.f32 0.0, %v1098
        %v1100 = vpop.f32.mrb[0].mxu0
        %v1101 = vadd.f32 0.0, %v1100
        %v1102 = vpop.f32.mrb[0].mxu0
        %v1103 = vadd.f32 0.0, %v1102
        %v1104 = vpop.f32.mrb[0].mxu0
        %v1105 = vadd.f32 0.0, %v1104
        %1106 = vmatprep.mubr.bf16.mxu0 %v659
        %1107 = vmatmul.mubr.bf16.gmra.mrb[0].mxu0 %v658
        %v1108 = vpop.f32.mrb[0].mxu0
        %v1109 = vadd.f32 0.0, %v1108
        %v1110 = vpop.f32.mrb[0].mxu0
        %v1111 = vadd.f32 0.0, %v1110
        %v1112 = vpop.f32.mrb[0].mxu0
        %v1113 = vadd.f32 0.0, %v1112
        %v1114 = vpop.f32.mrb[0].mxu0
        %v1115 = vadd.f32 0.0, %v1114
        %1116 = vmatprep.mubr.bf16.mxu0 %v661
        %1117 = vmatmul.mubr.bf16.gmra.mrb[0].mxu0 %v660
        %v1118 = vpop.f32.mrb[0].mxu0
        %v1119 = vadd.f32 0.0, %v1118
        %v1120 = vpop.f32.mrb[0].mxu0
        %v1121 = vadd.f32 0.0, %v1120
        %v1122 = vpop.f32.mrb[0].mxu0
        %v1123 = vadd.f32 0.0, %v1122
        %v1124 = vpop.f32.mrb[0].mxu0
        %v1125 = vadd.f32 0.0, %v1124
        %1126 = vmatprep.mubr.bf16.mxu0 %v663
        %1127 = vmatmul.mubr.bf16.gmra.mrb[0].mxu0 %v662
        %v1128 = vpop.f32.mrb[0].mxu0
        %v1129 = vadd.f32 0.0, %v1128
        %v1130 = vpop.f32.mrb[0].mxu0
        %v1131 = vadd.f32 0.0, %v1130
        %v1132 = vpop.f32.mrb[0].mxu0
        %v1133 = vadd.f32 0.0, %v1132
        %v1134 = vpop.f32.mrb[0].mxu0
        %v1135 = vadd.f32 0.0, %v1134
        %1136 = vmatprep.mubr.bf16.mxu0 %v665
        %1137 = vmatmul.mubr.bf16.gmra.mrb[0].mxu0 %v664
        %v1138 = vpop.f32.mrb[0].mxu0
        %v1139 = vadd.f32 0.0, %v1138
        %v1140 = vpop.f32.mrb[0].mxu0
        %v1141 = vadd.f32 0.0, %v1140
        %v1142 = vpop.f32.mrb[0].mxu0
        %v1143 = vadd.f32 0.0, %v1142
        %v1144 = vpop.f32.mrb[0].mxu0
        %v1145 = vadd.f32 0.0, %v1144
        %1146 = vdwg.mxu0
        %1147 = vmatprep.subr.bf16.mxu0 0
        %1148 = vmatpush1.bf16.msra.mxu0 %v860
        %1149 = vmatprep.subr.bf16.mxu0 0
        %1150 = vmatpush1.bf16.msra.mxu0 %v863
        %1151 = vmatprep.subr.bf16.mxu0 0
        %1152 = vmatpush1.bf16.msra.mxu0 %v866
        %1153 = vmatprep.subr.bf16.mxu0 0
        %1154 = vmatpush1.bf16.msra.mxu0 %v869
        %1155 = vmatprep.subr.bf16.mxu0 0
        %1156 = vmatpush1.bf16.msra.mxu0 %v872
        %1157 = vmatprep.subr.bf16.mxu0 0
        %1158 = vmatpush1.bf16.msra.mxu0 %v875
        %1159 = vmatprep.subr.bf16.mxu0 0
        %1160 = vmatpush1.bf16.msra.mxu0 %v878
        %1161 = vmatprep.subr.bf16.mxu0 0
        %1162 = vmatpush1.bf16.msra.mxu0 %v881
        %1163 = vmatprep.subr.bf16.mxu0 0
        %1164 = vmatpush1.bf16.msra.mxu0 %v884
        %1165 = vmatprep.subr.bf16.mxu0 0
        %1166 = vmatpush1.bf16.msra.mxu0 %v887
        %1167 = vmatprep.subr.bf16.mxu0 0
        %1168 = vmatpush1.bf16.msra.mxu0 %v890
        %1169 = vmatprep.subr.bf16.mxu0 0
        %1170 = vmatpush1.bf16.msra.mxu0 %v893
        %1171 = vmatprep.subr.bf16.mxu0 0
        %1172 = vmatpush1.bf16.msra.mxu0 %v896
        %1173 = vmatprep.subr.bf16.mxu0 0
        %1174 = vmatpush1.bf16.msra.mxu0 %v899
        %1175 = vmatprep.subr.bf16.mxu0 0
        %1176 = vmatpush1.bf16.msra.mxu0 %v902
        %1177 = vmatprep.subr.bf16.mxu0 0
        %1178 = vmatpush1.bf16.msra.mxu0 %v905
        %1179 = vmatprep.mubr.bf16.mxu0 %v635
        %1180 = vmatmul.mubr.bf16.gmra.mrb[0].mxu0 %v634
        %v1181 = vpop.f32.mrb[0].mxu0
        %v1182 = vadd.f32 0.0, %v1181
        %v1183 = vpop.f32.mrb[0].mxu0
        %v1184 = vpop.f32.mrb[0].mxu0
        %v1185 = vadd.f32 0.0, %v1184
        %v1186 = vpop.f32.mrb[0].mxu0
        %1187 = vmatprep.mubr.bf16.mxu0 %v637
        %1188 = vmatmul.mubr.bf16.gmra.mrb[0].mxu0 %v636
        %v1189 = vpop.f32.mrb[0].mxu0
        %v1190 = vadd.f32 0.0, %v1189
        %v1191 = vpop.f32.mrb[0].mxu0
        %v1192 = vpop.f32.mrb[0].mxu0
        %v1193 = vadd.f32 0.0, %v1192
        %v1194 = vpop.f32.mrb[0].mxu0
        %1195 = vmatprep.mubr.bf16.mxu0 %v639
        %1196 = vmatmul.mubr.bf16.gmra.mrb[0].mxu0 %v638
        %v1197 = vpop.f32.mrb[0].mxu0
        %v1198 = vadd.f32 0.0, %v1197
        %v1199 = vpop.f32.mrb[0].mxu0
        %v1200 = vpop.f32.mrb[0].mxu0
        %v1201 = vadd.f32 0.0, %v1200
        %v1202 = vpop.f32.mrb[0].mxu0
        %1203 = vmatprep.mubr.bf16.mxu0 %v641
        %1204 = vmatmul.mubr.bf16.gmra.mrb[0].mxu0 %v640
        %v1205 = vpop.f32.mrb[0].mxu0
        %v1206 = vadd.f32 0.0, %v1205
        %v1207 = vpop.f32.mrb[0].mxu0
        %v1208 = vpop.f32.mrb[0].mxu0
        %v1209 = vadd.f32 0.0, %v1208
        %v1210 = vpop.f32.mrb[0].mxu0
        %1211 = vmatprep.mubr.bf16.mxu0 %v643
        %1212 = vmatmul.mubr.bf16.gmra.mrb[0].mxu0 %v642
        %v1213 = vpop.f32.mrb[0].mxu0
        %v1214 = vadd.f32 0.0, %v1213
        %v1215 = vpop.f32.mrb[0].mxu0
        %v1216 = vpop.f32.mrb[0].mxu0
        %v1217 = vadd.f32 0.0, %v1216
        %v1218 = vpop.f32.mrb[0].mxu0
        %1219 = vmatprep.mubr.bf16.mxu0 %v645
        %1220 = vmatmul.mubr.bf16.gmra.mrb[0].mxu0 %v644
        %v1221 = vpop.f32.mrb[0].mxu0
        %v1222 = vadd.f32 0.0, %v1221
        %v1223 = vpop.f32.mrb[0].mxu0
        %v1224 = vpop.f32.mrb[0].mxu0
        %v1225 = vadd.f32 0.0, %v1224
        %v1226 = vpop.f32.mrb[0].mxu0
        %1227 = vmatprep.mubr.bf16.mxu0 %v647
        %1228 = vmatmul.mubr.bf16.gmra.mrb[0].mxu0 %v646
        %v1229 = vpop.f32.mrb[0].mxu0
        %v1230 = vadd.f32 0.0, %v1229
        %v1231 = vpop.f32.mrb[0].mxu0
        %v1232 = vpop.f32.mrb[0].mxu0
        %v1233 = vadd.f32 0.0, %v1232
        %v1234 = vpop.f32.mrb[0].mxu0
        %1235 = vmatprep.mubr.bf16.mxu0 %v649
        %1236 = vmatmul.mubr.bf16.gmra.mrb[0].mxu0 %v648
        %v1237 = vpop.f32.mrb[0].mxu0
        %v1238 = vadd.f32 0.0, %v1237
        %v1239 = vpop.f32.mrb[0].mxu0
        %v1240 = vpop.f32.mrb[0].mxu0
        %v1241 = vadd.f32 0.0, %v1240
        %v1242 = vpop.f32.mrb[0].mxu0
        %1243 = vmatprep.mubr.bf16.mxu0 %v651
        %1244 = vmatmul.mubr.bf16.gmra.mrb[0].mxu0 %v650
        %v1245 = vpop.f32.mrb[0].mxu0
        %v1246 = vadd.f32 0.0, %v1245
        %v1247 = vpop.f32.mrb[0].mxu0
        %v1248 = vpop.f32.mrb[0].mxu0
        %v1249 = vadd.f32 0.0, %v1248
        %v1250 = vpop.f32.mrb[0].mxu0
        %1251 = vmatprep.mubr.bf16.mxu0 %v653
        %1252 = vmatmul.mubr.bf16.gmra.mrb[0].mxu0 %v652
        %v1253 = vpop.f32.mrb[0].mxu0
        %v1254 = vadd.f32 0.0, %v1253
        %v1255 = vpop.f32.mrb[0].mxu0
        %v1256 = vpop.f32.mrb[0].mxu0
        %v1257 = vadd.f32 0.0, %v1256
        %v1258 = vpop.f32.mrb[0].mxu0
        %1259 = vmatprep.mubr.bf16.mxu0 %v655
        %1260 = vmatmul.mubr.bf16.gmra.mrb[0].mxu0 %v654
        %v1261 = vpop.f32.mrb[0].mxu0
        %v1262 = vadd.f32 0.0, %v1261
        %v1263 = vpop.f32.mrb[0].mxu0
        %v1264 = vpop.f32.mrb[0].mxu0
        %v1265 = vadd.f32 0.0, %v1264
        %v1266 = vpop.f32.mrb[0].mxu0
        %1267 = vmatprep.mubr.bf16.mxu0 %v657
        %1268 = vmatmul.mubr.bf16.gmra.mrb[0].mxu0 %v656
        %v1269 = vpop.f32.mrb[0].mxu0
        %v1270 = vadd.f32 0.0, %v1269
        %v1271 = vpop.f32.mrb[0].mxu0
        %v1272 = vpop.f32.mrb[0].mxu0
        %v1273 = vadd.f32 0.0, %v1272
        %v1274 = vpop.f32.mrb[0].mxu0
        %1275 = vmatprep.mubr.bf16.mxu0 %v659
        %1276 = vmatmul.mubr.bf16.gmra.mrb[0].mxu0 %v658
        %v1277 = vpop.f32.mrb[0].mxu0
        %v1278 = vadd.f32 0.0, %v1277
        %v1279 = vpop.f32.mrb[0].mxu0
        %v1280 = vpop.f32.mrb[0].mxu0
        %v1281 = vadd.f32 0.0, %v1280
        %v1282 = vpop.f32.mrb[0].mxu0
        %1283 = vmatprep.mubr.bf16.mxu0 %v661
        %1284 = vmatmul.mubr.bf16.gmra.mrb[0].mxu0 %v660
        %v1285 = vpop.f32.mrb[0].mxu0
        %v1286 = vadd.f32 0.0, %v1285
        %v1287 = vpop.f32.mrb[0].mxu0
        %v1288 = vpop.f32.mrb[0].mxu0
        %v1289 = vadd.f32 0.0, %v1288
        %v1290 = vpop.f32.mrb[0].mxu0
        %1291 = vmatprep.mubr.bf16.mxu0 %v663
        %1292 = vmatmul.mubr.bf16.gmra.mrb[0].mxu0 %v662
        %v1293 = vpop.f32.mrb[0].mxu0
        %v1294 = vadd.f32 0.0, %v1293
        %v1295 = vpop.f32.mrb[0].mxu0
        %v1296 = vpop.f32.mrb[0].mxu0
        %v1297 = vadd.f32 0.0, %v1296
        %v1298 = vpop.f32.mrb[0].mxu0
        %1299 = vmatprep.mubr.bf16.mxu0 %v665
        %1300 = vmatmul.mubr.bf16.gmra.mrb[0].mxu0 %v664
        %v1301 = vpop.f32.mrb[0].mxu0
        %v1302 = vadd.f32 0.0, %v1301
        %v1303 = vpop.f32.mrb[0].mxu0
        %v1304 = vpop.f32.mrb[0].mxu0
        %v1305 = vadd.f32 0.0, %v1304
        %v1306 = vpop.f32.mrb[0].mxu0
        %1307 = vdwg.mxu0
        %v1308 = vmul.f32 %v989, %v989
        %v1309 = vmul.f32 %v993, %v993
        %v1310 = vmul.f32 %v999, %v999
        %v1311 = vmul.f32 %v1003, %v1003
        %v1312 = vmul.f32 %v1009, %v1009
        %v1313 = vmul.f32 %v1013, %v1013
        %v1314 = vmul.f32 %v1019, %v1019
        %v1315 = vmul.f32 %v1023, %v1023
        %v1316 = vmul.f32 %v1029, %v1029
        %v1317 = vmul.f32 %v1033, %v1033
        %v1318 = vmul.f32 %v1039, %v1039
        %v1319 = vmul.f32 %v1043, %v1043
        %v1320 = vmul.f32 %v1049, %v1049
        %v1321 = vmul.f32 %v1053, %v1053
        %v1322 = vmul.f32 %v1059, %v1059
        %v1323 = vmul.f32 %v1063, %v1063
        %v1324 = vmul.f32 %v1069, %v1069
        %v1325 = vmul.f32 %v1073, %v1073
        %v1326 = vmul.f32 %v1079, %v1079
        %v1327 = vmul.f32 %v1083, %v1083
        %v1328 = vmul.f32 %v1089, %v1089
        %v1329 = vmul.f32 %v1093, %v1093
        %v1330 = vmul.f32 %v1099, %v1099
        %v1331 = vmul.f32 %v1103, %v1103
        %v1332 = vmul.f32 %v1109, %v1109
        %v1333 = vmul.f32 %v1113, %v1113
        %v1334 = vmul.f32 %v1119, %v1119
        %v1335 = vmul.f32 %v1123, %v1123
        %v1336 = vmul.f32 %v1129, %v1129
        %v1337 = vmul.f32 %v1133, %v1133
        %v1338 = vmul.f32 %v1139, %v1139
        %v1339 = vmul.f32 %v1143, %v1143
        %1340 = vadd.xlane.f32.xlu0 %v1308
        %v1341 = vpop.xlane.xlu0 %1340
        %1342 = vadd.xlane.f32.xlu0 %v1309
        %v1343 = vpop.xlane.xlu0 %1342
        %1344 = vadd.xlane.f32.xlu0 %v1310
        %v1345 = vpop.xlane.xlu0 %1344
        %1346 = vadd.xlane.f32.xlu0 %v1311
        %v1347 = vpop.xlane.xlu0 %1346
        %1348 = vadd.xlane.f32.xlu0 %v1312
        %v1349 = vpop.xlane.xlu0 %1348
        %1350 = vadd.xlane.f32.xlu0 %v1313
        %v1351 = vpop.xlane.xlu0 %1350
        %1352 = vadd.xlane.f32.xlu0 %v1314
        %v1353 = vpop.xlane.xlu0 %1352
        %1354 = vadd.xlane.f32.xlu0 %v1315
        %v1355 = vpop.xlane.xlu0 %1354
        %1356 = vadd.xlane.f32.xlu0 %v1316
        %v1357 = vpop.xlane.xlu0 %1356
        %1358 = vadd.xlane.f32.xlu0 %v1317
        %v1359 = vpop.xlane.xlu0 %1358
        %1360 = vadd.xlane.f32.xlu0 %v1318
        %v1361 = vpop.xlane.xlu0 %1360
        %1362 = vadd.xlane.f32.xlu0 %v1319
        %v1363 = vpop.xlane.xlu0 %1362
        %1364 = vadd.xlane.f32.xlu0 %v1320
        %v1365 = vpop.xlane.xlu0 %1364
        %1366 = vadd.xlane.f32.xlu0 %v1321
        %v1367 = vpop.xlane.xlu0 %1366
        %1368 = vadd.xlane.f32.xlu0 %v1322
        %v1369 = vpop.xlane.xlu0 %1368
        %1370 = vadd.xlane.f32.xlu0 %v1323
        %v1371 = vpop.xlane.xlu0 %1370
        %1372 = vadd.xlane.f32.xlu0 %v1324
        %v1373 = vpop.xlane.xlu0 %1372
        %1374 = vadd.xlane.f32.xlu0 %v1325
        %v1375 = vpop.xlane.xlu0 %1374
        %1376 = vadd.xlane.f32.xlu0 %v1326
        %v1377 = vpop.xlane.xlu0 %1376
        %1378 = vadd.xlane.f32.xlu0 %v1327
        %v1379 = vpop.xlane.xlu0 %1378
        %1380 = vadd.xlane.f32.xlu0 %v1328
        %v1381 = vpop.xlane.xlu0 %1380
        %1382 = vadd.xlane.f32.xlu0 %v1329
        %v1383 = vpop.xlane.xlu0 %1382
        %1384 = vadd.xlane.f32.xlu0 %v1330
        %v1385 = vpop.xlane.xlu0 %1384
        %1386 = vadd.xlane.f32.xlu0 %v1331
        %v1387 = vpop.xlane.xlu0 %1386
        %1388 = vadd.xlane.f32.xlu0 %v1332
        %v1389 = vpop.xlane.xlu0 %1388
        %1390 = vadd.xlane.f32.xlu0 %v1333
        %v1391 = vpop.xlane.xlu0 %1390
        %1392 = vadd.xlane.f32.xlu0 %v1334
        %v1393 = vpop.xlane.xlu0 %1392
        %1394 = vadd.xlane.f32.xlu0 %v1335
        %v1395 = vpop.xlane.xlu0 %1394
        %1396 = vadd.xlane.f32.xlu0 %v1336
        %v1397 = vpop.xlane.xlu0 %1396
        %1398 = vadd.xlane.f32.xlu0 %v1337
        %v1399 = vpop.xlane.xlu0 %1398
        %1400 = vadd.xlane.f32.xlu0 %v1338
        %v1401 = vpop.xlane.xlu0 %1400
        %1402 = vadd.xlane.f32.xlu0 %v1339
        %v1403 = vpop.xlane.xlu0 %1402
        %v1404 = vrcp.pop 128.0
        %v1405 = vmul.f32 %v1341, %v1404
        %v1406 = vmul.f32 %v1343, %v1404
        %v1407 = vmul.f32 %v1345, %v1404
        %v1408 = vmul.f32 %v1347, %v1404
        %v1409 = vmul.f32 %v1349, %v1404
        %v1410 = vmul.f32 %v1351, %v1404
        %v1411 = vmul.f32 %v1353, %v1404
        %v1412 = vmul.f32 %v1355, %v1404
        %v1413 = vmul.f32 %v1357, %v1404
        %v1414 = vmul.f32 %v1359, %v1404
        %v1415 = vmul.f32 %v1361, %v1404
        %v1416 = vmul.f32 %v1363, %v1404
        %v1417 = vmul.f32 %v1365, %v1404
        %v1418 = vmul.f32 %v1367, %v1404
        %v1419 = vmul.f32 %v1369, %v1404
        %v1420 = vmul.f32 %v1371, %v1404
        %v1421 = vmul.f32 %v1373, %v1404
        %v1422 = vmul.f32 %v1375, %v1404
        %v1423 = vmul.f32 %v1377, %v1404
        %v1424 = vmul.f32 %v1379, %v1404
        %v1425 = vmul.f32 %v1381, %v1404
        %v1426 = vmul.f32 %v1383, %v1404
        %v1427 = vmul.f32 %v1385, %v1404
        %v1428 = vmul.f32 %v1387, %v1404
        %v1429 = vmul.f32 %v1389, %v1404
        %v1430 = vmul.f32 %v1391, %v1404
        %v1431 = vmul.f32 %v1393, %v1404
        %v1432 = vmul.f32 %v1395, %v1404
        %v1433 = vmul.f32 %v1397, %v1404
        %v1434 = vmul.f32 %v1399, %v1404
        %v1435 = vmul.f32 %v1401, %v1404
        %v1436 = vmul.f32 %v1403, %v1404
        %v1437 = vadd.f32 %v1405, 1.1920929e-07
        %v1438 = vadd.f32 %v1406, 1.1920929e-07
        %v1439 = vadd.f32 %v1407, 1.1920929e-07
        %v1440 = vadd.f32 %v1408, 1.1920929e-07
        %v1441 = vadd.f32 %v1409, 1.1920929e-07
        %v1442 = vadd.f32 %v1410, 1.1920929e-07
        %v1443 = vadd.f32 %v1411, 1.1920929e-07
        %v1444 = vadd.f32 %v1412, 1.1920929e-07
        %v1445 = vadd.f32 %v1413, 1.1920929e-07
        %v1446 = vadd.f32 %v1414, 1.1920929e-07
        %v1447 = vadd.f32 %v1415, 1.1920929e-07
        %v1448 = vadd.f32 %v1416, 1.1920929e-07
        %v1449 = vadd.f32 %v1417, 1.1920929e-07
        %v1450 = vadd.f32 %v1418, 1.1920929e-07
        %v1451 = vadd.f32 %v1419, 1.1920929e-07
        %v1452 = vadd.f32 %v1420, 1.1920929e-07
        %v1453 = vadd.f32 %v1421, 1.1920929e-07
        %v1454 = vadd.f32 %v1422, 1.1920929e-07
        %v1455 = vadd.f32 %v1423, 1.1920929e-07
        %v1456 = vadd.f32 %v1424, 1.1920929e-07
        %v1457 = vadd.f32 %v1425, 1.1920929e-07
        %v1458 = vadd.f32 %v1426, 1.1920929e-07
        %v1459 = vadd.f32 %v1427, 1.1920929e-07
        %v1460 = vadd.f32 %v1428, 1.1920929e-07
        %v1461 = vadd.f32 %v1429, 1.1920929e-07
        %v1462 = vadd.f32 %v1430, 1.1920929e-07
        %v1463 = vadd.f32 %v1431, 1.1920929e-07
        %v1464 = vadd.f32 %v1432, 1.1920929e-07
        %v1465 = vadd.f32 %v1433, 1.1920929e-07
        %v1466 = vadd.f32 %v1434, 1.1920929e-07
        %v1467 = vadd.f32 %v1435, 1.1920929e-07
        %v1468 = vadd.f32 %v1436, 1.1920929e-07
        %v1469 = vrsqrt.pop %v1437
        %v1470 = vrsqrt.pop %v1438
        %v1471 = vrsqrt.pop %v1439
        %v1472 = vrsqrt.pop %v1440
        %v1473 = vrsqrt.pop %v1441
        %v1474 = vrsqrt.pop %v1442
        %v1475 = vrsqrt.pop %v1443
        %v1476 = vrsqrt.pop %v1444
        %v1477 = vrsqrt.pop %v1445
        %v1478 = vrsqrt.pop %v1446
        %v1479 = vrsqrt.pop %v1447
        %v1480 = vrsqrt.pop %v1448
        %v1481 = vrsqrt.pop %v1449
        %v1482 = vrsqrt.pop %v1450
        %v1483 = vrsqrt.pop %v1451
        %v1484 = vrsqrt.pop %v1452
        %v1485 = vrsqrt.pop %v1453
        %v1486 = vrsqrt.pop %v1454
        %v1487 = vrsqrt.pop %v1455
        %v1488 = vrsqrt.pop %v1456
        %v1489 = vrsqrt.pop %v1457
        %v1490 = vrsqrt.pop %v1458
        %v1491 = vrsqrt.pop %v1459
        %v1492 = vrsqrt.pop %v1460
        %v1493 = vrsqrt.pop %v1461
        %v1494 = vrsqrt.pop %v1462
        %v1495 = vrsqrt.pop %v1463
        %v1496 = vrsqrt.pop %v1464
        %v1497 = vrsqrt.pop %v1465
        %v1498 = vrsqrt.pop %v1466
        %v1499 = vrsqrt.pop %v1467
        %v1500 = vrsqrt.pop %v1468
        %v1501 = vmul.f32 %v989, %v1469
        %v1502 = vmul.f32 %v993, %v1470
        %v1503 = vmul.f32 %v999, %v1471
        %v1504 = vmul.f32 %v1003, %v1472
        %v1505 = vmul.f32 %v1009, %v1473
        %v1506 = vmul.f32 %v1013, %v1474
        %v1507 = vmul.f32 %v1019, %v1475
        %v1508 = vmul.f32 %v1023, %v1476
        %v1509 = vmul.f32 %v1029, %v1477
        %v1510 = vmul.f32 %v1033, %v1478
        %v1511 = vmul.f32 %v1039, %v1479
        %v1512 = vmul.f32 %v1043, %v1480
        %v1513 = vmul.f32 %v1049, %v1481
        %v1514 = vmul.f32 %v1053, %v1482
        %v1515 = vmul.f32 %v1059, %v1483
        %v1516 = vmul.f32 %v1063, %v1484
        %v1517 = vmul.f32 %v1069, %v1485
        %v1518 = vmul.f32 %v1073, %v1486
        %v1519 = vmul.f32 %v1079, %v1487
        %v1520 = vmul.f32 %v1083, %v1488
        %v1521 = vmul.f32 %v1089, %v1489
        %v1522 = vmul.f32 %v1093, %v1490
        %v1523 = vmul.f32 %v1099, %v1491
        %v1524 = vmul.f32 %v1103, %v1492
        %v1525 = vmul.f32 %v1109, %v1493
        %v1526 = vmul.f32 %v1113, %v1494
        %v1527 = vmul.f32 %v1119, %v1495
        %v1528 = vmul.f32 %v1123, %v1496
        %v1529 = vmul.f32 %v1129, %v1497
        %v1530 = vmul.f32 %v1133, %v1498
        %v1531 = vmul.f32 %v1139, %v1499
        %v1532 = vmul.f32 %v1143, %v1500
        %v1533 = vmul.f32 %v1501, %v474
        %v1534 = vmul.f32 %v1502, %v475
        %v1535 = vmul.f32 %v1503, %v476
        %v1536 = vmul.f32 %v1504, %v477
        %v1537 = vmul.f32 %v1505, %v478
        %v1538 = vmul.f32 %v1506, %v479
        %v1539 = vmul.f32 %v1507, %v480
        %v1540 = vmul.f32 %v1508, %v481
        %v1541 = vmul.f32 %v1509, %v482
        %v1542 = vmul.f32 %v1510, %v483
        %v1543 = vmul.f32 %v1511, %v484
        %v1544 = vmul.f32 %v1512, %v485
        %v1545 = vmul.f32 %v1513, %v486
        %v1546 = vmul.f32 %v1514, %v487
        %v1547 = vmul.f32 %v1515, %v488
        %v1548 = vmul.f32 %v1516, %v489
        %v1549 = vmul.f32 %v1517, %v490
        %v1550 = vmul.f32 %v1518, %v491
        %v1551 = vmul.f32 %v1519, %v492
        %v1552 = vmul.f32 %v1520, %v493
        %v1553 = vmul.f32 %v1521, %v494
        %v1554 = vmul.f32 %v1522, %v495
        %v1555 = vmul.f32 %v1523, %v496
        %v1556 = vmul.f32 %v1524, %v497
        %v1557 = vmul.f32 %v1525, %v498
        %v1558 = vmul.f32 %v1526, %v499
        %v1559 = vmul.f32 %v1527, %v500
        %v1560 = vmul.f32 %v1528, %v501
        %v1561 = vmul.f32 %v1529, %v502
        %v1562 = vmul.f32 %v1530, %v503
        %v1563 = vmul.f32 %v1531, %v504
        %v1564 = vmul.f32 %v1532, %v505
        %1565 = vrot.lane.b32.xlu0 %v1501, 64
        %v1566 = vpop.permute.xlu0 %1565
        %1567 = vrot.lane.b32.xlu0 %v1502, 64
        %v1568 = vpop.permute.xlu0 %1567
        %1569 = vrot.lane.b32.xlu0 %v1503, 64
        %v1570 = vpop.permute.xlu0 %1569
        %1571 = vrot.lane.b32.xlu0 %v1504, 64
        %v1572 = vpop.permute.xlu0 %1571
        %1573 = vrot.lane.b32.xlu0 %v1505, 64
        %v1574 = vpop.permute.xlu0 %1573
        %1575 = vrot.lane.b32.xlu0 %v1506, 64
        %v1576 = vpop.permute.xlu0 %1575
        %1577 = vrot.lane.b32.xlu0 %v1507, 64
        %v1578 = vpop.permute.xlu0 %1577
        %1579 = vrot.lane.b32.xlu0 %v1508, 64
        %v1580 = vpop.permute.xlu0 %1579
        %1581 = vrot.lane.b32.xlu0 %v1509, 64
        %v1582 = vpop.permute.xlu0 %1581
        %1583 = vrot.lane.b32.xlu0 %v1510, 64
        %v1584 = vpop.permute.xlu0 %1583
        %1585 = vrot.lane.b32.xlu0 %v1511, 64
        %v1586 = vpop.permute.xlu0 %1585
        %1587 = vrot.lane.b32.xlu0 %v1512, 64
        %v1588 = vpop.permute.xlu0 %1587
        %1589 = vrot.lane.b32.xlu0 %v1513, 64
        %v1590 = vpop.permute.xlu0 %1589
        %1591 = vrot.lane.b32.xlu0 %v1514, 64
        %v1592 = vpop.permute.xlu0 %1591
        %1593 = vrot.lane.b32.xlu0 %v1515, 64
        %v1594 = vpop.permute.xlu0 %1593
        %1595 = vrot.lane.b32.xlu0 %v1516, 64
        %v1596 = vpop.permute.xlu0 %1595
        %1597 = vrot.lane.b32.xlu0 %v1517, 64
        %v1598 = vpop.permute.xlu0 %1597
        %1599 = vrot.lane.b32.xlu0 %v1518, 64
        %v1600 = vpop.permute.xlu0 %1599
        %1601 = vrot.lane.b32.xlu0 %v1519, 64
        %v1602 = vpop.permute.xlu0 %1601
        %1603 = vrot.lane.b32.xlu0 %v1520, 64
        %v1604 = vpop.permute.xlu0 %1603
        %1605 = vrot.lane.b32.xlu0 %v1521, 64
        %v1606 = vpop.permute.xlu0 %1605
        %1607 = vrot.lane.b32.xlu0 %v1522, 64
        %v1608 = vpop.permute.xlu0 %1607
        %1609 = vrot.lane.b32.xlu0 %v1523, 64
        %v1610 = vpop.permute.xlu0 %1609
        %1611 = vrot.lane.b32.xlu0 %v1524, 64
        %v1612 = vpop.permute.xlu0 %1611
        %1613 = vrot.lane.b32.xlu0 %v1525, 64
        %v1614 = vpop.permute.xlu0 %1613
        %1615 = vrot.lane.b32.xlu0 %v1526, 64
        %v1616 = vpop.permute.xlu0 %1615
        %1617 = vrot.lane.b32.xlu0 %v1527, 64
        %v1618 = vpop.permute.xlu0 %1617
        %1619 = vrot.lane.b32.xlu0 %v1528, 64
        %v1620 = vpop.permute.xlu0 %1619
        %1621 = vrot.lane.b32.xlu0 %v1529, 64
        %v1622 = vpop.permute.xlu0 %1621
        %1623 = vrot.lane.b32.xlu0 %v1530, 64
        %v1624 = vpop.permute.xlu0 %1623
        %1625 = vrot.lane.b32.xlu0 %v1531, 64
        %v1626 = vpop.permute.xlu0 %1625
        %1627 = vrot.lane.b32.xlu0 %v1532, 64
        %v1628 = vpop.permute.xlu0 %1627
        %v1629 = vmul.f32 %v1566, %v506
        %v1630 = vmul.f32 %v1568, %v507
        %v1631 = vmul.f32 %v1570, %v508
        %v1632 = vmul.f32 %v1572, %v509
        %v1633 = vmul.f32 %v1574, %v510
        %v1634 = vmul.f32 %v1576, %v511
        %v1635 = vmul.f32 %v1578, %v512
        %v1636 = vmul.f32 %v1580, %v513
        %v1637 = vmul.f32 %v1582, %v514
        %v1638 = vmul.f32 %v1584, %v515
        %v1639 = vmul.f32 %v1586, %v516
        %v1640 = vmul.f32 %v1588, %v517
        %v1641 = vmul.f32 %v1590, %v518
        %v1642 = vmul.f32 %v1592, %v519
        %v1643 = vmul.f32 %v1594, %v520
        %v1644 = vmul.f32 %v1596, %v521
        %v1645 = vmul.f32 %v1598, %v522
        %v1646 = vmul.f32 %v1600, %v523
        %v1647 = vmul.f32 %v1602, %v524
        %v1648 = vmul.f32 %v1604, %v525
        %v1649 = vmul.f32 %v1606, %v526
        %v1650 = vmul.f32 %v1608, %v527
        %v1651 = vmul.f32 %v1610, %v528
        %v1652 = vmul.f32 %v1612, %v529
        %v1653 = vmul.f32 %v1614, %v530
        %v1654 = vmul.f32 %v1616, %v531
        %v1655 = vmul.f32 %v1618, %v532
        %v1656 = vmul.f32 %v1620, %v533
        %v1657 = vmul.f32 %v1622, %v534
        %v1658 = vmul.f32 %v1624, %v535
        %v1659 = vmul.f32 %v1626, %v536
        %v1660 = vmul.f32 %v1628, %v537
        %v1661 = vadd.f32 %v1533, %v1629
        %v1662 = vadd.f32 %v1534, %v1630
        %v1663 = vadd.f32 %v1535, %v1631
        %v1664 = vadd.f32 %v1536, %v1632
        %v1665 = vadd.f32 %v1537, %v1633
        %v1666 = vadd.f32 %v1538, %v1634
        %v1667 = vadd.f32 %v1539, %v1635
        %v1668 = vadd.f32 %v1540, %v1636
        %v1669 = vadd.f32 %v1541, %v1637
        %v1670 = vadd.f32 %v1542, %v1638
        %v1671 = vadd.f32 %v1543, %v1639
        %v1672 = vadd.f32 %v1544, %v1640
        %v1673 = vadd.f32 %v1545, %v1641
        %v1674 = vadd.f32 %v1546, %v1642
        %v1675 = vadd.f32 %v1547, %v1643
        %v1676 = vadd.f32 %v1548, %v1644
        %v1677 = vadd.f32 %v1549, %v1645
        %v1678 = vadd.f32 %v1550, %v1646
        %v1679 = vadd.f32 %v1551, %v1647
        %v1680 = vadd.f32 %v1552, %v1648
        %v1681 = vadd.f32 %v1553, %v1649
        %v1682 = vadd.f32 %v1554, %v1650
        %v1683 = vadd.f32 %v1555, %v1651
        %v1684 = vadd.f32 %v1556, %v1652
        %v1685 = vadd.f32 %v1557, %v1653
        %v1686 = vadd.f32 %v1558, %v1654
        %v1687 = vadd.f32 %v1559, %v1655
        %v1688 = vadd.f32 %v1560, %v1656
        %v1689 = vadd.f32 %v1561, %v1657
        %v1690 = vadd.f32 %v1562, %v1658
        %v1691 = vadd.f32 %v1563, %v1659
        %v1692 = vadd.f32 %v1564, %v1660
        %v1693 = vmul.f32 %v1661, 0.088388346
        %v1694 = vmul.f32 %v1662, 0.088388346
        %v1695 = vmul.f32 %v1663, 0.088388346
        %v1696 = vmul.f32 %v1664, 0.088388346
        %v1697 = vmul.f32 %v1665, 0.088388346
        %v1698 = vmul.f32 %v1666, 0.088388346
        %v1699 = vmul.f32 %v1667, 0.088388346
        %v1700 = vmul.f32 %v1668, 0.088388346
        %v1701 = vmul.f32 %v1669, 0.088388346
        %v1702 = vmul.f32 %v1670, 0.088388346
        %v1703 = vmul.f32 %v1671, 0.088388346
        %v1704 = vmul.f32 %v1672, 0.088388346
        %v1705 = vmul.f32 %v1673, 0.088388346
        %v1706 = vmul.f32 %v1674, 0.088388346
        %v1707 = vmul.f32 %v1675, 0.088388346
        %v1708 = vmul.f32 %v1676, 0.088388346
        %v1709 = vmul.f32 %v1677, 0.088388346
        %v1710 = vmul.f32 %v1678, 0.088388346
        %v1711 = vmul.f32 %v1679, 0.088388346
        %v1712 = vmul.f32 %v1680, 0.088388346
        %v1713 = vmul.f32 %v1681, 0.088388346
        %v1714 = vmul.f32 %v1682, 0.088388346
        %v1715 = vmul.f32 %v1683, 0.088388346
        %v1716 = vmul.f32 %v1684, 0.088388346
        %v1717 = vmul.f32 %v1685, 0.088388346
        %v1718 = vmul.f32 %v1686, 0.088388346
        %v1719 = vmul.f32 %v1687, 0.088388346
        %v1720 = vmul.f32 %v1688, 0.088388346
        %v1721 = vmul.f32 %v1689, 0.088388346
        %v1722 = vmul.f32 %v1690, 0.088388346
        %v1723 = vmul.f32 %v1691, 0.088388346
        %v1724 = vmul.f32 %v1692, 0.088388346
        %v1725 = vmul.f32 %v991, %v991
        %v1726 = vmul.f32 %v995, %v995
        %v1727 = vmul.f32 %v1001, %v1001
        %v1728 = vmul.f32 %v1005, %v1005
        %v1729 = vmul.f32 %v1011, %v1011
        %v1730 = vmul.f32 %v1015, %v1015
        %v1731 = vmul.f32 %v1021, %v1021
        %v1732 = vmul.f32 %v1025, %v1025
        %v1733 = vmul.f32 %v1031, %v1031
        %v1734 = vmul.f32 %v1035, %v1035
        %v1735 = vmul.f32 %v1041, %v1041
        %v1736 = vmul.f32 %v1045, %v1045
        %v1737 = vmul.f32 %v1051, %v1051
        %v1738 = vmul.f32 %v1055, %v1055
        %v1739 = vmul.f32 %v1061, %v1061
        %v1740 = vmul.f32 %v1065, %v1065
        %v1741 = vmul.f32 %v1071, %v1071
        %v1742 = vmul.f32 %v1075, %v1075
        %v1743 = vmul.f32 %v1081, %v1081
        %v1744 = vmul.f32 %v1085, %v1085
        %v1745 = vmul.f32 %v1091, %v1091
        %v1746 = vmul.f32 %v1095, %v1095
        %v1747 = vmul.f32 %v1101, %v1101
        %v1748 = vmul.f32 %v1105, %v1105
        %v1749 = vmul.f32 %v1111, %v1111
        %v1750 = vmul.f32 %v1115, %v1115
        %v1751 = vmul.f32 %v1121, %v1121
        %v1752 = vmul.f32 %v1125, %v1125
        %v1753 = vmul.f32 %v1131, %v1131
        %v1754 = vmul.f32 %v1135, %v1135
        %v1755 = vmul.f32 %v1141, %v1141
        %v1756 = vmul.f32 %v1145, %v1145
        %1757 = vadd.xlane.f32.xlu0 %v1725
        %v1758 = vpop.xlane.xlu0 %1757
        %1759 = vadd.xlane.f32.xlu0 %v1726
        %v1760 = vpop.xlane.xlu0 %1759
        %1761 = vadd.xlane.f32.xlu0 %v1727
        %v1762 = vpop.xlane.xlu0 %1761
        %1763 = vadd.xlane.f32.xlu0 %v1728
        %v1764 = vpop.xlane.xlu0 %1763
        %1765 = vadd.xlane.f32.xlu0 %v1729
        %v1766 = vpop.xlane.xlu0 %1765
        %1767 = vadd.xlane.f32.xlu0 %v1730
        %v1768 = vpop.xlane.xlu0 %1767
        %1769 = vadd.xlane.f32.xlu0 %v1731
        %v1770 = vpop.xlane.xlu0 %1769
        %1771 = vadd.xlane.f32.xlu0 %v1732
        %v1772 = vpop.xlane.xlu0 %1771
        %1773 = vadd.xlane.f32.xlu0 %v1733
        %v1774 = vpop.xlane.xlu0 %1773
        %1775 = vadd.xlane.f32.xlu0 %v1734
        %v1776 = vpop.xlane.xlu0 %1775
        %1777 = vadd.xlane.f32.xlu0 %v1735
        %v1778 = vpop.xlane.xlu0 %1777
        %1779 = vadd.xlane.f32.xlu0 %v1736
        %v1780 = vpop.xlane.xlu0 %1779
        %1781 = vadd.xlane.f32.xlu0 %v1737
        %v1782 = vpop.xlane.xlu0 %1781
        %1783 = vadd.xlane.f32.xlu0 %v1738
        %v1784 = vpop.xlane.xlu0 %1783
        %1785 = vadd.xlane.f32.xlu0 %v1739
        %v1786 = vpop.xlane.xlu0 %1785
        %1787 = vadd.xlane.f32.xlu0 %v1740
        %v1788 = vpop.xlane.xlu0 %1787
        %1789 = vadd.xlane.f32.xlu0 %v1741
        %v1790 = vpop.xlane.xlu0 %1789
        %1791 = vadd.xlane.f32.xlu0 %v1742
        %v1792 = vpop.xlane.xlu0 %1791
        %1793 = vadd.xlane.f32.xlu0 %v1743
        %v1794 = vpop.xlane.xlu0 %1793
        %1795 = vadd.xlane.f32.xlu0 %v1744
        %v1796 = vpop.xlane.xlu0 %1795
        %1797 = vadd.xlane.f32.xlu0 %v1745
        %v1798 = vpop.xlane.xlu0 %1797
        %1799 = vadd.xlane.f32.xlu0 %v1746
        %v1800 = vpop.xlane.xlu0 %1799
        %1801 = vadd.xlane.f32.xlu0 %v1747
        %v1802 = vpop.xlane.xlu0 %1801
        %1803 = vadd.xlane.f32.xlu0 %v1748
        %v1804 = vpop.xlane.xlu0 %1803
        %1805 = vadd.xlane.f32.xlu0 %v1749
        %v1806 = vpop.xlane.xlu0 %1805
        %1807 = vadd.xlane.f32.xlu0 %v1750
        %v1808 = vpop.xlane.xlu0 %1807
        %1809 = vadd.xlane.f32.xlu0 %v1751
        %v1810 = vpop.xlane.xlu0 %1809
        %1811 = vadd.xlane.f32.xlu0 %v1752
        %v1812 = vpop.xlane.xlu0 %1811
        %1813 = vadd.xlane.f32.xlu0 %v1753
        %v1814 = vpop.xlane.xlu0 %1813
        %1815 = vadd.xlane.f32.xlu0 %v1754
        %v1816 = vpop.xlane.xlu0 %1815
        %1817 = vadd.xlane.f32.xlu0 %v1755
        %v1818 = vpop.xlane.xlu0 %1817
        %1819 = vadd.xlane.f32.xlu0 %v1756
        %v1820 = vpop.xlane.xlu0 %1819
        %v1821 = vmul.f32 %v1758, %v1404
        %v1822 = vmul.f32 %v1760, %v1404
        %v1823 = vmul.f32 %v1762, %v1404
        %v1824 = vmul.f32 %v1764, %v1404
        %v1825 = vmul.f32 %v1766, %v1404
        %v1826 = vmul.f32 %v1768, %v1404
        %v1827 = vmul.f32 %v1770, %v1404
        %v1828 = vmul.f32 %v1772, %v1404
        %v1829 = vmul.f32 %v1774, %v1404
        %v1830 = vmul.f32 %v1776, %v1404
        %v1831 = vmul.f32 %v1778, %v1404
        %v1832 = vmul.f32 %v1780, %v1404
        %v1833 = vmul.f32 %v1782, %v1404
        %v1834 = vmul.f32 %v1784, %v1404
        %v1835 = vmul.f32 %v1786, %v1404
        %v1836 = vmul.f32 %v1788, %v1404
        %v1837 = vmul.f32 %v1790, %v1404
        %v1838 = vmul.f32 %v1792, %v1404
        %v1839 = vmul.f32 %v1794, %v1404
        %v1840 = vmul.f32 %v1796, %v1404
        %v1841 = vmul.f32 %v1798, %v1404
        %v1842 = vmul.f32 %v1800, %v1404
        %v1843 = vmul.f32 %v1802, %v1404
        %v1844 = vmul.f32 %v1804, %v1404
        %v1845 = vmul.f32 %v1806, %v1404
        %v1846 = vmul.f32 %v1808, %v1404
        %v1847 = vmul.f32 %v1810, %v1404
        %v1848 = vmul.f32 %v1812, %v1404
        %v1849 = vmul.f32 %v1814, %v1404
        %v1850 = vmul.f32 %v1816, %v1404
        %v1851 = vmul.f32 %v1818, %v1404
        %v1852 = vmul.f32 %v1820, %v1404
        %v1853 = vadd.f32 %v1821, 1.1920929e-07
        %v1854 = vadd.f32 %v1822, 1.1920929e-07
        %v1855 = vadd.f32 %v1823, 1.1920929e-07
        %v1856 = vadd.f32 %v1824, 1.1920929e-07
        %v1857 = vadd.f32 %v1825, 1.1920929e-07
        %v1858 = vadd.f32 %v1826, 1.1920929e-07
        %v1859 = vadd.f32 %v1827, 1.1920929e-07
        %v1860 = vadd.f32 %v1828, 1.1920929e-07
        %v1861 = vadd.f32 %v1829, 1.1920929e-07
        %v1862 = vadd.f32 %v1830, 1.1920929e-07
        %v1863 = vadd.f32 %v1831, 1.1920929e-07
        %v1864 = vadd.f32 %v1832, 1.1920929e-07
        %v1865 = vadd.f32 %v1833, 1.1920929e-07
        %v1866 = vadd.f32 %v1834, 1.1920929e-07
        %v1867 = vadd.f32 %v1835, 1.1920929e-07
        %v1868 = vadd.f32 %v1836, 1.1920929e-07
        %v1869 = vadd.f32 %v1837, 1.1920929e-07
        %v1870 = vadd.f32 %v1838, 1.1920929e-07
        %v1871 = vadd.f32 %v1839, 1.1920929e-07
        %v1872 = vadd.f32 %v1840, 1.1920929e-07
        %v1873 = vadd.f32 %v1841, 1.1920929e-07
        %v1874 = vadd.f32 %v1842, 1.1920929e-07
        %v1875 = vadd.f32 %v1843, 1.1920929e-07
        %v1876 = vadd.f32 %v1844, 1.1920929e-07
        %v1877 = vadd.f32 %v1845, 1.1920929e-07
        %v1878 = vadd.f32 %v1846, 1.1920929e-07
        %v1879 = vadd.f32 %v1847, 1.1920929e-07
        %v1880 = vadd.f32 %v1848, 1.1920929e-07
        %v1881 = vadd.f32 %v1849, 1.1920929e-07
        %v1882 = vadd.f32 %v1850, 1.1920929e-07
        %v1883 = vadd.f32 %v1851, 1.1920929e-07
        %v1884 = vadd.f32 %v1852, 1.1920929e-07
        %v1885 = vrsqrt.pop %v1853
        %v1886 = vrsqrt.pop %v1854
        %v1887 = vrsqrt.pop %v1855
        %v1888 = vrsqrt.pop %v1856
        %v1889 = vrsqrt.pop %v1857
        %v1890 = vrsqrt.pop %v1858
        %v1891 = vrsqrt.pop %v1859
        %v1892 = vrsqrt.pop %v1860
        %v1893 = vrsqrt.pop %v1861
        %v1894 = vrsqrt.pop %v1862
        %v1895 = vrsqrt.pop %v1863
        %v1896 = vrsqrt.pop %v1864
        %v1897 = vrsqrt.pop %v1865
        %v1898 = vrsqrt.pop %v1866
        %v1899 = vrsqrt.pop %v1867
        %v1900 = vrsqrt.pop %v1868
        %v1901 = vrsqrt.pop %v1869
        %v1902 = vrsqrt.pop %v1870
        %v1903 = vrsqrt.pop %v1871
        %v1904 = vrsqrt.pop %v1872
        %v1905 = vrsqrt.pop %v1873
        %v1906 = vrsqrt.pop %v1874
        %v1907 = vrsqrt.pop %v1875
        %v1908 = vrsqrt.pop %v1876
        %v1909 = vrsqrt.pop %v1877
        %v1910 = vrsqrt.pop %v1878
        %v1911 = vrsqrt.pop %v1879
        %v1912 = vrsqrt.pop %v1880
        %v1913 = vrsqrt.pop %v1881
        %v1914 = vrsqrt.pop %v1882
        %v1915 = vrsqrt.pop %v1883
        %v1916 = vrsqrt.pop %v1884
        %v1917 = vmul.f32 %v991, %v1885
        %v1918 = vmul.f32 %v995, %v1886
        %v1919 = vmul.f32 %v1001, %v1887
        %v1920 = vmul.f32 %v1005, %v1888
        %v1921 = vmul.f32 %v1011, %v1889
        %v1922 = vmul.f32 %v1015, %v1890
        %v1923 = vmul.f32 %v1021, %v1891
        %v1924 = vmul.f32 %v1025, %v1892
        %v1925 = vmul.f32 %v1031, %v1893
        %v1926 = vmul.f32 %v1035, %v1894
        %v1927 = vmul.f32 %v1041, %v1895
        %v1928 = vmul.f32 %v1045, %v1896
        %v1929 = vmul.f32 %v1051, %v1897
        %v1930 = vmul.f32 %v1055, %v1898
        %v1931 = vmul.f32 %v1061, %v1899
        %v1932 = vmul.f32 %v1065, %v1900
        %v1933 = vmul.f32 %v1071, %v1901
        %v1934 = vmul.f32 %v1075, %v1902
        %v1935 = vmul.f32 %v1081, %v1903
        %v1936 = vmul.f32 %v1085, %v1904
        %v1937 = vmul.f32 %v1091, %v1905
        %v1938 = vmul.f32 %v1095, %v1906
        %v1939 = vmul.f32 %v1101, %v1907
        %v1940 = vmul.f32 %v1105, %v1908
        %v1941 = vmul.f32 %v1111, %v1909
        %v1942 = vmul.f32 %v1115, %v1910
        %v1943 = vmul.f32 %v1121, %v1911
        %v1944 = vmul.f32 %v1125, %v1912
        %v1945 = vmul.f32 %v1131, %v1913
        %v1946 = vmul.f32 %v1135, %v1914
        %v1947 = vmul.f32 %v1141, %v1915
        %v1948 = vmul.f32 %v1145, %v1916
        %v1949 = vmul.f32 %v1917, %v474
        %v1950 = vmul.f32 %v1918, %v475
        %v1951 = vmul.f32 %v1919, %v476
        %v1952 = vmul.f32 %v1920, %v477
        %v1953 = vmul.f32 %v1921, %v478
        %v1954 = vmul.f32 %v1922, %v479
        %v1955 = vmul.f32 %v1923, %v480
        %v1956 = vmul.f32 %v1924, %v481
        %v1957 = vmul.f32 %v1925, %v482
        %v1958 = vmul.f32 %v1926, %v483
        %v1959 = vmul.f32 %v1927, %v484
        %v1960 = vmul.f32 %v1928, %v485
        %v1961 = vmul.f32 %v1929, %v486
        %v1962 = vmul.f32 %v1930, %v487
        %v1963 = vmul.f32 %v1931, %v488
        %v1964 = vmul.f32 %v1932, %v489
        %v1965 = vmul.f32 %v1933, %v490
        %v1966 = vmul.f32 %v1934, %v491
        %v1967 = vmul.f32 %v1935, %v492
        %v1968 = vmul.f32 %v1936, %v493
        %v1969 = vmul.f32 %v1937, %v494
        %v1970 = vmul.f32 %v1938, %v495
        %v1971 = vmul.f32 %v1939, %v496
        %v1972 = vmul.f32 %v1940, %v497
        %v1973 = vmul.f32 %v1941, %v498
        %v1974 = vmul.f32 %v1942, %v499
        %v1975 = vmul.f32 %v1943, %v500
        %v1976 = vmul.f32 %v1944, %v501
        %v1977 = vmul.f32 %v1945, %v502
        %v1978 = vmul.f32 %v1946, %v503
        %v1979 = vmul.f32 %v1947, %v504
        %v1980 = vmul.f32 %v1948, %v505
        %1981 = vrot.lane.b32.xlu0 %v1917, 64
        %v1982 = vpop.permute.xlu0 %1981
        %1983 = vrot.lane.b32.xlu0 %v1918, 64
        %v1984 = vpop.permute.xlu0 %1983
        %1985 = vrot.lane.b32.xlu0 %v1919, 64
        %v1986 = vpop.permute.xlu0 %1985
        %1987 = vrot.lane.b32.xlu0 %v1920, 64
        %v1988 = vpop.permute.xlu0 %1987
        %1989 = vrot.lane.b32.xlu0 %v1921, 64
        %v1990 = vpop.permute.xlu0 %1989
        %1991 = vrot.lane.b32.xlu0 %v1922, 64
        %v1992 = vpop.permute.xlu0 %1991
        %1993 = vrot.lane.b32.xlu0 %v1923, 64
        %v1994 = vpop.permute.xlu0 %1993
        %1995 = vrot.lane.b32.xlu0 %v1924, 64
        %v1996 = vpop.permute.xlu0 %1995
        %1997 = vrot.lane.b32.xlu0 %v1925, 64
        %v1998 = vpop.permute.xlu0 %1997
        %1999 = vrot.lane.b32.xlu0 %v1926, 64
        %v2000 = vpop.permute.xlu0 %1999
        %2001 = vrot.lane.b32.xlu0 %v1927, 64
        %v2002 = vpop.permute.xlu0 %2001
        %2003 = vrot.lane.b32.xlu0 %v1928, 64
        %v2004 = vpop.permute.xlu0 %2003
        %2005 = vrot.lane.b32.xlu0 %v1929, 64
        %v2006 = vpop.permute.xlu0 %2005
        %2007 = vrot.lane.b32.xlu0 %v1930, 64
        %v2008 = vpop.permute.xlu0 %2007
        %2009 = vrot.lane.b32.xlu0 %v1931, 64
        %v2010 = vpop.permute.xlu0 %2009
        %2011 = vrot.lane.b32.xlu0 %v1932, 64
        %v2012 = vpop.permute.xlu0 %2011
        %2013 = vrot.lane.b32.xlu0 %v1933, 64
        %v2014 = vpop.permute.xlu0 %2013
        %2015 = vrot.lane.b32.xlu0 %v1934, 64
        %v2016 = vpop.permute.xlu0 %2015
        %2017 = vrot.lane.b32.xlu0 %v1935, 64
        %v2018 = vpop.permute.xlu0 %2017
        %2019 = vrot.lane.b32.xlu0 %v1936, 64
        %v2020 = vpop.permute.xlu0 %2019
        %2021 = vrot.lane.b32.xlu0 %v1937, 64
        %v2022 = vpop.permute.xlu0 %2021
        %2023 = vrot.lane.b32.xlu0 %v1938, 64
        %v2024 = vpop.permute.xlu0 %2023
        %2025 = vrot.lane.b32.xlu0 %v1939, 64
        %v2026 = vpop.permute.xlu0 %2025
        %2027 = vrot.lane.b32.xlu0 %v1940, 64
        %v2028 = vpop.permute.xlu0 %2027
        %2029 = vrot.lane.b32.xlu0 %v1941, 64
        %v2030 = vpop.permute.xlu0 %2029
        %2031 = vrot.lane.b32.xlu0 %v1942, 64
        %v2032 = vpop.permute.xlu0 %2031
        %2033 = vrot.lane.b32.xlu0 %v1943, 64
        %v2034 = vpop.permute.xlu0 %2033
        %2035 = vrot.lane.b32.xlu0 %v1944, 64
        %v2036 = vpop.permute.xlu0 %2035
        %2037 = vrot.lane.b32.xlu0 %v1945, 64
        %v2038 = vpop.permute.xlu0 %2037
        %2039 = vrot.lane.b32.xlu0 %v1946, 64
        %v2040 = vpop.permute.xlu0 %2039
        %2041 = vrot.lane.b32.xlu0 %v1947, 64
        %v2042 = vpop.permute.xlu0 %2041
        %2043 = vrot.lane.b32.xlu0 %v1948, 64
        %v2044 = vpop.permute.xlu0 %2043
        %v2045 = vmul.f32 %v1982, %v506
        %v2046 = vmul.f32 %v1984, %v507
        %v2047 = vmul.f32 %v1986, %v508
        %v2048 = vmul.f32 %v1988, %v509
        %v2049 = vmul.f32 %v1990, %v510
        %v2050 = vmul.f32 %v1992, %v511
        %v2051 = vmul.f32 %v1994, %v512
        %v2052 = vmul.f32 %v1996, %v513
        %v2053 = vmul.f32 %v1998, %v514
        %v2054 = vmul.f32 %v2000, %v515
        %v2055 = vmul.f32 %v2002, %v516
        %v2056 = vmul.f32 %v2004, %v517
        %v2057 = vmul.f32 %v2006, %v518
        %v2058 = vmul.f32 %v2008, %v519
        %v2059 = vmul.f32 %v2010, %v520
        %v2060 = vmul.f32 %v2012, %v521
        %v2061 = vmul.f32 %v2014, %v522
        %v2062 = vmul.f32 %v2016, %v523
        %v2063 = vmul.f32 %v2018, %v524
        %v2064 = vmul.f32 %v2020, %v525
        %v2065 = vmul.f32 %v2022, %v526
        %v2066 = vmul.f32 %v2024, %v527
        %v2067 = vmul.f32 %v2026, %v528
        %v2068 = vmul.f32 %v2028, %v529
        %v2069 = vmul.f32 %v2030, %v530
        %v2070 = vmul.f32 %v2032, %v531
        %v2071 = vmul.f32 %v2034, %v532
        %v2072 = vmul.f32 %v2036, %v533
        %v2073 = vmul.f32 %v2038, %v534
        %v2074 = vmul.f32 %v2040, %v535
        %v2075 = vmul.f32 %v2042, %v536
        %v2076 = vmul.f32 %v2044, %v537
        %v2077 = vadd.f32 %v1949, %v2045
        %v2078 = vadd.f32 %v1950, %v2046
        %v2079 = vadd.f32 %v1951, %v2047
        %v2080 = vadd.f32 %v1952, %v2048
        %v2081 = vadd.f32 %v1953, %v2049
        %v2082 = vadd.f32 %v1954, %v2050
        %v2083 = vadd.f32 %v1955, %v2051
        %v2084 = vadd.f32 %v1956, %v2052
        %v2085 = vadd.f32 %v1957, %v2053
        %v2086 = vadd.f32 %v1958, %v2054
        %v2087 = vadd.f32 %v1959, %v2055
        %v2088 = vadd.f32 %v1960, %v2056
        %v2089 = vadd.f32 %v1961, %v2057
        %v2090 = vadd.f32 %v1962, %v2058
        %v2091 = vadd.f32 %v1963, %v2059
        %v2092 = vadd.f32 %v1964, %v2060
        %v2093 = vadd.f32 %v1965, %v2061
        %v2094 = vadd.f32 %v1966, %v2062
        %v2095 = vadd.f32 %v1967, %v2063
        %v2096 = vadd.f32 %v1968, %v2064
        %v2097 = vadd.f32 %v1969, %v2065
        %v2098 = vadd.f32 %v1970, %v2066
        %v2099 = vadd.f32 %v1971, %v2067
        %v2100 = vadd.f32 %v1972, %v2068
        %v2101 = vadd.f32 %v1973, %v2069
        %v2102 = vadd.f32 %v1974, %v2070
        %v2103 = vadd.f32 %v1975, %v2071
        %v2104 = vadd.f32 %v1976, %v2072
        %v2105 = vadd.f32 %v1977, %v2073
        %v2106 = vadd.f32 %v1978, %v2074
        %v2107 = vadd.f32 %v1979, %v2075
        %v2108 = vadd.f32 %v1980, %v2076
        %v2109 = vpack.c.bf16 %v2078, %v2077
        %v2110 = vpack.c.bf16 %v2080, %v2079
        %v2111 = vpack.c.bf16 %v2082, %v2081
        %v2112 = vpack.c.bf16 %v2084, %v2083
        %v2113 = vpack.c.bf16 %v2086, %v2085
        %v2114 = vpack.c.bf16 %v2088, %v2087
        %v2115 = vpack.c.bf16 %v2090, %v2089
        %v2116 = vpack.c.bf16 %v2092, %v2091
        %v2117 = vpack.c.bf16 %v2094, %v2093
        %v2118 = vpack.c.bf16 %v2096, %v2095
        %v2119 = vpack.c.bf16 %v2098, %v2097
        %v2120 = vpack.c.bf16 %v2100, %v2099
        %v2121 = vpack.c.bf16 %v2102, %v2101
        %v2122 = vpack.c.bf16 %v2104, %v2103
        %v2123 = vpack.c.bf16 %v2106, %v2105
        %v2124 = vpack.c.bf16 %v2108, %v2107
        %v2125 = vpack.c.bf16 %v1185, %v1182
        %v2126 = vpack.c.bf16 %v1193, %v1190
        %v2127 = vpack.c.bf16 %v1201, %v1198
        %v2128 = vpack.c.bf16 %v1209, %v1206
        %v2129 = vpack.c.bf16 %v1217, %v1214
        %v2130 = vpack.c.bf16 %v1225, %v1222
        %v2131 = vpack.c.bf16 %v1233, %v1230
        %v2132 = vpack.c.bf16 %v1241, %v1238
        %v2133 = vpack.c.bf16 %v1249, %v1246
        %v2134 = vpack.c.bf16 %v1257, %v1254
        %v2135 = vpack.c.bf16 %v1265, %v1262
        %v2136 = vpack.c.bf16 %v1273, %v1270
        %v2137 = vpack.c.bf16 %v1281, %v1278
        %v2138 = vpack.c.bf16 %v1289, %v1286
        %v2139 = vpack.c.bf16 %v1297, %v1294
        %v2140 = vpack.c.bf16 %v1305, %v1302
        %v2141 = vlaneseq
        %v2142 = vshrl.u32 %v2141, 7
        %v2143 = vadd.s32 %v2142, 8
        %v2144 = vadd.s32 %v2142, 16
        %v2145 = vadd.s32 %v2142, 24
        %v2146 = vadd.s32 %v2142, 32
        %v2147 = vadd.s32 %v2142, 40
        %v2148 = vadd.s32 %v2142, 48
        %v2149 = vadd.s32 %v2142, 56
        %v2150 = vadd.s32 %v2142, 64
        %v2151 = vadd.s32 %v2142, 72
        %v2152 = vadd.s32 %v2142, 80
        %v2153 = vadd.s32 %v2142, 88
        %v2154 = vadd.s32 %v2142, 96
        %v2155 = vadd.s32 %v2142, 104
        %v2156 = vadd.s32 %v2142, 112
        %v2157 = vadd.s32 %v2142, 120
        %v2158 = vlaneseq
        %v2159 = vand.u32 %v2158, 127
        %v2160 = vadd.s32 %v2159, 128
        %v2161 = vsub.s32 %v2142, %v2159
        %v2162 = vsub.s32 %v2142, %v2160
        %v2163 = vsub.s32 %v2143, %v2159
        %v2164 = vsub.s32 %v2143, %v2160
        %v2165 = vsub.s32 %v2144, %v2159
        %v2166 = vsub.s32 %v2144, %v2160
        %v2167 = vsub.s32 %v2145, %v2159
        %v2168 = vsub.s32 %v2145, %v2160
        %v2169 = vsub.s32 %v2146, %v2159
        %v2170 = vsub.s32 %v2146, %v2160
        %v2171 = vsub.s32 %v2147, %v2159
        %v2172 = vsub.s32 %v2147, %v2160
        %v2173 = vsub.s32 %v2148, %v2159
        %v2174 = vsub.s32 %v2148, %v2160
        %v2175 = vsub.s32 %v2149, %v2159
        %v2176 = vsub.s32 %v2149, %v2160
        %v2177 = vsub.s32 %v2150, %v2159
        %v2178 = vsub.s32 %v2150, %v2160
        %v2179 = vsub.s32 %v2151, %v2159
        %v2180 = vsub.s32 %v2151, %v2160
        %v2181 = vsub.s32 %v2152, %v2159
        %v2182 = vsub.s32 %v2152, %v2160
        %v2183 = vsub.s32 %v2153, %v2159
        %v2184 = vsub.s32 %v2153, %v2160
        %v2185 = vsub.s32 %v2154, %v2159
        %v2186 = vsub.s32 %v2154, %v2160
        %v2187 = vsub.s32 %v2155, %v2159
        %v2188 = vsub.s32 %v2155, %v2160
        %v2189 = vsub.s32 %v2156, %v2159
        %v2190 = vsub.s32 %v2156, %v2160
        %v2191 = vsub.s32 %v2157, %v2159
        %v2192 = vsub.s32 %v2157, %v2160
        %v2193 = vpack.c.bf16 %v1694, %v1693
        %v2194 = vpack.c.bf16 %v1696, %v1695
        %v2195 = vpack.c.bf16 %v1698, %v1697
        %v2196 = vpack.c.bf16 %v1700, %v1699
        %v2197 = vpack.c.bf16 %v1702, %v1701
        %v2198 = vpack.c.bf16 %v1704, %v1703
        %v2199 = vpack.c.bf16 %v1706, %v1705
        %v2200 = vpack.c.bf16 %v1708, %v1707
        %2201 = vmatprep.subr.bf16.mxu0 0
        %2202 = vmatpush1.bf16.xpose.msra.mxu0 %v2109
        %2203 = vmatprep.subr.bf16.mxu0 0
        %2204 = vmatpush1.bf16.xpose.msra.mxu0 %v2110
        %2205 = vmatprep.subr.bf16.mxu0 0
        %2206 = vmatpush1.bf16.xpose.msra.mxu0 %v2111
        %2207 = vmatprep.subr.bf16.mxu0 0
        %2208 = vmatpush1.bf16.xpose.msra.mxu0 %v2112
        %2209 = vmatprep.subr.bf16.mxu0 0
        %2210 = vmatpush1.bf16.xpose.msra.mxu0 %v2113
        %2211 = vmatprep.subr.bf16.mxu0 0
        %2212 = vmatpush1.bf16.xpose.msra.mxu0 %v2114
        %2213 = vmatprep.subr.bf16.mxu0 0
        %2214 = vmatpush1.bf16.xpose.msra.mxu0 %v2115
        %2215 = vmatprep.subr.bf16.mxu0 0
        %2216 = vmatpush1.bf16.xpose.msra.mxu0 %v2116
        %2217 = vmatprep.subr.bf16.mxu0 0
        %2218 = vmatpush1.bf16.xpose.msra.mxu0 0
        %2219 = vmatprep.subr.bf16.mxu0 0
        %2220 = vmatpush1.bf16.xpose.msra.mxu0 0
        %2221 = vmatprep.subr.bf16.mxu0 0
        %2222 = vmatpush1.bf16.xpose.msra.mxu0 0
        %2223 = vmatprep.subr.bf16.mxu0 0
        %2224 = vmatpush1.bf16.xpose.msra.mxu0 0
        %2225 = vmatprep.subr.bf16.mxu0 0
        %2226 = vmatpush1.bf16.xpose.msra.mxu0 0
        %2227 = vmatprep.subr.bf16.mxu0 0
        %2228 = vmatpush1.bf16.xpose.msra.mxu0 0
        %2229 = vmatprep.subr.bf16.mxu0 0
        %2230 = vmatpush1.bf16.xpose.msra.mxu0 0
        %2231 = vmatprep.subr.bf16.mxu0 0
        %2232 = vmatpush1.bf16.xpose.msra.mxu0 0
        %2233 = vmatprep.mubr.bf16.mxu0 0
        %2234 = vmatmul.mubr.bf16.gmra.mrb[0].mxu0 %v2193
        %v2235 = vpop.f32.mrb[0].mxu0
        %v2236 = vadd.f32 0.0, %v2235
        %v2237 = vpop.f32.mrb[0].mxu0
        %v2238 = vpop.f32.mrb[0].mxu0
        %v2239 = vadd.f32 0.0, %v2238
        %v2240 = vpop.f32.mrb[0].mxu0
        %2241 = vmatprep.mubr.bf16.mxu0 0
        %2242 = vmatmul.mubr.bf16.gmra.mrb[0].mxu0 %v2194
        %v2243 = vpop.f32.mrb[0].mxu0
        %v2244 = vadd.f32 0.0, %v2243
        %v2245 = vpop.f32.mrb[0].mxu0
        %v2246 = vpop.f32.mrb[0].mxu0
        %v2247 = vadd.f32 0.0, %v2246
        %v2248 = vpop.f32.mrb[0].mxu0
        %2249 = vmatprep.mubr.bf16.mxu0 0
        %2250 = vmatmul.mubr.bf16.gmra.mrb[0].mxu0 %v2195
        %v2251 = vpop.f32.mrb[0].mxu0
        %v2252 = vadd.f32 0.0, %v2251
        %v2253 = vpop.f32.mrb[0].mxu0
        %v2254 = vpop.f32.mrb[0].mxu0
        %v2255 = vadd.f32 0.0, %v2254
        %v2256 = vpop.f32.mrb[0].mxu0
        %2257 = vmatprep.mubr.bf16.mxu0 0
        %2258 = vmatmul.mubr.bf16.gmra.mrb[0].mxu0 %v2196
        %v2259 = vpop.f32.mrb[0].mxu0
        %v2260 = vadd.f32 0.0, %v2259
        %v2261 = vpop.f32.mrb[0].mxu0
        %v2262 = vpop.f32.mrb[0].mxu0
        %v2263 = vadd.f32 0.0, %v2262
        %v2264 = vpop.f32.mrb[0].mxu0
        %2265 = vmatprep.mubr.bf16.mxu0 0
        %2266 = vmatmul.mubr.bf16.gmra.mrb[0].mxu0 %v2197
        %v2267 = vpop.f32.mrb[0].mxu0
        %v2268 = vadd.f32 0.0, %v2267
        %v2269 = vpop.f32.mrb[0].mxu0
        %v2270 = vpop.f32.mrb[0].mxu0
        %v2271 = vadd.f32 0.0, %v2270
        %v2272 = vpop.f32.mrb[0].mxu0
        %2273 = vmatprep.mubr.bf16.mxu0 0
        %2274 = vmatmul.mubr.bf16.gmra.mrb[0].mxu0 %v2198
        %v2275 = vpop.f32.mrb[0].mxu0
        %v2276 = vadd.f32 0.0, %v2275
        %v2277 = vpop.f32.mrb[0].mxu0
        %v2278 = vpop.f32.mrb[0].mxu0
        %v2279 = vadd.f32 0.0, %v2278
        %v2280 = vpop.f32.mrb[0].mxu0
        %2281 = vmatprep.mubr.bf16.mxu0 0
        %2282 = vmatmul.mubr.bf16.gmra.mrb[0].mxu0 %v2199
        %v2283 = vpop.f32.mrb[0].mxu0
        %v2284 = vadd.f32 0.0, %v2283
        %v2285 = vpop.f32.mrb[0].mxu0
        %v2286 = vpop.f32.mrb[0].mxu0
        %v2287 = vadd.f32 0.0, %v2286
        %v2288 = vpop.f32.mrb[0].mxu0
        %2289 = vmatprep.mubr.bf16.mxu0 0
        %2290 = vmatmul.mubr.bf16.gmra.mrb[0].mxu0 %v2200
        %v2291 = vpop.f32.mrb[0].mxu0
        %v2292 = vadd.f32 0.0, %v2291
        %v2293 = vpop.f32.mrb[0].mxu0
        %v2294 = vpop.f32.mrb[0].mxu0
        %v2295 = vadd.f32 0.0, %v2294
        %v2296 = vpop.f32.mrb[0].mxu0
        %2297 = vdwg.mxu0
        %vm2298 = vcmp.ge.s32.totalorder %v2161, 0
        %vm2299 = vcmp.ge.s32.totalorder %v2163, 0
        %vm2300 = vcmp.ge.s32.totalorder %v2165, 0
        %vm2301 = vcmp.ge.s32.totalorder %v2167, 0
        %vm2302 = vcmp.ge.s32.totalorder %v2169, 0
        %vm2303 = vcmp.ge.s32.totalorder %v2171, 0
        %vm2304 = vcmp.ge.s32.totalorder %v2173, 0
        %vm2305 = vcmp.ge.s32.totalorder %v2175, 0
        %vm2306 = vcmp.ge.s32.totalorder %v2177, 0
        %vm2307 = vcmp.ge.s32.totalorder %v2179, 0
        %vm2308 = vcmp.ge.s32.totalorder %v2181, 0
        %vm2309 = vcmp.ge.s32.totalorder %v2183, 0
        %vm2310 = vcmp.ge.s32.totalorder %v2185, 0
        %vm2311 = vcmp.ge.s32.totalorder %v2187, 0
        %vm2312 = vcmp.ge.s32.totalorder %v2189, 0
        %vm2313 = vcmp.ge.s32.totalorder %v2191, 0
        %v2314 = vsel %vm2298, %v2236, -inf
        %v2315 = vsel %vm2299, %v2239, -inf
        %v2316 = vsel %vm2300, %v2244, -inf
        %v2317 = vsel %vm2301, %v2247, -inf
        %v2318 = vsel %vm2302, %v2252, -inf
        %v2319 = vsel %vm2303, %v2255, -inf
        %v2320 = vsel %vm2304, %v2260, -inf
        %v2321 = vsel %vm2305, %v2263, -inf
        %v2322 = vsel %vm2306, %v2268, -inf
        %v2323 = vsel %vm2307, %v2271, -inf
        %v2324 = vsel %vm2308, %v2276, -inf
        %v2325 = vsel %vm2309, %v2279, -inf
        %v2326 = vsel %vm2310, %v2284, -inf
        %v2327 = vsel %vm2311, %v2287, -inf
        %v2328 = vsel %vm2312, %v2292, -inf
        %v2329 = vsel %vm2313, %v2295, -inf
        %2330 = vmax.xlane.f32.xlu0 %v2314
        %v2331 = vpop.xlane.xlu0 %2330
        %2332 = vmax.xlane.f32.xlu0 %v2315
        %v2333 = vpop.xlane.xlu0 %2332
        %2334 = vmax.xlane.f32.xlu0 %v2316
        %v2335 = vpop.xlane.xlu0 %2334
        %2336 = vmax.xlane.f32.xlu0 %v2317
        %v2337 = vpop.xlane.xlu0 %2336
        %2338 = vmax.xlane.f32.xlu0 %v2318
        %v2339 = vpop.xlane.xlu0 %2338
        %2340 = vmax.xlane.f32.xlu0 %v2319
        %v2341 = vpop.xlane.xlu0 %2340
        %2342 = vmax.xlane.f32.xlu0 %v2320
        %v2343 = vpop.xlane.xlu0 %2342
        %2344 = vmax.xlane.f32.xlu0 %v2321
        %v2345 = vpop.xlane.xlu0 %2344
        %2346 = vmax.xlane.f32.xlu0 %v2322
        %v2347 = vpop.xlane.xlu0 %2346
        %2348 = vmax.xlane.f32.xlu0 %v2323
        %v2349 = vpop.xlane.xlu0 %2348
        %2350 = vmax.xlane.f32.xlu0 %v2324
        %v2351 = vpop.xlane.xlu0 %2350
        %2352 = vmax.xlane.f32.xlu0 %v2325
        %v2353 = vpop.xlane.xlu0 %2352
        %2354 = vmax.xlane.f32.xlu0 %v2326
        %v2355 = vpop.xlane.xlu0 %2354
        %2356 = vmax.xlane.f32.xlu0 %v2327
        %v2357 = vpop.xlane.xlu0 %2356
        %2358 = vmax.xlane.f32.xlu0 %v2328
        %v2359 = vpop.xlane.xlu0 %2358
        %2360 = vmax.xlane.f32.xlu0 %v2329
        %v2361 = vpop.xlane.xlu0 %2360
        %v2362 = vsub.f32 %v2314, %v2331
        %v2363 = vsub.f32 %v2315, %v2333
        %v2364 = vsub.f32 %v2316, %v2335
        %v2365 = vsub.f32 %v2317, %v2337
        %v2366 = vsub.f32 %v2318, %v2339
        %v2367 = vsub.f32 %v2319, %v2341
        %v2368 = vsub.f32 %v2320, %v2343
        %v2369 = vsub.f32 %v2321, %v2345
        %v2370 = vsub.f32 %v2322, %v2347
        %v2371 = vsub.f32 %v2323, %v2349
        %v2372 = vsub.f32 %v2324, %v2351
        %v2373 = vsub.f32 %v2325, %v2353
        %v2374 = vsub.f32 %v2326, %v2355
        %v2375 = vsub.f32 %v2327, %v2357
        %v2376 = vsub.f32 %v2328, %v2359
        %v2377 = vsub.f32 %v2329, %v2361
        %v2378 = vmul.f32 %v2362, 1.442695
        %v2379 = vpow.pop %v2378
        %v2380 = vmul.f32 %v2363, 1.442695
        %v2381 = vpow.pop %v2380
        %v2382 = vmul.f32 %v2364, 1.442695
        %v2383 = vpow.pop %v2382
        %v2384 = vmul.f32 %v2365, 1.442695
        %v2385 = vpow.pop %v2384
        %v2386 = vmul.f32 %v2366, 1.442695
        %v2387 = vpow.pop %v2386
        %v2388 = vmul.f32 %v2367, 1.442695
        %v2389 = vpow.pop %v2388
        %v2390 = vmul.f32 %v2368, 1.442695
        %v2391 = vpow.pop %v2390
        %v2392 = vmul.f32 %v2369, 1.442695
        %v2393 = vpow.pop %v2392
        %v2394 = vmul.f32 %v2370, 1.442695
        %v2395 = vpow.pop %v2394
        %v2396 = vmul.f32 %v2371, 1.442695
        %v2397 = vpow.pop %v2396
        %v2398 = vmul.f32 %v2372, 1.442695
        %v2399 = vpow.pop %v2398
        %v2400 = vmul.f32 %v2373, 1.442695
        %v2401 = vpow.pop %v2400
        %v2402 = vmul.f32 %v2374, 1.442695
        %v2403 = vpow.pop %v2402
        %v2404 = vmul.f32 %v2375, 1.442695
        %v2405 = vpow.pop %v2404
        %v2406 = vmul.f32 %v2376, 1.442695
        %v2407 = vpow.pop %v2406
        %v2408 = vmul.f32 %v2377, 1.442695
        %v2409 = vpow.pop %v2408
        %2410 = vadd.xlane.f32.xlu0 %v2379
        %v2411 = vpop.xlane.xlu0 %2410
        %2412 = vadd.xlane.f32.xlu0 %v2381
        %v2413 = vpop.xlane.xlu0 %2412
        %2414 = vadd.xlane.f32.xlu0 %v2383
        %v2415 = vpop.xlane.xlu0 %2414
        %2416 = vadd.xlane.f32.xlu0 %v2385
        %v2417 = vpop.xlane.xlu0 %2416
        %2418 = vadd.xlane.f32.xlu0 %v2387
        %v2419 = vpop.xlane.xlu0 %2418
        %2420 = vadd.xlane.f32.xlu0 %v2389
        %v2421 = vpop.xlane.xlu0 %2420
        %2422 = vadd.xlane.f32.xlu0 %v2391
        %v2423 = vpop.xlane.xlu0 %2422
        %2424 = vadd.xlane.f32.xlu0 %v2393
        %v2425 = vpop.xlane.xlu0 %2424
        %2426 = vadd.xlane.f32.xlu0 %v2395
        %v2427 = vpop.xlane.xlu0 %2426
        %2428 = vadd.xlane.f32.xlu0 %v2397
        %v2429 = vpop.xlane.xlu0 %2428
        %2430 = vadd.xlane.f32.xlu0 %v2399
        %v2431 = vpop.xlane.xlu0 %2430
        %2432 = vadd.xlane.f32.xlu0 %v2401
        %v2433 = vpop.xlane.xlu0 %2432
        %2434 = vadd.xlane.f32.xlu0 %v2403
        %v2435 = vpop.xlane.xlu0 %2434
        %2436 = vadd.xlane.f32.xlu0 %v2405
        %v2437 = vpop.xlane.xlu0 %2436
        %2438 = vadd.xlane.f32.xlu0 %v2407
        %v2439 = vpop.xlane.xlu0 %2438
        %2440 = vadd.xlane.f32.xlu0 %v2409
        %v2441 = vpop.xlane.xlu0 %2440
        %v2442 = vrcp.pop %v2411
        %v2443 = vrcp.pop %v2413
        %v2444 = vrcp.pop %v2415
        %v2445 = vrcp.pop %v2417
        %v2446 = vrcp.pop %v2419
        %v2447 = vrcp.pop %v2421
        %v2448 = vrcp.pop %v2423
        %v2449 = vrcp.pop %v2425
        %v2450 = vrcp.pop %v2427
        %v2451 = vrcp.pop %v2429
        %v2452 = vrcp.pop %v2431
        %v2453 = vrcp.pop %v2433
        %v2454 = vrcp.pop %v2435
        %v2455 = vrcp.pop %v2437
        %v2456 = vrcp.pop %v2439
        %v2457 = vrcp.pop %v2441
        %v2458 = vpack.c.bf16 %v2381, %v2379
        %v2459 = vpack.c.bf16 %v2385, %v2383
        %v2460 = vpack.c.bf16 %v2389, %v2387
        %v2461 = vpack.c.bf16 %v2393, %v2391
        %v2462 = vpack.c.bf16 %v2397, %v2395
        %v2463 = vpack.c.bf16 %v2401, %v2399
        %v2464 = vpack.c.bf16 %v2405, %v2403
        %v2465 = vpack.c.bf16 %v2409, %v2407
        %2466 = vmatprep.subr.bf16.mxu0 0
        %2467 = vmatpush1.bf16.msra.mxu0 %v2125
        %2468 = vmatprep.subr.bf16.mxu0 0
        %2469 = vmatpush1.bf16.msra.mxu0 %v2126
        %2470 = vmatprep.subr.bf16.mxu0 0
        %2471 = vmatpush1.bf16.msra.mxu0 %v2127
        %2472 = vmatprep.subr.bf16.mxu0 0
        %2473 = vmatpush1.bf16.msra.mxu0 %v2128
        %2474 = vmatprep.subr.bf16.mxu0 0
        %2475 = vmatpush1.bf16.msra.mxu0 %v2129
        %2476 = vmatprep.subr.bf16.mxu0 0
        %2477 = vmatpush1.bf16.msra.mxu0 %v2130
        %2478 = vmatprep.subr.bf16.mxu0 0
        %2479 = vmatpush1.bf16.msra.mxu0 %v2131
        %2480 = vmatprep.subr.bf16.mxu0 0
        %2481 = vmatpush1.bf16.msra.mxu0 %v2132
        %2482 = vmatprep.subr.bf16.mxu0 0
        %2483 = vmatpush1.bf16.msra.mxu0 0
        %2484 = vmatprep.subr.bf16.mxu0 0
        %2485 = vmatpush1.bf16.msra.mxu0 0
        %2486 = vmatprep.subr.bf16.mxu0 0
        %2487 = vmatpush1.bf16.msra.mxu0 0
        %2488 = vmatprep.subr.bf16.mxu0 0
        %2489 = vmatpush1.bf16.msra.mxu0 0
        %2490 = vmatprep.subr.bf16.mxu0 0
        %2491 = vmatpush1.bf16.msra.mxu0 0
        %2492 = vmatprep.subr.bf16.mxu0 0
        %2493 = vmatpush1.bf16.msra.mxu0 0
        %2494 = vmatprep.subr.bf16.mxu0 0
        %2495 = vmatpush1.bf16.msra.mxu0 0
        %2496 = vmatprep.subr.bf16.mxu0 0
        %2497 = vmatpush1.bf16.msra.mxu0 0
        %2498 = vmatprep.mubr.bf16.mxu0 0
        %2499 = vmatmul.mubr.bf16.gmra.mrb[0].mxu0 %v2458
        %v2500 = vpop.f32.mrb[0].mxu0
        %v2501 = vadd.f32 0.0, %v2500
        %v2502 = vpop.f32.mrb[0].mxu0
        %v2503 = vpop.f32.mrb[0].mxu0
        %v2504 = vadd.f32 0.0, %v2503
        %v2505 = vpop.f32.mrb[0].mxu0
        %2506 = vmatprep.mubr.bf16.mxu0 0
        %2507 = vmatmul.mubr.bf16.gmra.mrb[0].mxu0 %v2459
        %v2508 = vpop.f32.mrb[0].mxu0
        %v2509 = vadd.f32 0.0, %v2508
        %v2510 = vpop.f32.mrb[0].mxu0
        %v2511 = vpop.f32.mrb[0].mxu0
        %v2512 = vadd.f32 0.0, %v2511
        %v2513 = vpop.f32.mrb[0].mxu0
        %2514 = vmatprep.mubr.bf16.mxu0 0
        %2515 = vmatmul.mubr.bf16.gmra.mrb[0].mxu0 %v2460
        %v2516 = vpop.f32.mrb[0].mxu0
        %v2517 = vadd.f32 0.0, %v2516
        %v2518 = vpop.f32.mrb[0].mxu0
        %v2519 = vpop.f32.mrb[0].mxu0
        %v2520 = vadd.f32 0.0, %v2519
        %v2521 = vpop.f32.mrb[0].mxu0
        %2522 = vmatprep.mubr.bf16.mxu0 0
        %2523 = vmatmul.mubr.bf16.gmra.mrb[0].mxu0 %v2461
        %v2524 = vpop.f32.mrb[0].mxu0
        %v2525 = vadd.f32 0.0, %v2524
        %v2526 = vpop.f32.mrb[0].mxu0
        %v2527 = vpop.f32.mrb[0].mxu0
        %v2528 = vadd.f32 0.0, %v2527
        %v2529 = vpop.f32.mrb[0].mxu0
        %2530 = vmatprep.mubr.bf16.mxu0 0
        %2531 = vmatmul.mubr.bf16.gmra.mrb[0].mxu0 %v2462
        %v2532 = vpop.f32.mrb[0].mxu0
        %v2533 = vadd.f32 0.0, %v2532
        %v2534 = vpop.f32.mrb[0].mxu0
        %v2535 = vpop.f32.mrb[0].mxu0
        %v2536 = vadd.f32 0.0, %v2535
        %v2537 = vpop.f32.mrb[0].mxu0
        %2538 = vmatprep.mubr.bf16.mxu0 0
        %2539 = vmatmul.mubr.bf16.gmra.mrb[0].mxu0 %v2463
        %v2540 = vpop.f32.mrb[0].mxu0
        %v2541 = vadd.f32 0.0, %v2540
        %v2542 = vpop.f32.mrb[0].mxu0
        %v2543 = vpop.f32.mrb[0].mxu0
        %v2544 = vadd.f32 0.0, %v2543
        %v2545 = vpop.f32.mrb[0].mxu0
        %2546 = vmatprep.mubr.bf16.mxu0 0
        %2547 = vmatmul.mubr.bf16.gmra.mrb[0].mxu0 %v2464
        %v2548 = vpop.f32.mrb[0].mxu0
        %v2549 = vadd.f32 0.0, %v2548
        %v2550 = vpop.f32.mrb[0].mxu0
        %v2551 = vpop.f32.mrb[0].mxu0
        %v2552 = vadd.f32 0.0, %v2551
        %v2553 = vpop.f32.mrb[0].mxu0
        %2554 = vmatprep.mubr.bf16.mxu0 0
        %2555 = vmatmul.mubr.bf16.gmra.mrb[0].mxu0 %v2465
        %v2556 = vpop.f32.mrb[0].mxu0
        %v2557 = vadd.f32 0.0, %v2556
        %v2558 = vpop.f32.mrb[0].mxu0
        %v2559 = vpop.f32.mrb[0].mxu0
        %v2560 = vadd.f32 0.0, %v2559
        %v2561 = vpop.f32.mrb[0].mxu0
        %2562 = vdwg.mxu0
        %v2563 = vmul.f32 %v2501, %v2442
        %v2564 = vmul.f32 %v2504, %v2443
        %v2565 = vmul.f32 %v2509, %v2444
        %v2566 = vmul.f32 %v2512, %v2445
        %v2567 = vmul.f32 %v2517, %v2446
        %v2568 = vmul.f32 %v2520, %v2447
        %v2569 = vmul.f32 %v2525, %v2448
        %v2570 = vmul.f32 %v2528, %v2449
        %v2571 = vmul.f32 %v2533, %v2450
        %v2572 = vmul.f32 %v2536, %v2451
        %v2573 = vmul.f32 %v2541, %v2452
        %v2574 = vmul.f32 %v2544, %v2453
        %v2575 = vmul.f32 %v2549, %v2454
        %v2576 = vmul.f32 %v2552, %v2455
        %v2577 = vmul.f32 %v2557, %v2456
        %v2578 = vmul.f32 %v2560, %v2457
        %v2579 = vpack.c.bf16 %v2564, %v2563
        %v2580 = vpack.c.bf16 %v2566, %v2565
        %v2581 = vpack.c.bf16 %v2568, %v2567
        %v2582 = vpack.c.bf16 %v2570, %v2569
        %v2583 = vpack.c.bf16 %v2572, %v2571
        %v2584 = vpack.c.bf16 %v2574, %v2573
        %v2585 = vpack.c.bf16 %v2576, %v2575
        %v2586 = vpack.c.bf16 %v2578, %v2577
        %v2603 = vunpack.c.l.b16 %v458
        %v2604 = vunpack.c.h.b16 %v458
        %v2605 = vunpack.c.l.b16 %v459
        %v2606 = vunpack.c.h.b16 %v459
        %v2607 = vunpack.c.l.b16 %v460
        %v2608 = vunpack.c.h.b16 %v460
        %v2609 = vunpack.c.l.b16 %v461
        %v2610 = vunpack.c.h.b16 %v461
        %v2611 = vunpack.c.l.b16 %v462
        %v2612 = vunpack.c.h.b16 %v462
        %v2613 = vunpack.c.l.b16 %v463
        %v2614 = vunpack.c.h.b16 %v463
        %v2615 = vunpack.c.l.b16 %v464
        %v2616 = vunpack.c.h.b16 %v464
        %v2617 = vunpack.c.l.b16 %v465
        %v2618 = vunpack.c.h.b16 %v465
        %v2619 = vunpack.c.l.b16 %v466
        %v2620 = vunpack.c.h.b16 %v466
        %v2621 = vunpack.c.l.b16 %v467
        %v2622 = vunpack.c.h.b16 %v467
        %v2623 = vunpack.c.l.b16 %v468
        %v2624 = vunpack.c.h.b16 %v468
        %v2625 = vunpack.c.l.b16 %v469
        %v2626 = vunpack.c.h.b16 %v469
        %v2627 = vunpack.c.l.b16 %v470
        %v2628 = vunpack.c.h.b16 %v470
        %v2629 = vunpack.c.l.b16 %v471
        %v2630 = vunpack.c.h.b16 %v471
        %v2631 = vunpack.c.l.b16 %v472
        %v2632 = vunpack.c.h.b16 %v472
        %v2633 = vunpack.c.l.b16 %v473
        %v2634 = vunpack.c.h.b16 %v473
        %v2635 = vpack.c.b16 %v2605, %v2603
        %v2636 = vpack.c.b16 %v2606, %v2604
        %v2637 = vpack.c.b16 %v2609, %v2607
        %v2638 = vpack.c.b16 %v2610, %v2608
        %v2639 = vpack.c.b16 %v2613, %v2611
        %v2640 = vpack.c.b16 %v2614, %v2612
        %v2641 = vpack.c.b16 %v2617, %v2615
        %v2642 = vpack.c.b16 %v2618, %v2616
        %v2643 = vpack.c.b16 %v2621, %v2619
        %v2644 = vpack.c.b16 %v2622, %v2620
        %v2645 = vpack.c.b16 %v2625, %v2623
        %v2646 = vpack.c.b16 %v2626, %v2624
        %v2647 = vpack.c.b16 %v2629, %v2627
        %v2648 = vpack.c.b16 %v2630, %v2628
        %v2649 = vpack.c.b16 %v2633, %v2631
        %v2650 = vpack.c.b16 %v2634, %v2632
        %2667 = vmatprep.subr.bf16.mxu0 %v2636
        %2668 = vmatpush1.bf16.msra.mxu0 %v2635
        %2669 = vmatprep.subr.bf16.mxu0 %v2638
        %2670 = vmatpush1.bf16.msra.mxu0 %v2637
        %2671 = vmatprep.subr.bf16.mxu0 %v2640
        %2672 = vmatpush1.bf16.msra.mxu0 %v2639
        %2673 = vmatprep.subr.bf16.mxu0 %v2642
        %2674 = vmatpush1.bf16.msra.mxu0 %v2641
        %2675 = vmatprep.subr.bf16.mxu0 %v2644
        %2676 = vmatpush1.bf16.msra.mxu0 %v2643
        %2677 = vmatprep.subr.bf16.mxu0 %v2646
        %2678 = vmatpush1.bf16.msra.mxu0 %v2645
        %2679 = vmatprep.subr.bf16.mxu0 %v2648
        %2680 = vmatpush1.bf16.msra.mxu0 %v2647
        %2681 = vmatprep.subr.bf16.mxu0 %v2650
        %2682 = vmatpush1.bf16.msra.mxu0 %v2649
        %2683 = vmatprep.subr.bf16.mxu0 0
        %2684 = vmatpush1.bf16.msra.mxu0 0
        %2685 = vmatprep.subr.bf16.mxu0 0
        %2686 = vmatpush1.bf16.msra.mxu0 0
        %2687 = vmatprep.subr.bf16.mxu0 0
        %2688 = vmatpush1.bf16.msra.mxu0 0
        %2689 = vmatprep.subr.bf16.mxu0 0
        %2690 = vmatpush1.bf16.msra.mxu0 0
        %2691 = vmatprep.subr.bf16.mxu0 0
        %2692 = vmatpush1.bf16.msra.mxu0 0
        %2693 = vmatprep.subr.bf16.mxu0 0
        %2694 = vmatpush1.bf16.msra.mxu0 0
        %2695 = vmatprep.subr.bf16.mxu0 0
        %2696 = vmatpush1.bf16.msra.mxu0 0
        %2697 = vmatprep.subr.bf16.mxu0 0
        %2698 = vmatpush1.bf16.msra.mxu0 0
        %2699 = vmatprep.mubr.bf16.mxu0 0
        %2700 = vmatmul.mubr.bf16.gmra.mrb[0].mxu0 %v2579
        %v2701 = vpop.f32.mrb[0].mxu0
        %v2702 = vadd.f32 0.0, %v2701
        %v2703 = vpop.f32.mrb[0].mxu0
        %v2704 = vadd.f32 0.0, %v2703
        %v2705 = vpop.f32.mrb[0].mxu0
        %v2706 = vadd.f32 0.0, %v2705
        %v2707 = vpop.f32.mrb[0].mxu0
        %v2708 = vadd.f32 0.0, %v2707
        %2709 = vmatprep.mubr.bf16.mxu0 0
        %2710 = vmatmul.mubr.bf16.gmra.mrb[0].mxu0 %v2580
        %v2711 = vpop.f32.mrb[0].mxu0
        %v2712 = vadd.f32 0.0, %v2711
        %v2713 = vpop.f32.mrb[0].mxu0
        %v2714 = vadd.f32 0.0, %v2713
        %v2715 = vpop.f32.mrb[0].mxu0
        %v2716 = vadd.f32 0.0, %v2715
        %v2717 = vpop.f32.mrb[0].mxu0
        %v2718 = vadd.f32 0.0, %v2717
        %2719 = vmatprep.mubr.bf16.mxu0 0
        %2720 = vmatmul.mubr.bf16.gmra.mrb[0].mxu0 %v2581
        %v2721 = vpop.f32.mrb[0].mxu0
        %v2722 = vadd.f32 0.0, %v2721
        %v2723 = vpop.f32.mrb[0].mxu0
        %v2724 = vadd.f32 0.0, %v2723
        %v2725 = vpop.f32.mrb[0].mxu0
        %v2726 = vadd.f32 0.0, %v2725
        %v2727 = vpop.f32.mrb[0].mxu0
        %v2728 = vadd.f32 0.0, %v2727
        %2729 = vmatprep.mubr.bf16.mxu0 0
        %2730 = vmatmul.mubr.bf16.gmra.mrb[0].mxu0 %v2582
        %v2731 = vpop.f32.mrb[0].mxu0
        %v2732 = vadd.f32 0.0, %v2731
        %v2733 = vpop.f32.mrb[0].mxu0
        %v2734 = vadd.f32 0.0, %v2733
        %v2735 = vpop.f32.mrb[0].mxu0
        %v2736 = vadd.f32 0.0, %v2735
        %v2737 = vpop.f32.mrb[0].mxu0
        %v2738 = vadd.f32 0.0, %v2737
        %2739 = vmatprep.mubr.bf16.mxu0 0
        %2740 = vmatmul.mubr.bf16.gmra.mrb[0].mxu0 %v2583
        %v2741 = vpop.f32.mrb[0].mxu0
        %v2742 = vadd.f32 0.0, %v2741
        %v2743 = vpop.f32.mrb[0].mxu0
        %v2744 = vadd.f32 0.0, %v2743
        %v2745 = vpop.f32.mrb[0].mxu0
        %v2746 = vadd.f32 0.0, %v2745
        %v2747 = vpop.f32.mrb[0].mxu0
        %v2748 = vadd.f32 0.0, %v2747
        %2749 = vmatprep.mubr.bf16.mxu0 0
        %2750 = vmatmul.mubr.bf16.gmra.mrb[0].mxu0 %v2584
        %v2751 = vpop.f32.mrb[0].mxu0
        %v2752 = vadd.f32 0.0, %v2751
        %v2753 = vpop.f32.mrb[0].mxu0
        %v2754 = vadd.f32 0.0, %v2753
        %v2755 = vpop.f32.mrb[0].mxu0
        %v2756 = vadd.f32 0.0, %v2755
        %v2757 = vpop.f32.mrb[0].mxu0
        %v2758 = vadd.f32 0.0, %v2757
        %2759 = vmatprep.mubr.bf16.mxu0 0
        %2760 = vmatmul.mubr.bf16.gmra.mrb[0].mxu0 %v2585
        %v2761 = vpop.f32.mrb[0].mxu0
        %v2762 = vadd.f32 0.0, %v2761
        %v2763 = vpop.f32.mrb[0].mxu0
        %v2764 = vadd.f32 0.0, %v2763
        %v2765 = vpop.f32.mrb[0].mxu0
        %v2766 = vadd.f32 0.0, %v2765
        %v2767 = vpop.f32.mrb[0].mxu0
        %v2768 = vadd.f32 0.0, %v2767
        %2769 = vmatprep.mubr.bf16.mxu0 0
        %2770 = vmatmul.mubr.bf16.gmra.mrb[0].mxu0 %v2586
        %v2771 = vpop.f32.mrb[0].mxu0
        %v2772 = vadd.f32 0.0, %v2771
        %v2773 = vpop.f32.mrb[0].mxu0
        %v2774 = vadd.f32 0.0, %v2773
        %v2775 = vpop.f32.mrb[0].mxu0
        %v2776 = vadd.f32 0.0, %v2775
        %v2777 = vpop.f32.mrb[0].mxu0
        %v2778 = vadd.f32 0.0, %v2777
        %2779 = vdwg.mxu0
        %p2780 = scmp.eq.s32.totalorder %s31, 0
        // Predicated region
        $region61: #{tpu_custom_call.1} parent=39 // pred_check
          %p2781 = pneg %p2780
        $region62: #{tpu_custom_call.1} parent=39 // pred_check_branch
          %2783 = sbr.rel (%p2781) target = $region64
        $region63: #{tpu_custom_call.1} parent=39 // pred_region
          %2784 = vst [vmem:[%s360] sm:$0xff] %v2702
          %2785 = vst [vmem:[%s360 + $0x8] sm:$0xff] %v2704
          %2786 = vst [vmem:[%s360 + $0x10] sm:$0xff] %v2706
          %2787 = vst [vmem:[%s360 + $0x18] sm:$0xff] %v2708
          %2788 = vst [vmem:[%s360 + $0x20] sm:$0xff] %v2712
          %2789 = vst [vmem:[%s360 + $0x28] sm:$0xff] %v2714
          %2790 = vst [vmem:[%s360 + $0x30] sm:$0xff] %v2716
          %2791 = vst [vmem:[%s360 + $0x38] sm:$0xff] %v2718
          %2792 = vst [vmem:[%s360 + $0x40] sm:$0xff] %v2722
          %2793 = vst [vmem:[%s360 + $0x48] sm:$0xff] %v2724
          %2794 = vst [vmem:[%s360 + $0x50] sm:$0xff] %v2726
          %2795 = vst [vmem:[%s360 + $0x58] sm:$0xff] %v2728
          %2796 = vst [vmem:[%s360 + $0x60] sm:$0xff] %v2732
          %2797 = vst [vmem:[%s360 + $0x68] sm:$0xff] %v2734
          %2798 = vst [vmem:[%s360 + $0x70] sm:$0xff] %v2736
          %2799 = vst [vmem:[%s360 + $0x78] sm:$0xff] %v2738
          %2800 = vst [vmem:[%s360 + $0x80] sm:$0xff] %v2742
          %2801 = vst [vmem:[%s360 + $0x88] sm:$0xff] %v2744
          %2802 = vst [vmem:[%s360 + $0x90] sm:$0xff] %v2746
          %2803 = vst [vmem:[%s360 + $0x98] sm:$0xff] %v2748
          %2804 = vst [vmem:[%s360 + $0xa0] sm:$0xff] %v2752
          %2805 = vst [vmem:[%s360 + $0xa8] sm:$0xff] %v2754
          %2806 = vst [vmem:[%s360 + $0xb0] sm:$0xff] %v2756
          %2807 = vst [vmem:[%s360 + $0xb8] sm:$0xff] %v2758
          %2808 = vst [vmem:[%s360 + $0xc0] sm:$0xff] %v2762
          %2809 = vst [vmem:[%s360 + $0xc8] sm:$0xff] %v2764
          %2810 = vst [vmem:[%s360 + $0xd0] sm:$0xff] %v2766
          %2811 = vst [vmem:[%s360 + $0xd8] sm:$0xff] %v2768
          %2812 = vst [vmem:[%s360 + $0xe0] sm:$0xff] %v2772
          %2813 = vst [vmem:[%s360 + $0xe8] sm:$0xff] %v2774
          %2814 = vst [vmem:[%s360 + $0xf0] sm:$0xff] %v2776
          %2815 = vst [vmem:[%s360 + $0xf8] sm:$0xff] %v2778
        $region64: #{tpu_custom_call.1} parent=39 // pred_fallthru
          _
        %p2816 = scmp.ne.s32.totalorder %s31, 0
        // Predicated region
        $region65: #{tpu_custom_call.1} parent=39 // pred_check
          %p2817 = pneg %p2816
        $region66: #{tpu_custom_call.1} parent=39 // pred_check_branch
          %2819 = sbr.rel (%p2817) target = $region68
        $region67: #{tpu_custom_call.1} parent=39 // pred_region
          %v2820 = vld [vmem:[%s360] sm:$0xff]
          %v2821 = vld [vmem:[%s360 + $0x8] sm:$0xff]
          %v2822 = vld [vmem:[%s360 + $0x10] sm:$0xff]
          %v2823 = vld [vmem:[%s360 + $0x18] sm:$0xff]
          %v2824 = vld [vmem:[%s360 + $0x20] sm:$0xff]
          %v2825 = vld [vmem:[%s360 + $0x28] sm:$0xff]
          %v2826 = vld [vmem:[%s360 + $0x30] sm:$0xff]
          %v2827 = vld [vmem:[%s360 + $0x38] sm:$0xff]
          %v2828 = vld [vmem:[%s360 + $0x40] sm:$0xff]
          %v2829 = vld [vmem:[%s360 + $0x48] sm:$0xff]
          %v2830 = vld [vmem:[%s360 + $0x50] sm:$0xff]
          %v2831 = vld [vmem:[%s360 + $0x58] sm:$0xff]
          %v2832 = vld [vmem:[%s360 + $0x60] sm:$0xff]
          %v2833 = vld [vmem:[%s360 + $0x68] sm:$0xff]
          %v2834 = vld [vmem:[%s360 + $0x70] sm:$0xff]
          %v2835 = vld [vmem:[%s360 + $0x78] sm:$0xff]
          %v2836 = vld [vmem:[%s360 + $0x80] sm:$0xff]
          %v2837 = vld [vmem:[%s360 + $0x88] sm:$0xff]
          %v2838 = vld [vmem:[%s360 + $0x90] sm:$0xff]
          %v2839 = vld [vmem:[%s360 + $0x98] sm:$0xff]
          %v2840 = vld [vmem:[%s360 + $0xa0] sm:$0xff]
          %v2841 = vld [vmem:[%s360 + $0xa8] sm:$0xff]
          %v2842 = vld [vmem:[%s360 + $0xb0] sm:$0xff]
          %v2843 = vld [vmem:[%s360 + $0xb8] sm:$0xff]
          %v2844 = vld [vmem:[%s360 + $0xc0] sm:$0xff]
          %v2845 = vld [vmem:[%s360 + $0xc8] sm:$0xff]
          %v2846 = vld [vmem:[%s360 + $0xd0] sm:$0xff]
          %v2847 = vld [vmem:[%s360 + $0xd8] sm:$0xff]
          %v2848 = vld [vmem:[%s360 + $0xe0] sm:$0xff]
          %v2849 = vld [vmem:[%s360 + $0xe8] sm:$0xff]
          %v2850 = vld [vmem:[%s360 + $0xf0] sm:$0xff]
          %v2851 = vld [vmem:[%s360 + $0xf8] sm:$0xff]
          %v2852 = vadd.f32 %v2820, %v2702
          %v2853 = vadd.f32 %v2821, %v2704
          %v2854 = vadd.f32 %v2822, %v2706
          %v2855 = vadd.f32 %v2823, %v2708
          %v2856 = vadd.f32 %v2824, %v2712
          %v2857 = vadd.f32 %v2825, %v2714
          %v2858 = vadd.f32 %v2826, %v2716
          %v2859 = vadd.f32 %v2827, %v2718
          %v2860 = vadd.f32 %v2828, %v2722
          %v2861 = vadd.f32 %v2829, %v2724
          %v2862 = vadd.f32 %v2830, %v2726
          %v2863 = vadd.f32 %v2831, %v2728
          %v2864 = vadd.f32 %v2832, %v2732
          %v2865 = vadd.f32 %v2833, %v2734
          %v2866 = vadd.f32 %v2834, %v2736
          %v2867 = vadd.f32 %v2835, %v2738
          %v2868 = vadd.f32 %v2836, %v2742
          %v2869 = vadd.f32 %v2837, %v2744
          %v2870 = vadd.f32 %v2838, %v2746
          %v2871 = vadd.f32 %v2839, %v2748
          %v2872 = vadd.f32 %v2840, %v2752
          %v2873 = vadd.f32 %v2841, %v2754
          %v2874 = vadd.f32 %v2842, %v2756
          %v2875 = vadd.f32 %v2843, %v2758
          %v2876 = vadd.f32 %v2844, %v2762
          %v2877 = vadd.f32 %v2845, %v2764
          %v2878 = vadd.f32 %v2846, %v2766
          %v2879 = vadd.f32 %v2847, %v2768
          %v2880 = vadd.f32 %v2848, %v2772
          %v2881 = vadd.f32 %v2849, %v2774
          %v2882 = vadd.f32 %v2850, %v2776
          %v2883 = vadd.f32 %v2851, %v2778
          %2884 = vst [vmem:[%s360] sm:$0xff] %v2852
          %2885 = vst [vmem:[%s360 + $0x8] sm:$0xff] %v2853
          %2886 = vst [vmem:[%s360 + $0x10] sm:$0xff] %v2854
          %2887 = vst [vmem:[%s360 + $0x18] sm:$0xff] %v2855
          %2888 = vst [vmem:[%s360 + $0x20] sm:$0xff] %v2856
          %2889 = vst [vmem:[%s360 + $0x28] sm:$0xff] %v2857
          %2890 = vst [vmem:[%s360 + $0x30] sm:$0xff] %v2858
          %2891 = vst [vmem:[%s360 + $0x38] sm:$0xff] %v2859
          %2892 = vst [vmem:[%s360 + $0x40] sm:$0xff] %v2860
          %2893 = vst [vmem:[%s360 + $0x48] sm:$0xff] %v2861
          %2894 = vst [vmem:[%s360 + $0x50] sm:$0xff] %v2862
          %2895 = vst [vmem:[%s360 + $0x58] sm:$0xff] %v2863
          %2896 = vst [vmem:[%s360 + $0x60] sm:$0xff] %v2864
          %2897 = vst [vmem:[%s360 + $0x68] sm:$0xff] %v2865
          %2898 = vst [vmem:[%s360 + $0x70] sm:$0xff] %v2866
          %2899 = vst [vmem:[%s360 + $0x78] sm:$0xff] %v2867
          %2900 = vst [vmem:[%s360 + $0x80] sm:$0xff] %v2868
          %2901 = vst [vmem:[%s360 + $0x88] sm:$0xff] %v2869
          %2902 = vst [vmem:[%s360 + $0x90] sm:$0xff] %v2870
          %2903 = vst [vmem:[%s360 + $0x98] sm:$0xff] %v2871
          %2904 = vst [vmem:[%s360 + $0xa0] sm:$0xff] %v2872
          %2905 = vst [vmem:[%s360 + $0xa8] sm:$0xff] %v2873
          %2906 = vst [vmem:[%s360 + $0xb0] sm:$0xff] %v2874
          %2907 = vst [vmem:[%s360 + $0xb8] sm:$0xff] %v2875
          %2908 = vst [vmem:[%s360 + $0xc0] sm:$0xff] %v2876
          %2909 = vst [vmem:[%s360 + $0xc8] sm:$0xff] %v2877
          %2910 = vst [vmem:[%s360 + $0xd0] sm:$0xff] %v2878
          %2911 = vst [vmem:[%s360 + $0xd8] sm:$0xff] %v2879
          %2912 = vst [vmem:[%s360 + $0xe0] sm:$0xff] %v2880
          %2913 = vst [vmem:[%s360 + $0xe8] sm:$0xff] %v2881
          %2914 = vst [vmem:[%s360 + $0xf0] sm:$0xff] %v2882
          %2915 = vst [vmem:[%s360 + $0xf8] sm:$0xff] %v2883
        $region68: #{tpu_custom_call.1} parent=39 // pred_fallthru
          _
        %v2916 = vpack.c.bf16 %v1710, %v1709
        %v2917 = vpack.c.bf16 %v1712, %v1711
        %v2918 = vpack.c.bf16 %v1714, %v1713
        %v2919 = vpack.c.bf16 %v1716, %v1715
        %v2920 = vpack.c.bf16 %v1718, %v1717
        %v2921 = vpack.c.bf16 %v1720, %v1719
        %v2922 = vpack.c.bf16 %v1722, %v1721
        %v2923 = vpack.c.bf16 %v1724, %v1723
        %2924 = vmatprep.subr.bf16.mxu0 0
        %2925 = vmatpush1.bf16.xpose.msra.mxu0 %v2109
        %2926 = vmatprep.subr.bf16.mxu0 0
        %2927 = vmatpush1.bf16.xpose.msra.mxu0 %v2110
        %2928 = vmatprep.subr.bf16.mxu0 0
        %2929 = vmatpush1.bf16.xpose.msra.mxu0 %v2111
        %2930 = vmatprep.subr.bf16.mxu0 0
        %2931 = vmatpush1.bf16.xpose.msra.mxu0 %v2112
        %2932 = vmatprep.subr.bf16.mxu0 0
        %2933 = vmatpush1.bf16.xpose.msra.mxu0 %v2113
        %2934 = vmatprep.subr.bf16.mxu0 0
        %2935 = vmatpush1.bf16.xpose.msra.mxu0 %v2114
        %2936 = vmatprep.subr.bf16.mxu0 0
        %2937 = vmatpush1.bf16.xpose.msra.mxu0 %v2115
        %2938 = vmatprep.subr.bf16.mxu0 0
        %2939 = vmatpush1.bf16.xpose.msra.mxu0 %v2116
        %2940 = vmatprep.subr.bf16.mxu0 0
        %2941 = vmatpush1.bf16.xpose.msra.mxu0 %v2117
        %2942 = vmatprep.subr.bf16.mxu0 0
        %2943 = vmatpush1.bf16.xpose.msra.mxu0 %v2118
        %2944 = vmatprep.subr.bf16.mxu0 0
        %2945 = vmatpush1.bf16.xpose.msra.mxu0 %v2119
        %2946 = vmatprep.subr.bf16.mxu0 0
        %2947 = vmatpush1.bf16.xpose.msra.mxu0 %v2120
        %2948 = vmatprep.subr.bf16.mxu0 0
        %2949 = vmatpush1.bf16.xpose.msra.mxu0 %v2121
        %2950 = vmatprep.subr.bf16.mxu0 0
        %2951 = vmatpush1.bf16.xpose.msra.mxu0 %v2122
        %2952 = vmatprep.subr.bf16.mxu0 0
        %2953 = vmatpush1.bf16.xpose.msra.mxu0 %v2123
        %2954 = vmatprep.subr.bf16.mxu0 0
        %2955 = vmatpush1.bf16.xpose.msra.mxu0 %v2124
        %2956 = vmatprep.mubr.bf16.mxu0 0
        %2957 = vmatmul.mubr.bf16.gmra.mrb[0].mxu0 %v2916
        %v2958 = vpop.f32.mrb[0].mxu0
        %v2959 = vadd.f32 0.0, %v2958
        %v2960 = vpop.f32.mrb[0].mxu0
        %v2961 = vadd.f32 0.0, %v2960
        %v2962 = vpop.f32.mrb[0].mxu0
        %v2963 = vadd.f32 0.0, %v2962
        %v2964 = vpop.f32.mrb[0].mxu0
        %v2965 = vadd.f32 0.0, %v2964
        %2966 = vmatprep.mubr.bf16.mxu0 0
        %2967 = vmatmul.mubr.bf16.gmra.mrb[0].mxu0 %v2917
        %v2968 = vpop.f32.mrb[0].mxu0
        %v2969 = vadd.f32 0.0, %v2968
        %v2970 = vpop.f32.mrb[0].mxu0
        %v2971 = vadd.f32 0.0, %v2970
        %v2972 = vpop.f32.mrb[0].mxu0
        %v2973 = vadd.f32 0.0, %v2972
        %v2974 = vpop.f32.mrb[0].mxu0
        %v2975 = vadd.f32 0.0, %v2974
        %2976 = vmatprep.mubr.bf16.mxu0 0
        %2977 = vmatmul.mubr.bf16.gmra.mrb[0].mxu0 %v2918
        %v2978 = vpop.f32.mrb[0].mxu0
        %v2979 = vadd.f32 0.0, %v2978
        %v2980 = vpop.f32.mrb[0].mxu0
        %v2981 = vadd.f32 0.0, %v2980
        %v2982 = vpop.f32.mrb[0].mxu0
        %v2983 = vadd.f32 0.0, %v2982
        %v2984 = vpop.f32.mrb[0].mxu0
        %v2985 = vadd.f32 0.0, %v2984
        %2986 = vmatprep.mubr.bf16.mxu0 0
        %2987 = vmatmul.mubr.bf16.gmra.mrb[0].mxu0 %v2919
        %v2988 = vpop.f32.mrb[0].mxu0
        %v2989 = vadd.f32 0.0, %v2988
        %v2990 = vpop.f32.mrb[0].mxu0
        %v2991 = vadd.f32 0.0, %v2990
        %v2992 = vpop.f32.mrb[0].mxu0
        %v2993 = vadd.f32 0.0, %v2992
        %v2994 = vpop.f32.mrb[0].mxu0
        %v2995 = vadd.f32 0.0, %v2994
        %2996 = vmatprep.mubr.bf16.mxu0 0
        %2997 = vmatmul.mubr.bf16.gmra.mrb[0].mxu0 %v2920
        %v2998 = vpop.f32.mrb[0].mxu0
        %v2999 = vadd.f32 0.0, %v2998
        %v3000 = vpop.f32.mrb[0].mxu0
        %v3001 = vadd.f32 0.0, %v3000
        %v3002 = vpop.f32.mrb[0].mxu0
        %v3003 = vadd.f32 0.0, %v3002
        %v3004 = vpop.f32.mrb[0].mxu0
        %v3005 = vadd.f32 0.0, %v3004
        %3006 = vmatprep.mubr.bf16.mxu0 0
        %3007 = vmatmul.mubr.bf16.gmra.mrb[0].mxu0 %v2921
        %v3008 = vpop.f32.mrb[0].mxu0
        %v3009 = vadd.f32 0.0, %v3008
        %v3010 = vpop.f32.mrb[0].mxu0
        %v3011 = vadd.f32 0.0, %v3010
        %v3012 = vpop.f32.mrb[0].mxu0
        %v3013 = vadd.f32 0.0, %v3012
        %v3014 = vpop.f32.mrb[0].mxu0
        %v3015 = vadd.f32 0.0, %v3014
        %3016 = vmatprep.mubr.bf16.mxu0 0
        %3017 = vmatmul.mubr.bf16.gmra.mrb[0].mxu0 %v2922
        %v3018 = vpop.f32.mrb[0].mxu0
        %v3019 = vadd.f32 0.0, %v3018
        %v3020 = vpop.f32.mrb[0].mxu0
        %v3021 = vadd.f32 0.0, %v3020
        %v3022 = vpop.f32.mrb[0].mxu0
        %v3023 = vadd.f32 0.0, %v3022
        %v3024 = vpop.f32.mrb[0].mxu0
        %v3025 = vadd.f32 0.0, %v3024
        %3026 = vmatprep.mubr.bf16.mxu0 0
        %3027 = vmatmul.mubr.bf16.gmra.mrb[0].mxu0 %v2923
        %v3028 = vpop.f32.mrb[0].mxu0
        %v3029 = vadd.f32 0.0, %v3028
        %v3030 = vpop.f32.mrb[0].mxu0
        %v3031 = vadd.f32 0.0, %v3030
        %v3032 = vpop.f32.mrb[0].mxu0
        %v3033 = vadd.f32 0.0, %v3032
        %v3034 = vpop.f32.mrb[0].mxu0
        %v3035 = vadd.f32 0.0, %v3034
        %3036 = vdwg.mxu0
        %v3037 = vadd.s32 %v2161, 128
        %v3038 = vadd.s32 %v2162, 128
        %v3039 = vadd.s32 %v2163, 128
        %v3040 = vadd.s32 %v2164, 128
        %v3041 = vadd.s32 %v2165, 128
        %v3042 = vadd.s32 %v2166, 128
        %v3043 = vadd.s32 %v2167, 128
        %v3044 = vadd.s32 %v2168, 128
        %v3045 = vadd.s32 %v2169, 128
        %v3046 = vadd.s32 %v2170, 128
        %v3047 = vadd.s32 %v2171, 128
        %v3048 = vadd.s32 %v2172, 128
        %v3049 = vadd.s32 %v2173, 128
        %v3050 = vadd.s32 %v2174, 128
        %v3051 = vadd.s32 %v2175, 128
        %v3052 = vadd.s32 %v2176, 128
        %v3053 = vadd.s32 %v2177, 128
        %v3054 = vadd.s32 %v2178, 128
        %v3055 = vadd.s32 %v2179, 128
        %v3056 = vadd.s32 %v2180, 128
        %v3057 = vadd.s32 %v2181, 128
        %v3058 = vadd.s32 %v2182, 128
        %v3059 = vadd.s32 %v2183, 128
        %v3060 = vadd.s32 %v2184, 128
        %v3061 = vadd.s32 %v2185, 128
        %v3062 = vadd.s32 %v2186, 128
        %v3063 = vadd.s32 %v2187, 128
        %v3064 = vadd.s32 %v2188, 128
        %v3065 = vadd.s32 %v2189, 128
        %v3066 = vadd.s32 %v2190, 128
        %v3067 = vadd.s32 %v2191, 128
        %v3068 = vadd.s32 %v2192, 128
        %vm3069 = vcmp.ge.s32.totalorder %v3037, 0
        %vm3070 = vcmp.ge.s32.totalorder %v3038, 0
        %vm3071 = vcmp.ge.s32.totalorder %v3039, 0
        %vm3072 = vcmp.ge.s32.totalorder %v3040, 0
        %vm3073 = vcmp.ge.s32.totalorder %v3041, 0
        %vm3074 = vcmp.ge.s32.totalorder %v3042, 0
        %vm3075 = vcmp.ge.s32.totalorder %v3043, 0
        %vm3076 = vcmp.ge.s32.totalorder %v3044, 0
        %vm3077 = vcmp.ge.s32.totalorder %v3045, 0
        %vm3078 = vcmp.ge.s32.totalorder %v3046, 0
        %vm3079 = vcmp.ge.s32.totalorder %v3047, 0
        %vm3080 = vcmp.ge.s32.totalorder %v3048, 0
        %vm3081 = vcmp.ge.s32.totalorder %v3049, 0
        %vm3082 = vcmp.ge.s32.totalorder %v3050, 0
        %vm3083 = vcmp.ge.s32.totalorder %v3051, 0
        %vm3084 = vcmp.ge.s32.totalorder %v3052, 0
        %vm3085 = vcmp.ge.s32.totalorder %v3053, 0
        %vm3086 = vcmp.ge.s32.totalorder %v3054, 0
        %vm3087 = vcmp.ge.s32.totalorder %v3055, 0
        %vm3088 = vcmp.ge.s32.totalorder %v3056, 0
        %vm3089 = vcmp.ge.s32.totalorder %v3057, 0
        %vm3090 = vcmp.ge.s32.totalorder %v3058, 0
        %vm3091 = vcmp.ge.s32.totalorder %v3059, 0
        %vm3092 = vcmp.ge.s32.totalorder %v3060, 0
        %vm3093 = vcmp.ge.s32.totalorder %v3061, 0
        %vm3094 = vcmp.ge.s32.totalorder %v3062, 0
        %vm3095 = vcmp.ge.s32.totalorder %v3063, 0
        %vm3096 = vcmp.ge.s32.totalorder %v3064, 0
        %vm3097 = vcmp.ge.s32.totalorder %v3065, 0
        %vm3098 = vcmp.ge.s32.totalorder %v3066, 0
        %vm3099 = vcmp.ge.s32.totalorder %v3067, 0
        %vm3100 = vcmp.ge.s32.totalorder %v3068, 0
        %v3101 = vsel %vm3069, %v2959, -inf
        %v3102 = vsel %vm3070, %v2961, -inf
        %v3103 = vsel %vm3071, %v2963, -inf
        %v3104 = vsel %vm3072, %v2965, -inf
        %v3105 = vsel %vm3073, %v2969, -inf
        %v3106 = vsel %vm3074, %v2971, -inf
        %v3107 = vsel %vm3075, %v2973, -inf
        %v3108 = vsel %vm3076, %v2975, -inf
        %v3109 = vsel %vm3077, %v2979, -inf
        %v3110 = vsel %vm3078, %v2981, -inf
        %v3111 = vsel %vm3079, %v2983, -inf
        %v3112 = vsel %vm3080, %v2985, -inf
        %v3113 = vsel %vm3081, %v2989, -inf
        %v3114 = vsel %vm3082, %v2991, -inf
        %v3115 = vsel %vm3083, %v2993, -inf
        %v3116 = vsel %vm3084, %v2995, -inf
        %v3117 = vsel %vm3085, %v2999, -inf
        %v3118 = vsel %vm3086, %v3001, -inf
        %v3119 = vsel %vm3087, %v3003, -inf
        %v3120 = vsel %vm3088, %v3005, -inf
        %v3121 = vsel %vm3089, %v3009, -inf
        %v3122 = vsel %vm3090, %v3011, -inf
        %v3123 = vsel %vm3091, %v3013, -inf
        %v3124 = vsel %vm3092, %v3015, -inf
        %v3125 = vsel %vm3093, %v3019, -inf
        %v3126 = vsel %vm3094, %v3021, -inf
        %v3127 = vsel %vm3095, %v3023, -inf
        %v3128 = vsel %vm3096, %v3025, -inf
        %v3129 = vsel %vm3097, %v3029, -inf
        %v3130 = vsel %vm3098, %v3031, -inf
        %v3131 = vsel %vm3099, %v3033, -inf
        %v3132 = vsel %vm3100, %v3035, -inf
        %v3133 = vmax.f32 %v3101, %v3102
        %3134 = vmax.xlane.f32.xlu0 %v3133
        %v3135 = vpop.xlane.xlu0 %3134
        %v3136 = vmax.f32 %v3103, %v3104
        %3137 = vmax.xlane.f32.xlu0 %v3136
        %v3138 = vpop.xlane.xlu0 %3137
        %v3139 = vmax.f32 %v3105, %v3106
        %3140 = vmax.xlane.f32.xlu0 %v3139
        %v3141 = vpop.xlane.xlu0 %3140
        %v3142 = vmax.f32 %v3107, %v3108
        %3143 = vmax.xlane.f32.xlu0 %v3142
        %v3144 = vpop.xlane.xlu0 %3143
        %v3145 = vmax.f32 %v3109, %v3110
        %3146 = vmax.xlane.f32.xlu0 %v3145
        %v3147 = vpop.xlane.xlu0 %3146
        %v3148 = vmax.f32 %v3111, %v3112
        %3149 = vmax.xlane.f32.xlu0 %v3148
        %v3150 = vpop.xlane.xlu0 %3149
        %v3151 = vmax.f32 %v3113, %v3114
        %3152 = vmax.xlane.f32.xlu0 %v3151
        %v3153 = vpop.xlane.xlu0 %3152
        %v3154 = vmax.f32 %v3115, %v3116
        %3155 = vmax.xlane.f32.xlu0 %v3154
        %v3156 = vpop.xlane.xlu0 %3155
        %v3157 = vmax.f32 %v3117, %v3118
        %3158 = vmax.xlane.f32.xlu0 %v3157
        %v3159 = vpop.xlane.xlu0 %3158
        %v3160 = vmax.f32 %v3119, %v3120
        %3161 = vmax.xlane.f32.xlu0 %v3160
        %v3162 = vpop.xlane.xlu0 %3161
        %v3163 = vmax.f32 %v3121, %v3122
        %3164 = vmax.xlane.f32.xlu0 %v3163
        %v3165 = vpop.xlane.xlu0 %3164
        %v3166 = vmax.f32 %v3123, %v3124
        %3167 = vmax.xlane.f32.xlu0 %v3166
        %v3168 = vpop.xlane.xlu0 %3167
        %v3169 = vmax.f32 %v3125, %v3126
        %3170 = vmax.xlane.f32.xlu0 %v3169
        %v3171 = vpop.xlane.xlu0 %3170
        %v3172 = vmax.f32 %v3127, %v3128
        %3173 = vmax.xlane.f32.xlu0 %v3172
        %v3174 = vpop.xlane.xlu0 %3173
        %v3175 = vmax.f32 %v3129, %v3130
        %3176 = vmax.xlane.f32.xlu0 %v3175
        %v3177 = vpop.xlane.xlu0 %3176
        %v3178 = vmax.f32 %v3131, %v3132
        %3179 = vmax.xlane.f32.xlu0 %v3178
        %v3180 = vpop.xlane.xlu0 %3179
        %v3181 = vsub.f32 %v3101, %v3135
        %v3182 = vsub.f32 %v3102, %v3135
        %v3183 = vsub.f32 %v3103, %v3138
        %v3184 = vsub.f32 %v3104, %v3138
        %v3185 = vsub.f32 %v3105, %v3141
        %v3186 = vsub.f32 %v3106, %v3141
        %v3187 = vsub.f32 %v3107, %v3144
        %v3188 = vsub.f32 %v3108, %v3144
        %v3189 = vsub.f32 %v3109, %v3147
        %v3190 = vsub.f32 %v3110, %v3147
        %v3191 = vsub.f32 %v3111, %v3150
        %v3192 = vsub.f32 %v3112, %v3150
        %v3193 = vsub.f32 %v3113, %v3153
        %v3194 = vsub.f32 %v3114, %v3153
        %v3195 = vsub.f32 %v3115, %v3156
        %v3196 = vsub.f32 %v3116, %v3156
        %v3197 = vsub.f32 %v3117, %v3159
        %v3198 = vsub.f32 %v3118, %v3159
        %v3199 = vsub.f32 %v3119, %v3162
        %v3200 = vsub.f32 %v3120, %v3162
        %v3201 = vsub.f32 %v3121, %v3165
        %v3202 = vsub.f32 %v3122, %v3165
        %v3203 = vsub.f32 %v3123, %v3168
        %v3204 = vsub.f32 %v3124, %v3168
        %v3205 = vsub.f32 %v3125, %v3171
        %v3206 = vsub.f32 %v3126, %v3171
        %v3207 = vsub.f32 %v3127, %v3174
        %v3208 = vsub.f32 %v3128, %v3174
        %v3209 = vsub.f32 %v3129, %v3177
        %v3210 = vsub.f32 %v3130, %v3177
        %v3211 = vsub.f32 %v3131, %v3180
        %v3212 = vsub.f32 %v3132, %v3180
        %v3213 = vmul.f32 %v3181, 1.442695
        %v3214 = vpow.pop %v3213
        %v3215 = vmul.f32 %v3182, 1.442695
        %v3216 = vpow.pop %v3215
        %v3217 = vmul.f32 %v3183, 1.442695
        %v3218 = vpow.pop %v3217
        %v3219 = vmul.f32 %v3184, 1.442695
        %v3220 = vpow.pop %v3219
        %v3221 = vmul.f32 %v3185, 1.442695
        %v3222 = vpow.pop %v3221
        %v3223 = vmul.f32 %v3186, 1.442695
        %v3224 = vpow.pop %v3223
        %v3225 = vmul.f32 %v3187, 1.442695
        %v3226 = vpow.pop %v3225
        %v3227 = vmul.f32 %v3188, 1.442695
        %v3228 = vpow.pop %v3227
        %v3229 = vmul.f32 %v3189, 1.442695
        %v3230 = vpow.pop %v3229
        %v3231 = vmul.f32 %v3190, 1.442695
        %v3232 = vpow.pop %v3231
        %v3233 = vmul.f32 %v3191, 1.442695
        %v3234 = vpow.pop %v3233
        %v3235 = vmul.f32 %v3192, 1.442695
        %v3236 = vpow.pop %v3235
        %v3237 = vmul.f32 %v3193, 1.442695
        %v3238 = vpow.pop %v3237
        %v3239 = vmul.f32 %v3194, 1.442695
        %v3240 = vpow.pop %v3239
        %v3241 = vmul.f32 %v3195, 1.442695
        %v3242 = vpow.pop %v3241
        %v3243 = vmul.f32 %v3196, 1.442695
        %v3244 = vpow.pop %v3243
        %v3245 = vmul.f32 %v3197, 1.442695
        %v3246 = vpow.pop %v3245
        %v3247 = vmul.f32 %v3198, 1.442695
        %v3248 = vpow.pop %v3247
        %v3249 = vmul.f32 %v3199, 1.442695
        %v3250 = vpow.pop %v3249
        %v3251 = vmul.f32 %v3200, 1.442695
        %v3252 = vpow.pop %v3251
        %v3253 = vmul.f32 %v3201, 1.442695
        %v3254 = vpow.pop %v3253
        %v3255 = vmul.f32 %v3202, 1.442695
        %v3256 = vpow.pop %v3255
        %v3257 = vmul.f32 %v3203, 1.442695
        %v3258 = vpow.pop %v3257
        %v3259 = vmul.f32 %v3204, 1.442695
        %v3260 = vpow.pop %v3259
        %v3261 = vmul.f32 %v3205, 1.442695
        %v3262 = vpow.pop %v3261
        %v3263 = vmul.f32 %v3206, 1.442695
        %v3264 = vpow.pop %v3263
        %v3265 = vmul.f32 %v3207, 1.442695
        %v3266 = vpow.pop %v3265
        %v3267 = vmul.f32 %v3208, 1.442695
        %v3268 = vpow.pop %v3267
        %v3269 = vmul.f32 %v3209, 1.442695
        %v3270 = vpow.pop %v3269
        %v3271 = vmul.f32 %v3210, 1.442695
        %v3272 = vpow.pop %v3271
        %v3273 = vmul.f32 %v3211, 1.442695
        %v3274 = vpow.pop %v3273
        %v3275 = vmul.f32 %v3212, 1.442695
        %v3276 = vpow.pop %v3275
        %v3277 = vadd.f32 %v3214, %v3216
        %3278 = vadd.xlane.f32.xlu0 %v3277
        %v3279 = vpop.xlane.xlu0 %3278
        %v3280 = vadd.f32 %v3218, %v3220
        %3281 = vadd.xlane.f32.xlu0 %v3280
        %v3282 = vpop.xlane.xlu0 %3281
        %v3283 = vadd.f32 %v3222, %v3224
        %3284 = vadd.xlane.f32.xlu0 %v3283
        %v3285 = vpop.xlane.xlu0 %3284
        %v3286 = vadd.f32 %v3226, %v3228
        %3287 = vadd.xlane.f32.xlu0 %v3286
        %v3288 = vpop.xlane.xlu0 %3287
        %v3289 = vadd.f32 %v3230, %v3232
        %3290 = vadd.xlane.f32.xlu0 %v3289
        %v3291 = vpop.xlane.xlu0 %3290
        %v3292 = vadd.f32 %v3234, %v3236
        %3293 = vadd.xlane.f32.xlu0 %v3292
        %v3294 = vpop.xlane.xlu0 %3293
        %v3295 = vadd.f32 %v3238, %v3240
        %3296 = vadd.xlane.f32.xlu0 %v3295
        %v3297 = vpop.xlane.xlu0 %3296
        %v3298 = vadd.f32 %v3242, %v3244
        %3299 = vadd.xlane.f32.xlu0 %v3298
        %v3300 = vpop.xlane.xlu0 %3299
        %v3301 = vadd.f32 %v3246, %v3248
        %3302 = vadd.xlane.f32.xlu0 %v3301
        %v3303 = vpop.xlane.xlu0 %3302
        %v3304 = vadd.f32 %v3250, %v3252
        %3305 = vadd.xlane.f32.xlu0 %v3304
        %v3306 = vpop.xlane.xlu0 %3305
        %v3307 = vadd.f32 %v3254, %v3256
        %3308 = vadd.xlane.f32.xlu0 %v3307
        %v3309 = vpop.xlane.xlu0 %3308
        %v3310 = vadd.f32 %v3258, %v3260
        %3311 = vadd.xlane.f32.xlu0 %v3310
        %v3312 = vpop.xlane.xlu0 %3311
        %v3313 = vadd.f32 %v3262, %v3264
        %3314 = vadd.xlane.f32.xlu0 %v3313
        %v3315 = vpop.xlane.xlu0 %3314
        %v3316 = vadd.f32 %v3266, %v3268
        %3317 = vadd.xlane.f32.xlu0 %v3316
        %v3318 = vpop.xlane.xlu0 %3317
        %v3319 = vadd.f32 %v3270, %v3272
        %3320 = vadd.xlane.f32.xlu0 %v3319
        %v3321 = vpop.xlane.xlu0 %3320
        %v3322 = vadd.f32 %v3274, %v3276
        %3323 = vadd.xlane.f32.xlu0 %v3322
        %v3324 = vpop.xlane.xlu0 %3323
        %v3325 = vrcp.pop %v3279
        %v3326 = vrcp.pop %v3282
        %v3327 = vrcp.pop %v3285
        %v3328 = vrcp.pop %v3288
        %v3329 = vrcp.pop %v3291
        %v3330 = vrcp.pop %v3294
        %v3331 = vrcp.pop %v3297
        %v3332 = vrcp.pop %v3300
        %v3333 = vrcp.pop %v3303
        %v3334 = vrcp.pop %v3306
        %v3335 = vrcp.pop %v3309
        %v3336 = vrcp.pop %v3312
        %v3337 = vrcp.pop %v3315
        %v3338 = vrcp.pop %v3318
        %v3339 = vrcp.pop %v3321
        %v3340 = vrcp.pop %v3324
        %v3341 = vpack.c.bf16 %v3218, %v3214
        %v3342 = vpack.c.bf16 %v3220, %v3216
        %v3343 = vpack.c.bf16 %v3226, %v3222
        %v3344 = vpack.c.bf16 %v3228, %v3224
        %v3345 = vpack.c.bf16 %v3234, %v3230
        %v3346 = vpack.c.bf16 %v3236, %v3232
        %v3347 = vpack.c.bf16 %v3242, %v3238
        %v3348 = vpack.c.bf16 %v3244, %v3240
        %v3349 = vpack.c.bf16 %v3250, %v3246
        %v3350 = vpack.c.bf16 %v3252, %v3248
        %v3351 = vpack.c.bf16 %v3258, %v3254
        %v3352 = vpack.c.bf16 %v3260, %v3256
        %v3353 = vpack.c.bf16 %v3266, %v3262
        %v3354 = vpack.c.bf16 %v3268, %v3264
        %v3355 = vpack.c.bf16 %v3274, %v3270
        %v3356 = vpack.c.bf16 %v3276, %v3272
        %3357 = vmatprep.subr.bf16.mxu0 0
        %3358 = vmatpush1.bf16.msra.mxu0 %v2125
        %3359 = vmatprep.subr.bf16.mxu0 0
        %3360 = vmatpush1.bf16.msra.mxu0 %v2126
        %3361 = vmatprep.subr.bf16.mxu0 0
        %3362 = vmatpush1.bf16.msra.mxu0 %v2127
        %3363 = vmatprep.subr.bf16.mxu0 0
        %3364 = vmatpush1.bf16.msra.mxu0 %v2128
        %3365 = vmatprep.subr.bf16.mxu0 0
        %3366 = vmatpush1.bf16.msra.mxu0 %v2129
        %3367 = vmatprep.subr.bf16.mxu0 0
        %3368 = vmatpush1.bf16.msra.mxu0 %v2130
        %3369 = vmatprep.subr.bf16.mxu0 0
        %3370 = vmatpush1.bf16.msra.mxu0 %v2131
        %3371 = vmatprep.subr.bf16.mxu0 0
        %3372 = vmatpush1.bf16.msra.mxu0 %v2132
        %3373 = vmatprep.subr.bf16.mxu0 0
        %3374 = vmatpush1.bf16.msra.mxu0 %v2133
        %3375 = vmatprep.subr.bf16.mxu0 0
        %3376 = vmatpush1.bf16.msra.mxu0 %v2134
        %3377 = vmatprep.subr.bf16.mxu0 0
        %3378 = vmatpush1.bf16.msra.mxu0 %v2135
        %3379 = vmatprep.subr.bf16.mxu0 0
        %3380 = vmatpush1.bf16.msra.mxu0 %v2136
        %3381 = vmatprep.subr.bf16.mxu0 0
        %3382 = vmatpush1.bf16.msra.mxu0 %v2137
        %3383 = vmatprep.subr.bf16.mxu0 0
        %3384 = vmatpush1.bf16.msra.mxu0 %v2138
        %3385 = vmatprep.subr.bf16.mxu0 0
        %3386 = vmatpush1.bf16.msra.mxu0 %v2139
        %3387 = vmatprep.subr.bf16.mxu0 0
        %3388 = vmatpush1.bf16.msra.mxu0 %v2140
        %3389 = vmatprep.mubr.bf16.mxu0 %v3342
        %3390 = vmatmul.mubr.bf16.gmra.mrb[0].mxu0 %v3341
        %v3391 = vpop.f32.mrb[0].mxu0
        %v3392 = vadd.f32 0.0, %v3391
        %v3393 = vpop.f32.mrb[0].mxu0
        %v3394 = vpop.f32.mrb[0].mxu0
        %v3395 = vadd.f32 0.0, %v3394
        %v3396 = vpop.f32.mrb[0].mxu0
        %3397 = vmatprep.mubr.bf16.mxu0 %v3344
        %3398 = vmatmul.mubr.bf16.gmra.mrb[0].mxu0 %v3343
        %v3399 = vpop.f32.mrb[0].mxu0
        %v3400 = vadd.f32 0.0, %v3399
        %v3401 = vpop.f32.mrb[0].mxu0
        %v3402 = vpop.f32.mrb[0].mxu0
        %v3403 = vadd.f32 0.0, %v3402
        %v3404 = vpop.f32.mrb[0].mxu0
        %3405 = vmatprep.mubr.bf16.mxu0 %v3346
        %3406 = vmatmul.mubr.bf16.gmra.mrb[0].mxu0 %v3345
        %v3407 = vpop.f32.mrb[0].mxu0
        %v3408 = vadd.f32 0.0, %v3407
        %v3409 = vpop.f32.mrb[0].mxu0
        %v3410 = vpop.f32.mrb[0].mxu0
        %v3411 = vadd.f32 0.0, %v3410
        %v3412 = vpop.f32.mrb[0].mxu0
        %3413 = vmatprep.mubr.bf16.mxu0 %v3348
        %3414 = vmatmul.mubr.bf16.gmra.mrb[0].mxu0 %v3347
        %v3415 = vpop.f32.mrb[0].mxu0
        %v3416 = vadd.f32 0.0, %v3415
        %v3417 = vpop.f32.mrb[0].mxu0
        %v3418 = vpop.f32.mrb[0].mxu0
        %v3419 = vadd.f32 0.0, %v3418
        %v3420 = vpop.f32.mrb[0].mxu0
        %3421 = vmatprep.mubr.bf16.mxu0 %v3350
        %3422 = vmatmul.mubr.bf16.gmra.mrb[0].mxu0 %v3349
        %v3423 = vpop.f32.mrb[0].mxu0
        %v3424 = vadd.f32 0.0, %v3423
        %v3425 = vpop.f32.mrb[0].mxu0
        %v3426 = vpop.f32.mrb[0].mxu0
        %v3427 = vadd.f32 0.0, %v3426
        %v3428 = vpop.f32.mrb[0].mxu0
        %3429 = vmatprep.mubr.bf16.mxu0 %v3352
        %3430 = vmatmul.mubr.bf16.gmra.mrb[0].mxu0 %v3351
        %v3431 = vpop.f32.mrb[0].mxu0
        %v3432 = vadd.f32 0.0, %v3431
        %v3433 = vpop.f32.mrb[0].mxu0
        %v3434 = vpop.f32.mrb[0].mxu0
        %v3435 = vadd.f32 0.0, %v3434
        %v3436 = vpop.f32.mrb[0].mxu0
        %3437 = vmatprep.mubr.bf16.mxu0 %v3354
        %3438 = vmatmul.mubr.bf16.gmra.mrb[0].mxu0 %v3353
        %v3439 = vpop.f32.mrb[0].mxu0
        %v3440 = vadd.f32 0.0, %v3439
        %v3441 = vpop.f32.mrb[0].mxu0
        %v3442 = vpop.f32.mrb[0].mxu0
        %v3443 = vadd.f32 0.0, %v3442
        %v3444 = vpop.f32.mrb[0].mxu0
        %3445 = vmatprep.mubr.bf16.mxu0 %v3356
        %3446 = vmatmul.mubr.bf16.gmra.mrb[0].mxu0 %v3355
        %v3447 = vpop.f32.mrb[0].mxu0
        %v3448 = vadd.f32 0.0, %v3447
        %v3449 = vpop.f32.mrb[0].mxu0
        %v3450 = vpop.f32.mrb[0].mxu0
        %v3451 = vadd.f32 0.0, %v3450
        %v3452 = vpop.f32.mrb[0].mxu0
        %3453 = vdwg.mxu0
        %v3454 = vmul.f32 %v3392, %v3325
        %v3455 = vmul.f32 %v3395, %v3326
        %v3456 = vmul.f32 %v3400, %v3327
        %v3457 = vmul.f32 %v3403, %v3328
        %v3458 = vmul.f32 %v3408, %v3329
        %v3459 = vmul.f32 %v3411, %v3330
        %v3460 = vmul.f32 %v3416, %v3331
        %v3461 = vmul.f32 %v3419, %v3332
        %v3462 = vmul.f32 %v3424, %v3333
        %v3463 = vmul.f32 %v3427, %v3334
        %v3464 = vmul.f32 %v3432, %v3335
        %v3465 = vmul.f32 %v3435, %v3336
        %v3466 = vmul.f32 %v3440, %v3337
        %v3467 = vmul.f32 %v3443, %v3338
        %v3468 = vmul.f32 %v3448, %v3339
        %v3469 = vmul.f32 %v3451, %v3340
        %v3470 = vpack.c.bf16 %v3455, %v3454
        %v3471 = vpack.c.bf16 %v3457, %v3456
        %v3472 = vpack.c.bf16 %v3459, %v3458
        %v3473 = vpack.c.bf16 %v3461, %v3460
        %v3474 = vpack.c.bf16 %v3463, %v3462
        %v3475 = vpack.c.bf16 %v3465, %v3464
        %v3476 = vpack.c.bf16 %v3467, %v3466
        %v3477 = vpack.c.bf16 %v3469, %v3468
        %3478 = vmatprep.subr.bf16.mxu0 %v2636
        %3479 = vmatpush1.bf16.msra.mxu0 %v2635
        %3480 = vmatprep.subr.bf16.mxu0 %v2638
        %3481 = vmatpush1.bf16.msra.mxu0 %v2637
        %3482 = vmatprep.subr.bf16.mxu0 %v2640
        %3483 = vmatpush1.bf16.msra.mxu0 %v2639
        %3484 = vmatprep.subr.bf16.mxu0 %v2642
        %3485 = vmatpush1.bf16.msra.mxu0 %v2641
        %3486 = vmatprep.subr.bf16.mxu0 %v2644
        %3487 = vmatpush1.bf16.msra.mxu0 %v2643
        %3488 = vmatprep.subr.bf16.mxu0 %v2646
        %3489 = vmatpush1.bf16.msra.mxu0 %v2645
        %3490 = vmatprep.subr.bf16.mxu0 %v2648
        %3491 = vmatpush1.bf16.msra.mxu0 %v2647
        %3492 = vmatprep.subr.bf16.mxu0 %v2650
        %3493 = vmatpush1.bf16.msra.mxu0 %v2649
        %3494 = vmatprep.subr.bf16.mxu0 0
        %3495 = vmatpush1.bf16.msra.mxu0 0
        %3496 = vmatprep.subr.bf16.mxu0 0
        %3497 = vmatpush1.bf16.msra.mxu0 0
        %3498 = vmatprep.subr.bf16.mxu0 0
        %3499 = vmatpush1.bf16.msra.mxu0 0
        %3500 = vmatprep.subr.bf16.mxu0 0
        %3501 = vmatpush1.bf16.msra.mxu0 0
        %3502 = vmatprep.subr.bf16.mxu0 0
        %3503 = vmatpush1.bf16.msra.mxu0 0
        %3504 = vmatprep.subr.bf16.mxu0 0
        %3505 = vmatpush1.bf16.msra.mxu0 0
        %3506 = vmatprep.subr.bf16.mxu0 0
        %3507 = vmatpush1.bf16.msra.mxu0 0
        %3508 = vmatprep.subr.bf16.mxu0 0
        %3509 = vmatpush1.bf16.msra.mxu0 0
        %3510 = vmatprep.mubr.bf16.mxu0 0
        %3511 = vmatmul.mubr.bf16.gmra.mrb[0].mxu0 %v3470
        %v3512 = vpop.f32.mrb[0].mxu0
        %v3513 = vadd.f32 0.0, %v3512
        %v3514 = vpop.f32.mrb[0].mxu0
        %v3515 = vadd.f32 0.0, %v3514
        %v3516 = vpop.f32.mrb[0].mxu0
        %v3517 = vadd.f32 0.0, %v3516
        %v3518 = vpop.f32.mrb[0].mxu0
        %v3519 = vadd.f32 0.0, %v3518
        %3520 = vmatprep.mubr.bf16.mxu0 0
        %3521 = vmatmul.mubr.bf16.gmra.mrb[0].mxu0 %v3471
        %v3522 = vpop.f32.mrb[0].mxu0
        %v3523 = vadd.f32 0.0, %v3522
        %v3524 = vpop.f32.mrb[0].mxu0
        %v3525 = vadd.f32 0.0, %v3524
        %v3526 = vpop.f32.mrb[0].mxu0
        %v3527 = vadd.f32 0.0, %v3526
        %v3528 = vpop.f32.mrb[0].mxu0
        %v3529 = vadd.f32 0.0, %v3528
        %3530 = vmatprep.mubr.bf16.mxu0 0
        %3531 = vmatmul.mubr.bf16.gmra.mrb[0].mxu0 %v3472
        %v3532 = vpop.f32.mrb[0].mxu0
        %v3533 = vadd.f32 0.0, %v3532
        %v3534 = vpop.f32.mrb[0].mxu0
        %v3535 = vadd.f32 0.0, %v3534
        %v3536 = vpop.f32.mrb[0].mxu0
        %v3537 = vadd.f32 0.0, %v3536
        %v3538 = vpop.f32.mrb[0].mxu0
        %v3539 = vadd.f32 0.0, %v3538
        %3540 = vmatprep.mubr.bf16.mxu0 0
        %3541 = vmatmul.mubr.bf16.gmra.mrb[0].mxu0 %v3473
        %v3542 = vpop.f32.mrb[0].mxu0
        %v3543 = vadd.f32 0.0, %v3542
        %v3544 = vpop.f32.mrb[0].mxu0
        %v3545 = vadd.f32 0.0, %v3544
        %v3546 = vpop.f32.mrb[0].mxu0
        %v3547 = vadd.f32 0.0, %v3546
        %v3548 = vpop.f32.mrb[0].mxu0
        %v3549 = vadd.f32 0.0, %v3548
        %3550 = vmatprep.mubr.bf16.mxu0 0
        %3551 = vmatmul.mubr.bf16.gmra.mrb[0].mxu0 %v3474
        %v3552 = vpop.f32.mrb[0].mxu0
        %v3553 = vadd.f32 0.0, %v3552
        %v3554 = vpop.f32.mrb[0].mxu0
        %v3555 = vadd.f32 0.0, %v3554
        %v3556 = vpop.f32.mrb[0].mxu0
        %v3557 = vadd.f32 0.0, %v3556
        %v3558 = vpop.f32.mrb[0].mxu0
        %v3559 = vadd.f32 0.0, %v3558
        %3560 = vmatprep.mubr.bf16.mxu0 0
        %3561 = vmatmul.mubr.bf16.gmra.mrb[0].mxu0 %v3475
        %v3562 = vpop.f32.mrb[0].mxu0
        %v3563 = vadd.f32 0.0, %v3562
        %v3564 = vpop.f32.mrb[0].mxu0
        %v3565 = vadd.f32 0.0, %v3564
        %v3566 = vpop.f32.mrb[0].mxu0
        %v3567 = vadd.f32 0.0, %v3566
        %v3568 = vpop.f32.mrb[0].mxu0
        %v3569 = vadd.f32 0.0, %v3568
        %3570 = vmatprep.mubr.bf16.mxu0 0
        %3571 = vmatmul.mubr.bf16.gmra.mrb[0].mxu0 %v3476
        %v3572 = vpop.f32.mrb[0].mxu0
        %v3573 = vadd.f32 0.0, %v3572
        %v3574 = vpop.f32.mrb[0].mxu0
        %v3575 = vadd.f32 0.0, %v3574
        %v3576 = vpop.f32.mrb[0].mxu0
        %v3577 = vadd.f32 0.0, %v3576
        %v3578 = vpop.f32.mrb[0].mxu0
        %v3579 = vadd.f32 0.0, %v3578
        %3580 = vmatprep.mubr.bf16.mxu0 0
        %3581 = vmatmul.mubr.bf16.gmra.mrb[0].mxu0 %v3477
        %v3582 = vpop.f32.mrb[0].mxu0
        %v3583 = vadd.f32 0.0, %v3582
        %v3584 = vpop.f32.mrb[0].mxu0
        %v3585 = vadd.f32 0.0, %v3584
        %v3586 = vpop.f32.mrb[0].mxu0
        %v3587 = vadd.f32 0.0, %v3586
        %v3588 = vpop.f32.mrb[0].mxu0
        %v3589 = vadd.f32 0.0, %v3588
        %3590 = vdwg.mxu0
        // Predicated region
        $region69: #{tpu_custom_call.1} parent=39 // pred_check
          %p3591 = pneg %p2780
        $region70: #{tpu_custom_call.1} parent=39 // pred_check_branch
          %3593 = sbr.rel (%p3591) target = $region72
        $region71: #{tpu_custom_call.1} parent=39 // pred_region
          %3594 = vst [vmem:[%s360 + $0x100] sm:$0xff] %v3513
          %3595 = vst [vmem:[%s360 + $0x108] sm:$0xff] %v3515
          %3596 = vst [vmem:[%s360 + $0x110] sm:$0xff] %v3517
          %3597 = vst [vmem:[%s360 + $0x118] sm:$0xff] %v3519
          %3598 = vst [vmem:[%s360 + $0x120] sm:$0xff] %v3523
          %3599 = vst [vmem:[%s360 + $0x128] sm:$0xff] %v3525
          %3600 = vst [vmem:[%s360 + $0x130] sm:$0xff] %v3527
          %3601 = vst [vmem:[%s360 + $0x138] sm:$0xff] %v3529
          %3602 = vst [vmem:[%s360 + $0x140] sm:$0xff] %v3533
          %3603 = vst [vmem:[%s360 + $0x148] sm:$0xff] %v3535
          %3604 = vst [vmem:[%s360 + $0x150] sm:$0xff] %v3537
          %3605 = vst [vmem:[%s360 + $0x158] sm:$0xff] %v3539
          %3606 = vst [vmem:[%s360 + $0x160] sm:$0xff] %v3543
          %3607 = vst [vmem:[%s360 + $0x168] sm:$0xff] %v3545
          %3608 = vst [vmem:[%s360 + $0x170] sm:$0xff] %v3547
          %3609 = vst [vmem:[%s360 + $0x178] sm:$0xff] %v3549
          %3610 = vst [vmem:[%s360 + $0x180] sm:$0xff] %v3553
          %3611 = vst [vmem:[%s360 + $0x188] sm:$0xff] %v3555
          %3612 = vst [vmem:[%s360 + $0x190] sm:$0xff] %v3557
          %3613 = vst [vmem:[%s360 + $0x198] sm:$0xff] %v3559
          %3614 = vst [vmem:[%s360 + $0x1a0] sm:$0xff] %v3563
          %3615 = vst [vmem:[%s360 + $0x1a8] sm:$0xff] %v3565
          %3616 = vst [vmem:[%s360 + $0x1b0] sm:$0xff] %v3567
          %3617 = vst [vmem:[%s360 + $0x1b8] sm:$0xff] %v3569
          %3618 = vst [vmem:[%s360 + $0x1c0] sm:$0xff] %v3573
          %3619 = vst [vmem:[%s360 + $0x1c8] sm:$0xff] %v3575
          %3620 = vst [vmem:[%s360 + $0x1d0] sm:$0xff] %v3577
          %3621 = vst [vmem:[%s360 + $0x1d8] sm:$0xff] %v3579
          %3622 = vst [vmem:[%s360 + $0x1e0] sm:$0xff] %v3583
          %3623 = vst [vmem:[%s360 + $0x1e8] sm:$0xff] %v3585
          %3624 = vst [vmem:[%s360 + $0x1f0] sm:$0xff] %v3587
          %3625 = vst [vmem:[%s360 + $0x1f8] sm:$0xff] %v3589
        $region72: #{tpu_custom_call.1} parent=39 // pred_fallthru
          _
        // Predicated region
        $region73: #{tpu_custom_call.1} parent=39 // pred_check
          %p3626 = pneg %p2816
        $region74: #{tpu_custom_call.1} parent=39 // pred_check_branch
          %3628 = sbr.rel (%p3626) target = $region76
        $region75: #{tpu_custom_call.1} parent=39 // pred_region
          %v3629 = vld [vmem:[%s360 + $0x100] sm:$0xff]
          %v3630 = vld [vmem:[%s360 + $0x108] sm:$0xff]
          %v3631 = vld [vmem:[%s360 + $0x110] sm:$0xff]
          %v3632 = vld [vmem:[%s360 + $0x118] sm:$0xff]
          %v3633 = vld [vmem:[%s360 + $0x120] sm:$0xff]
          %v3634 = vld [vmem:[%s360 + $0x128] sm:$0xff]
          %v3635 = vld [vmem:[%s360 + $0x130] sm:$0xff]
          %v3636 = vld [vmem:[%s360 + $0x138] sm:$0xff]
          %v3637 = vld [vmem:[%s360 + $0x140] sm:$0xff]
          %v3638 = vld [vmem:[%s360 + $0x148] sm:$0xff]
          %v3639 = vld [vmem:[%s360 + $0x150] sm:$0xff]
          %v3640 = vld [vmem:[%s360 + $0x158] sm:$0xff]
          %v3641 = vld [vmem:[%s360 + $0x160] sm:$0xff]
          %v3642 = vld [vmem:[%s360 + $0x168] sm:$0xff]
          %v3643 = vld [vmem:[%s360 + $0x170] sm:$0xff]
          %v3644 = vld [vmem:[%s360 + $0x178] sm:$0xff]
          %v3645 = vld [vmem:[%s360 + $0x180] sm:$0xff]
          %v3646 = vld [vmem:[%s360 + $0x188] sm:$0xff]
          %v3647 = vld [vmem:[%s360 + $0x190] sm:$0xff]
          %v3648 = vld [vmem:[%s360 + $0x198] sm:$0xff]
          %v3649 = vld [vmem:[%s360 + $0x1a0] sm:$0xff]
          %v3650 = vld [vmem:[%s360 + $0x1a8] sm:$0xff]
          %v3651 = vld [vmem:[%s360 + $0x1b0] sm:$0xff]
          %v3652 = vld [vmem:[%s360 + $0x1b8] sm:$0xff]
          %v3653 = vld [vmem:[%s360 + $0x1c0] sm:$0xff]
          %v3654 = vld [vmem:[%s360 + $0x1c8] sm:$0xff]
          %v3655 = vld [vmem:[%s360 + $0x1d0] sm:$0xff]
          %v3656 = vld [vmem:[%s360 + $0x1d8] sm:$0xff]
          %v3657 = vld [vmem:[%s360 + $0x1e0] sm:$0xff]
          %v3658 = vld [vmem:[%s360 + $0x1e8] sm:$0xff]
          %v3659 = vld [vmem:[%s360 + $0x1f0] sm:$0xff]
          %v3660 = vld [vmem:[%s360 + $0x1f8] sm:$0xff]
          %v3661 = vadd.f32 %v3629, %v3513
          %v3662 = vadd.f32 %v3630, %v3515
          %v3663 = vadd.f32 %v3631, %v3517
          %v3664 = vadd.f32 %v3632, %v3519
          %v3665 = vadd.f32 %v3633, %v3523
          %v3666 = vadd.f32 %v3634, %v3525
          %v3667 = vadd.f32 %v3635, %v3527
          %v3668 = vadd.f32 %v3636, %v3529
          %v3669 = vadd.f32 %v3637, %v3533
          %v3670 = vadd.f32 %v3638, %v3535
          %v3671 = vadd.f32 %v3639, %v3537
          %v3672 = vadd.f32 %v3640, %v3539
          %v3673 = vadd.f32 %v3641, %v3543
          %v3674 = vadd.f32 %v3642, %v3545
          %v3675 = vadd.f32 %v3643, %v3547
          %v3676 = vadd.f32 %v3644, %v3549
          %v3677 = vadd.f32 %v3645, %v3553
          %v3678 = vadd.f32 %v3646, %v3555
          %v3679 = vadd.f32 %v3647, %v3557
          %v3680 = vadd.f32 %v3648, %v3559
          %v3681 = vadd.f32 %v3649, %v3563
          %v3682 = vadd.f32 %v3650, %v3565
          %v3683 = vadd.f32 %v3651, %v3567
          %v3684 = vadd.f32 %v3652, %v3569
          %v3685 = vadd.f32 %v3653, %v3573
          %v3686 = vadd.f32 %v3654, %v3575
          %v3687 = vadd.f32 %v3655, %v3577
          %v3688 = vadd.f32 %v3656, %v3579
          %v3689 = vadd.f32 %v3657, %v3583
          %v3690 = vadd.f32 %v3658, %v3585
          %v3691 = vadd.f32 %v3659, %v3587
          %v3692 = vadd.f32 %v3660, %v3589
          %3693 = vst [vmem:[%s360 + $0x100] sm:$0xff] %v3661
          %3694 = vst [vmem:[%s360 + $0x108] sm:$0xff] %v3662
          %3695 = vst [vmem:[%s360 + $0x110] sm:$0xff] %v3663
          %3696 = vst [vmem:[%s360 + $0x118] sm:$0xff] %v3664
          %3697 = vst [vmem:[%s360 + $0x120] sm:$0xff] %v3665
          %3698 = vst [vmem:[%s360 + $0x128] sm:$0xff] %v3666
          %3699 = vst [vmem:[%s360 + $0x130] sm:$0xff] %v3667
          %3700 = vst [vmem:[%s360 + $0x138] sm:$0xff] %v3668
          %3701 = vst [vmem:[%s360 + $0x140] sm:$0xff] %v3669
          %3702 = vst [vmem:[%s360 + $0x148] sm:$0xff] %v3670
          %3703 = vst [vmem:[%s360 + $0x150] sm:$0xff] %v3671
          %3704 = vst [vmem:[%s360 + $0x158] sm:$0xff] %v3672
          %3705 = vst [vmem:[%s360 + $0x160] sm:$0xff] %v3673
          %3706 = vst [vmem:[%s360 + $0x168] sm:$0xff] %v3674
          %3707 = vst [vmem:[%s360 + $0x170] sm:$0xff] %v3675
          %3708 = vst [vmem:[%s360 + $0x178] sm:$0xff] %v3676
          %3709 = vst [vmem:[%s360 + $0x180] sm:$0xff] %v3677
          %3710 = vst [vmem:[%s360 + $0x188] sm:$0xff] %v3678
          %3711 = vst [vmem:[%s360 + $0x190] sm:$0xff] %v3679
          %3712 = vst [vmem:[%s360 + $0x198] sm:$0xff] %v3680
          %3713 = vst [vmem:[%s360 + $0x1a0] sm:$0xff] %v3681
          %3714 = vst [vmem:[%s360 + $0x1a8] sm:$0xff] %v3682
          %3715 = vst [vmem:[%s360 + $0x1b0] sm:$0xff] %v3683
          %3716 = vst [vmem:[%s360 + $0x1b8] sm:$0xff] %v3684
          %3717 = vst [vmem:[%s360 + $0x1c0] sm:$0xff] %v3685
          %3718 = vst [vmem:[%s360 + $0x1c8] sm:$0xff] %v3686
          %3719 = vst [vmem:[%s360 + $0x1d0] sm:$0xff] %v3687
          %3720 = vst [vmem:[%s360 + $0x1d8] sm:$0xff] %v3688
          %3721 = vst [vmem:[%s360 + $0x1e0] sm:$0xff] %v3689
          %3722 = vst [vmem:[%s360 + $0x1e8] sm:$0xff] %v3690
          %3723 = vst [vmem:[%s360 + $0x1f0] sm:$0xff] %v3691
          %3724 = vst [vmem:[%s360 + $0x1f8] sm:$0xff] %v3692
        $region76: #{tpu_custom_call.1} parent=39 // pred_fallthru
          _
        %s3725 = sand.u32 %s166, 1
        %s3726 = scalar_lea.sflag [#allocation4], %s3725
        %s3727 = sand.u32 %s166, 1
        %s3728 = smul.addr %s3727, 512
        %s3729 = scalar_lea.vmem [#allocation11], %s3728
        // Predicated region
        $region77: #{tpu_custom_call.1} parent=39 // pred_check
          %p3730 = pneg %p176
        $region78: #{tpu_custom_call.1} parent=39 // pred_check_branch
          %3732 = sbr.rel (%p3730) target = $region80
        $region79: #{tpu_custom_call.1} parent=39 // pred_region
          %s3734 = ssub.s32 8192, 8192
          %3735 = vsyncadd %s3726, %s3734
          %s3736 = smul.addr %s30, 64
          %s3737 = smul.addr %s3736, 128
          %s3738 = scalar_lea.hbm %s5, %s3737
          %s3739 = sshll.u32 %s3729, 4
          %s3740 = int_to_ptr.vmem [resolvable:$true] %s3739
          %3745 = dma.vmem_to_hbm [thread:$0]  %s3740, 8192, %s3738, %s3726, 256, 256, 16
        $region80: #{tpu_custom_call.1} parent=39 // pred_fallthru
          _
      $region40: #{tpu_custom_call.1} parent=5 // pred_fallthru
        _
      %p3746 = scmp.le.s32.totalorder 2, %s21
      // Predicated region
      $region81: #{tpu_custom_call.1} parent=5 // pred_check
        %p3747 = pneg %p3746
      $region82: #{tpu_custom_call.1} parent=5 // pred_check_branch
        %3749 = sbr.rel (%p3747) target = $region84
      $region83: #{tpu_custom_call.1} parent=5 // pred_region
        %s3750 = ssub.s32 %s21, 2
        // Predicated region
        $region85: #{tpu_custom_call.1} parent=83 // pred_check
          %p3751 = pneg %p182
        $region86: #{tpu_custom_call.1} parent=83 // pred_check_branch
          %3753 = sbr.rel (%p3751) target = $region88
        $region87: #{tpu_custom_call.1} parent=83 // pred_region
          %s3754 = sand.u32 %s167, 1
          %s3755 = scalar_lea.sflag [#allocation4], %s3754
          %s3756 = sand.u32 %s167, 1
          %s3757 = smul.addr %s3756, 512
          %s3758 = scalar_lea.vmem [#allocation11], %s3757
          %3759 = dma.done %s3755, 8192
        $region88: #{tpu_custom_call.1} parent=83 // pred_fallthru
          _
      $region84: #{tpu_custom_call.1} parent=5 // pred_fallthru
        _
    $region6: #{tpu_custom_call.1} parent=1 // loop_footer
      %s25 = sadd.s32 1, %s21
    $region7: #{tpu_custom_call.1} parent=1 // loop_footer_branch
      %20 = sbr.rel target = $region3
    $region8: #{tpu_custom_call.1} parent=1 // loop_exit
      _
    %3760 = vsyncpa [#allocation3], 1
    %s3761 = scalar_lea.sflag [#allocation3], 1
    %3762 = vsyncpa %s3761, 1
    %3763 = vsyncpa [#allocation6], 1
    %3764 = vsyncpa [#allocation9], 1
    %s3765 = scalar_lea.sflag [#allocation9], 1
    %3766 = vsyncpa %s3765, 1
    %3767 = vsyncpa [#allocation4], 1
    %s3768 = scalar_lea.sflag [#allocation4], 1
    %3769 = vsyncpa %s3768, 1

</llo_original>
